<compile_context>
chip_gen: v7x
topology: tpu7x:2x2x1
jax: 0.10.0
libtpu: 0.0.40
codegen_flags: <defaults>
</compile_context>

<pallas_src>
import jax
import jax.numpy as jnp
from jax import lax
from jax.experimental import pallas as pl
from jax.experimental.pallas import tpu as pltpu


def _make_generator_kernel(T_blk, Bc, H, N, tscale, unroll):
    """Fused kernel: reversible-Heun (Stratonovich) integration of the
    GeneratorFunc drift+diffusion (fused into one block-diagonal MLP).
    One invocation handles one (batch-chunk, time-block); solver state is
    carried across time-blocks in VMEM scratch."""
    NH = N * H

    def kernel(ts_ref, dts_ref, dw_ref,
               Wt0, Wx0, b0, W1, b1, W2, b2, E_ref, S_ref,
               ys_ref, y_sc, z_sc, f_sc, g_sc):
        tb = pl.program_id(1)
        base = tb * T_blk

        def fused_fg(t, x):
            # MLP([t, x]) for drift and diffusion simultaneously:
            #   layer0 = t*Wt0 + x@Wx0 + b0      (Bc, 2M)
            #   layer1 = block-diag               (Bc, 2M)
            #   layer2 = block-diag               (Bc, H + N*H)
            # followed by tscale * tanh.  torch.cat([t, x]) @ W == t*W[0:1] + x@W[1:].
            h = (t * Wt0[...]
                 + jnp.dot(x.astype(jnp.bfloat16), Wx0[...],
                           preferred_element_type=jnp.float32)
                 + b0[...])
            h = jnp.maximum(h, 0.0)
            h = jnp.dot(h.astype(jnp.bfloat16), W1[...],
                        preferred_element_type=jnp.float32) + b1[...]
            h = jnp.maximum(h, 0.0)
            out = jnp.dot(h.astype(jnp.bfloat16), W2[...],
                          preferred_element_type=jnp.float32) + b2[...]
            out = tscale * jnp.tanh(out)
            return out[:, :H], out[:, H:]        # f: (Bc,H), g: (Bc,N*H) n-major

        def prod(g_flat, dwe):
            # sum_n g[b,h,n] * dW[b,n]  ==  (g_flat * dwe) @ S
            # (n-major g, dwe = dW lane-expanded; S tiles I_H N times).
            # Equals torch.bmm(g.view(B, H, N), dW.unsqueeze(-1)).squeeze(-1).
            return jnp.dot((g_flat * dwe).astype(jnp.bfloat16), S_ref[...],
                           preferred_element_type=jnp.float32)

        # First time-block of a batch chunk: seed the carried solver state.
        # The generic step at global index 0 (where dts[0]=0 and dW[0]=0) then
        # reproduces torchsde's reversible_heun initialisation exactly:
        #   z1 = 2*x0 - x0 = x0,  (f1, g1) = f_and_g(t0, x0),  y1 = x0.
        @pl.when(tb == 0)
        def _():
            x0 = jnp.ones((Bc, H), jnp.float32)   # fixed=True -> x0 = full(1.0)
            y_sc[...] = x0
            z_sc[...] = x0
            f_sc[...] = jnp.zeros((Bc, H), jnp.float32)
            g_sc[...] = jnp.zeros((Bc, NH), jnp.float32)

        # --- reversible Heun (torchsde method='reversible_heun', stratonovich) ---
        def body(i, carry):
            y0, z0, fp, gp = carry
            j = base + i
            dt = dts_ref[j]
            # Expand dW (Bc, N) -> n-major (Bc, N*H) on the MXU (idle slots).
            dwe = jnp.dot(dw_ref[i].astype(jnp.bfloat16), E_ref[...],
                          preferred_element_type=jnp.float32)
            p0 = prod(gp, dwe)
            z1 = 2.0 * y0 - z0 + fp * dt + p0
            f1, g1 = fused_fg(ts_ref[j], z1)
            p1 = prod(g1, dwe)
            # prod(0.5*(g0+g1), dW) == 0.5*(prod(g0,dW) + prod(g1,dW))
            y1 = y0 + 0.5 * dt * (fp + f1) + 0.5 * (p0 + p1)
            ys_ref[i] = y1
            return (y1, z1, f1, g1)

        carry = (y_sc[...], z_sc[...], f_sc[...], g_sc[...])
        yN, zN, fN, gN = lax.fori_loop(0, T_blk, body, carry, unroll=unroll)
        y_sc[...] = yN
        z_sc[...] = zN
        f_sc[...] = fN
        g_sc[...] = gN

    return kernel


def init_params(key, *, hidden_size, mlp_size, noise_size, data_size):
    """Deterministic PyTorch-style Linear init (U[-1/sqrt(fan_in), 1/sqrt(fan_in)]).
    Weights are (fan_in, fan_out) == torch weight.T; biases are (1, fan_out).
    Generator._initial is unused when fixed=True, so it is not materialised."""
    def linear(k, fan_in, fan_out):
        kw, kb = jax.random.split(k)
        bound = 1.0 / float(fan_in) ** 0.5
        W = jax.random.uniform(kw, (fan_in, fan_out), jnp.float32, -bound, bound)
        b = jax.random.uniform(kb, (1, fan_out), jnp.float32, -bound, bound)
        return W, b

    keys = jax.random.split(key, 7)
    p = {}
    # GeneratorFunc._drift : MLP(1 + H -> mlp -> mlp -> H), num_layers = 2
    p["fW0"], p["fb0"] = linear(keys[0], 1 + hidden_size, mlp_size)
    p["fW1"], p["fb1"] = linear(keys[1], mlp_size, mlp_size)
    p["fW2"], p["fb2"] = linear(keys[2], mlp_size, hidden_size)
    # GeneratorFunc._diffusion : MLP(1 + H -> mlp -> mlp -> H * noise_size)
    p["gW0"], p["gb0"] = linear(keys[3], 1 + hidden_size, mlp_size)
    p["gW1"], p["gb1"] = linear(keys[4], mlp_size, mlp_size)
    p["gW2"], p["gb2"] = linear(keys[5], mlp_size, hidden_size * noise_size)
    # Generator._readout : Linear(H, data_size)
    p["rW"], p["rb"] = linear(keys[6], hidden_size, data_size)
    return p


def _num_tensorcores(default=1):
    """Best-effort query of TensorCores per chip (2 on v7x, 1 on v5e/v6e).
    Falls back to 1 (the safe choice: no batch split on single-TC chips)."""
    try:
        info = pltpu.get_tpu_info()
    except Exception:
        return default
    for name in ("num_cores", "core_count", "num_tensorcores",
                 "tensorcore_count", "cores_per_chip"):
        v = getattr(info, name, None)
        if isinstance(v, int) and v > 0:
            return v
    return default


def _pick_batch_chunks(B, num_tc, max_bc=64):
    """Smallest chunk count with Bc <= max_bc, Bc % 8 == 0 (unless unsplit),
    and (when possible) at least one chunk per TensorCore."""
    valid = [c for c in range(1, B + 1)
             if B % c == 0 and (c == 1 or (B // c) % 8 == 0)]
    for c in valid:
        if B // c <= max_bc and c >= num_tc:
            return c
    for c in valid:
        if B // c <= max_bc:
            return c
    return 1


def generator_forward(ts, batch_size, params, *, hidden_size, noise_size,
                      data_size, mlp_size, tscale=1.0, bm_key=None,
                      num_tensorcores=None, t_block=256, max_batch_chunk=64):
    """Equivalent of Generator.forward(ts, batch_size)."""
    T = int(ts.shape[0])
    B, H, N, M = batch_size, hidden_size, noise_size, mlp_size
    ts = ts.astype(jnp.float32)

    # --- time-axis tiling (bounds VMEM regardless of trajectory length) -------
    T_blk = min(T, int(t_block))
    n_tblocks = pl.cdiv(T, T_blk)
    T_pad = n_tblocks * T_blk

    # Per-interval step sizes; dts[0] is unused by the math and set to 0.
    # TODO(synk): torchsde steps with fixed dt = diff(ts)[0]*dt_scale and then
    # interpolates onto ts; with dt_scale=1 on a uniform grid, stepping directly
    # on the ts grid (done here) is identical.
    dts = jnp.concatenate([jnp.zeros((1,), jnp.float32), jnp.diff(ts)])

    # Brownian increments over each interval [ts[j-1], ts[j]] (variance = dt).
    # TODO(synk): torchsde's BrownianInterval sampling is replaced by these
    # deterministic jax.random draws (the solver math is otherwise exact).
    dW = (jax.random.normal(bm_key, (T - 1, B, N), dtype=jnp.float32)
          * jnp.sqrt(jnp.diff(ts))[:, None, None])
    dW = jnp.concatenate([jnp.zeros((1, B, N), jnp.float32), dW], axis=0)

    if T_pad > T:   # pad the time axis; padded steps have dt=0, dW=0 (no-ops)
        pad = T_pad - T
        ts_k = jnp.concatenate([ts, jnp.full((pad,), ts[-1], jnp.float32)])
        dts = jnp.concatenate([dts, jnp.zeros((pad,), jnp.float32)])
        dW = jnp.concatenate([dW, jnp.zeros((pad, B, N), jnp.float32)], axis=0)
    else:
        ts_k = ts

    # --- fuse drift + diffusion MLPs (block-diagonal); bf16 matmul weights ----
    # diffusion final layer: relayout PyTorch h-major (.view(B,H,N), col=h*N+n)
    # to the kernel's n-major layout (col = n*H + h).
    wdt = jnp.bfloat16
    gW2 = params["gW2"].reshape(M, H, N).transpose(0, 2, 1).reshape(M, H * N)
    gb2 = params["gb2"].reshape(1, H, N).transpose(0, 2, 1).reshape(1, H * N)

    zMM = jnp.zeros((M, M), jnp.float32)
    zMH = jnp.zeros((M, H), jnp.float32)
    zMHN = jnp.zeros((M, H * N), jnp.float32)

    Wt0 = jnp.concatenate([params["fW0"][0:1], params["gW0"][0:1]], axis=1)      # (1, 2M)  f32 (elementwise)
    Wx0 = jnp.concatenate([params["fW0"][1:], params["gW0"][1:]],
                          axis=1).astype(wdt)                                    # (H, 2M)
    b0 = jnp.concatenate([params["fb0"], params["gb0"]], axis=1)                 # (1, 2M)
    W1 = jnp.concatenate([jnp.concatenate([params["fW1"], zMM], axis=1),
                          jnp.concatenate([zMM, params["gW1"]], axis=1)],
                         axis=0).astype(wdt)                                     # (2M, 2M)
    b1 = jnp.concatenate([params["fb1"], params["gb1"]], axis=1)                 # (1, 2M)
    W2 = jnp.concatenate([jnp.concatenate([params["fW2"], zMHN], axis=1),
                          jnp.concatenate([zMH, gW2], axis=1)],
                         axis=0).astype(wdt)                                     # (2M, H+N*H)
    b2 = jnp.concatenate([params["fb2"], gb2], axis=1)                           # (1, H+N*H)
    E = jnp.repeat(jnp.eye(N, dtype=jnp.float32), H, axis=1).astype(wdt)         # (N, N*H)  selector (lane expand)
    S = jnp.tile(jnp.eye(H, dtype=jnp.float32), (N, 1)).astype(wdt)              # (N*H, H)  selector (n-sum)
    weights = (Wt0, Wx0, b0, W1, b1, W2, b2, E, S)

    # --- batch chunking: split only when >1 TensorCore (v7x megacore) ---------
    num_tc = num_tensorcores if num_tensorcores is not None else _num_tensorcores()
    num_chunks = _pick_batch_chunks(B, num_tc, max_bc=max_batch_chunk)
    Bc = B // num_chunks

    # Small unroll: full for short blocks, 4 otherwise (LLO scheduling window).
    unroll = T_blk if T_blk <= 16 else 4

    def wspec(a):
        return pl.BlockSpec(a.shape, lambda b, t: (0, 0))   # all weights are 2-D

    in_specs = [
        pl.BlockSpec(memory_space=pltpu.MemorySpace.SMEM),     # ts  (T_pad,)
        pl.BlockSpec(memory_space=pltpu.MemorySpace.SMEM),     # dts (T_pad,)
        pl.BlockSpec((T_blk, Bc, N), lambda b, t: (t, b, 0)),  # raw dW block
    ] + [wspec(w) for w in weights]

    # Explicit scoped-VMEM budget (defaults: 16 MiB v5e / 32 MiB v6e-v7x).
    dw_blk = T_blk * Bc * N * 4
    ys_blk = T_blk * Bc * H * 4
    w_bytes = int(sum(int(w.size) * w.dtype.itemsize for w in weights))
    scratch_bytes = Bc * (3 * H + N * H) * 4
    est = 2 * (dw_blk + ys_blk) + 2 * w_bytes + scratch_bytes
    vmem_limit = int(min(max(4 * est, 16 * 1024 * 1024), 64 * 1024 * 1024))

    ys_tmaj = pl.pallas_call(
        _make_generator_kernel(T_blk, Bc, H, N, tscale, unroll),
        out_shape=jax.ShapeDtypeStruct((T_pad, B, H), jnp.float32),
        grid_spec=pltpu.PrefetchScalarGridSpec(
            num_scalar_prefetch=0,
            grid=(num_chunks, n_tblocks),
            in_specs=in_specs,
            out_specs=pl.BlockSpec((T_blk, Bc, H), lambda b, t: (t, b, 0)),
            scratch_shapes=[
                pltpu.VMEM((Bc, H), jnp.float32),       # y  (carried state)
                pltpu.VMEM((Bc, H), jnp.float32),       # z
                pltpu.VMEM((Bc, H), jnp.float32),       # f
                pltpu.VMEM((Bc, H * N), jnp.float32),   # g  (n-major)
            ]),
        compiler_params=pltpu.CompilerParams(
            dimension_semantics=("parallel", "arbitrary"),
            vmem_limit_bytes=vmem_limit),
    )(ts_k, dts, dW, *weights)

    ys_tmaj = ys_tmaj[:T]                                                     # drop T padding
    # Readout (H -> D) BEFORE the transpose: contract H first, then transpose
    # the ~H/D-times-smaller result (pure HBM-bandwidth win in the epilogue).
    ys_D = jnp.dot(ys_tmaj, params["rW"],
                   preferred_element_type=jnp.float32) + params["rb"]         # (T, B, D)
    ys = jnp.transpose(ys_D, (1, 0, 2))                                       # (B, T, D)
    ts_exp = jnp.broadcast_to(ts[None, :, None], (B, T, 1))                   # (B, T, 1)
    coeffs = jnp.concatenate([ts_exp, ys], axis=2)                            # (B, T, 1+D)
    # torchcde.linear_interpolation_coeffs is the identity on NaN-free inputs.
    return coeffs


if __name__ == "__main__":
    key = jax.random.PRNGKey(0)
    k_params, k_bm = jax.random.split(key)

    B, T = 8, 8          # batch_size, len(ts)
    H, M = 16, 32        # hidden_size, mlp_size
    N, D = 4, 3          # noise_size, data_size
    # num_layers=2, activation=ReLU, tanh=True, tscale=1.0, fixed=True,
    # noise_type='general', sde_type='stratonovich',
    # integration_method='reversible_heun', dt_scale=1

    ts = jnp.linspace(0.0, 1.0, T, dtype=jnp.float32)
    params = init_params(k_params, hidden_size=H, mlp_size=M,
                         noise_size=N, data_size=D)

    out = generator_forward(ts, B, params, hidden_size=H, noise_size=N,
                            data_size=D, mlp_size=M, tscale=1.0, bm_key=k_bm)
    out = jax.block_until_ready(out)
    assert out.shape == (B, T, 1 + D), out.shape
    assert bool(jnp.all(jnp.isfinite(out)))
    print("KERNEL_OK")
</pallas_src>

<mosaic_0001>
module attributes {stable_mosaic.version = 11 : i64} {
  func.func @kernel(%arg0: i32, %arg1: i32, %arg2: memref<8xf32, #tpu.memory_space<smem>>, %arg3: memref<8xf32, #tpu.memory_space<smem>>, %arg4: memref<8x8x4xf32, #tpu.memory_space<vmem>>, %arg5: memref<1x64xf32, #tpu.memory_space<vmem>>, %arg6: memref<16x64xbf16, #tpu.memory_space<vmem>>, %arg7: memref<1x64xf32, #tpu.memory_space<vmem>>, %arg8: memref<64x64xbf16, #tpu.memory_space<vmem>>, %arg9: memref<1x64xf32, #tpu.memory_space<vmem>>, %arg10: memref<64x80xbf16, #tpu.memory_space<vmem>>, %arg11: memref<1x80xf32, #tpu.memory_space<vmem>>, %arg12: memref<4x64xbf16, #tpu.memory_space<vmem>>, %arg13: memref<64x16xbf16, #tpu.memory_space<vmem>>, %arg14: memref<8x8x16xf32, #tpu.memory_space<vmem>>, %arg15: memref<8x16xf32, #tpu.memory_space<vmem>>, %arg16: memref<8x16xf32, #tpu.memory_space<vmem>>, %arg17: memref<8x16xf32, #tpu.memory_space<vmem>>, %arg18: memref<8x64xf32, #tpu.memory_space<vmem>>) attributes {dimension_semantics = [#tpu.dimension_semantics<parallel>, #tpu.dimension_semantics<arbitrary>], iteration_bounds = array<i64: 1, 1>, scalar_prefetch = 0 : i64, scratch_operands = 4 : i64, tpu.core_type = #tpu.core_type<tc>, window_params = [{transform_indices = @transform_0, window_bounds = array<i64: 8>}, {transform_indices = @transform_1, window_bounds = array<i64: 8>}, {transform_indices = @transform_2, window_bounds = array<i64: 8, 8, 4>}, {pipeline_mode = #tpu.pipeline_mode<synchronous>, transform_indices = @transform_3, window_bounds = array<i64: 1, 64>}, {pipeline_mode = #tpu.pipeline_mode<synchronous>, transform_indices = @transform_4, window_bounds = array<i64: 16, 64>}, {pipeline_mode = #tpu.pipeline_mode<synchronous>, transform_indices = @transform_5, window_bounds = array<i64: 1, 64>}, {pipeline_mode = #tpu.pipeline_mode<synchronous>, transform_indices = @transform_6, window_bounds = array<i64: 64, 64>}, {pipeline_mode = #tpu.pipeline_mode<synchronous>, transform_indices = @transform_7, window_bounds = array<i64: 1, 64>}, {pipeline_mode = #tpu.pipeline_mode<synchronous>, transform_indices = @transform_8, window_bounds = array<i64: 64, 80>}, {pipeline_mode = #tpu.pipeline_mode<synchronous>, transform_indices = @transform_9, window_bounds = array<i64: 1, 80>}, {pipeline_mode = #tpu.pipeline_mode<synchronous>, transform_indices = @transform_10, window_bounds = array<i64: 4, 64>}, {pipeline_mode = #tpu.pipeline_mode<synchronous>, transform_indices = @transform_11, window_bounds = array<i64: 64, 16>}, {transform_indices = @transform_12, window_bounds = array<i64: 8, 8, 16>}]} {
    %c8_i32 = arith.constant 8 : i32
    %0 = arith.muli %arg1, %c8_i32 : i32
    %c0_i32 = arith.constant 0 : i32
    %1 = arith.cmpi eq, %arg1, %c0_i32 : i32
    %2 = arith.extui %1 : i1 to i32
    %c0_i32_0 = arith.constant 0 : i32
    %3 = arith.cmpi ne, %2, %c0_i32_0 : i32
    scf.if %3 {
      %cst_305 = arith.constant 1.000000e+00 : f32
      %580 = vector.broadcast %cst_305 : f32 to vector<8x16xf32>
      %c0_306 = arith.constant 0 : index
      %c0_307 = arith.constant 0 : index
      %581 = vector.load %arg15[%c0_306, %c0_307] : memref<8x16xf32, #tpu.memory_space<vmem>>, vector<8x16xf32>
      tpu.vector_store %arg15[%c0_306, %c0_307], %580 {strides = array<i32>} : memref<8x16xf32, #tpu.memory_space<vmem>>, vector<8x16xf32>,
      %c0_308 = arith.constant 0 : index
      %c0_309 = arith.constant 0 : index
      %582 = vector.load %arg16[%c0_308, %c0_309] : memref<8x16xf32, #tpu.memory_space<vmem>>, vector<8x16xf32>
      tpu.vector_store %arg16[%c0_308, %c0_309], %580 {strides = array<i32>} : memref<8x16xf32, #tpu.memory_space<vmem>>, vector<8x16xf32>,
      %cst_310 = arith.constant 0.000000e+00 : f32
      %583 = vector.broadcast %cst_310 : f32 to vector<8x16xf32>
      %c0_311 = arith.constant 0 : index
      %c0_312 = arith.constant 0 : index
      %584 = vector.load %arg17[%c0_311, %c0_312] : memref<8x16xf32, #tpu.memory_space<vmem>>, vector<8x16xf32>
      tpu.vector_store %arg17[%c0_311, %c0_312], %583 {strides = array<i32>} : memref<8x16xf32, #tpu.memory_space<vmem>>, vector<8x16xf32>,
      %cst_313 = arith.constant 0.000000e+00 : f32
      %585 = vector.broadcast %cst_313 : f32 to vector<8x64xf32>
      %c0_314 = arith.constant 0 : index
      %c0_315 = arith.constant 0 : index
      %586 = vector.load %arg18[%c0_314, %c0_315] : memref<8x64xf32, #tpu.memory_space<vmem>>, vector<8x64xf32>
      tpu.vector_store %arg18[%c0_314, %c0_315], %585 {strides = array<i32>} : memref<8x64xf32, #tpu.memory_space<vmem>>, vector<8x64xf32>,
    } else {
    }
    %c0 = arith.constant 0 : index
    %c0_1 = arith.constant 0 : index
    %4 = vector.load %arg15[%c0, %c0_1] : memref<8x16xf32, #tpu.memory_space<vmem>>, vector<8x16xf32>
    %c0_2 = arith.constant 0 : index
    %c0_3 = arith.constant 0 : index
    %5 = vector.load %arg16[%c0_2, %c0_3] : memref<8x16xf32, #tpu.memory_space<vmem>>, vector<8x16xf32>
    %c0_4 = arith.constant 0 : index
    %c0_5 = arith.constant 0 : index
    %6 = vector.load %arg17[%c0_4, %c0_5] : memref<8x16xf32, #tpu.memory_space<vmem>>, vector<8x16xf32>
    %c0_6 = arith.constant 0 : index
    %c0_7 = arith.constant 0 : index
    %7 = vector.load %arg18[%c0_6, %c0_7] : memref<8x64xf32, #tpu.memory_space<vmem>>, vector<8x64xf32>
    %c0_i32_8 = arith.constant 0 : i32
    %8 = arith.addi %0, %c0_i32_8 : i32
    %9 = arith.index_cast %8 : i32 to index
    %10 = memref.load %arg3[%9] : memref<8xf32, #tpu.memory_space<smem>>
    %11 = arith.index_cast %c0_i32_8 : i32 to index
    %c0_9 = arith.constant 0 : index
    %c0_10 = arith.constant 0 : index
    %12 = vector.load %arg4[%11, %c0_9, %c0_10] : memref<8x8x4xf32, #tpu.memory_space<vmem>>, vector<1x8x4xf32>
    %13 = vector.shape_cast %12 : vector<1x8x4xf32> to vector<8x4xf32>
    %14 = arith.truncf %13 : vector<8x4xf32> to vector<8x4xbf16>
    %c0_11 = arith.constant 0 : index
    %c0_12 = arith.constant 0 : index
    %15 = vector.load %arg12[%c0_11, %c0_12] : memref<4x64xbf16, #tpu.memory_space<vmem>>, vector<4x64xbf16>
    %cst = arith.constant dense<0.000000e+00> : vector<8x64xf32>
    %16 = tpu.matmul %14, %15, %cst {dimension_numbers = #tpu.dot_dimension_numbers<[1], [0], [0], [1], [0, 0, 1, 1], [], []>} : vector<8x4xbf16>, vector<4x64xbf16>, vector<8x64xf32> -> vector<8x64xf32>
    %17 = arith.mulf %7, %16 : vector<8x64xf32>
    %18 = arith.truncf %17 : vector<8x64xf32> to vector<8x64xbf16>
    %c0_13 = arith.constant 0 : index
    %c0_14 = arith.constant 0 : index
    %19 = vector.load %arg13[%c0_13, %c0_14] : memref<64x16xbf16, #tpu.memory_space<vmem>>, vector<64x16xbf16>
    %cst_15 = arith.constant dense<0.000000e+00> : vector<8x16xf32>
    %20 = tpu.matmul %18, %19, %cst_15 {dimension_numbers = #tpu.dot_dimension_numbers<[1], [0], [0], [1], [0, 0, 1, 1], [], []>} : vector<8x64xbf16>, vector<64x16xbf16>, vector<8x16xf32> -> vector<8x16xf32>
    %cst_16 = arith.constant 2.000000e+00 : f32
    %21 = vector.broadcast %cst_16 : f32 to vector<8x16xf32>
    %22 = arith.mulf %21, %4 : vector<8x16xf32>
    %23 = arith.subf %22, %5 : vector<8x16xf32>
    %24 = vector.broadcast %10 : f32 to vector<8x16xf32>
    %25 = arith.mulf %6, %24 : vector<8x16xf32>
    %26 = arith.addf %23, %25 : vector<8x16xf32>
    %27 = arith.addf %26, %20 : vector<8x16xf32>
    %28 = arith.index_cast %8 : i32 to index
    %29 = memref.load %arg2[%28] : memref<8xf32, #tpu.memory_space<smem>>
    %c0_17 = arith.constant 0 : index
    %c0_18 = arith.constant 0 : index
    %30 = vector.load %arg5[%c0_17, %c0_18] : memref<1x64xf32, #tpu.memory_space<vmem>>, vector<1x64xf32>
    %31 = vector.broadcast %29 : f32 to vector<1x64xf32>
    %32 = arith.mulf %31, %30 : vector<1x64xf32>
    %33 = arith.truncf %27 : vector<8x16xf32> to vector<8x16xbf16>
    %c0_19 = arith.constant 0 : index
    %c0_20 = arith.constant 0 : index
    %34 = vector.load %arg6[%c0_19, %c0_20] : memref<16x64xbf16, #tpu.memory_space<vmem>>, vector<16x64xbf16>
    %cst_21 = arith.constant dense<0.000000e+00> : vector<8x64xf32>
    %35 = tpu.matmul %33, %34, %cst_21 {dimension_numbers = #tpu.dot_dimension_numbers<[1], [0], [0], [1], [0, 0, 1, 1], [], []>} : vector<8x16xbf16>, vector<16x64xbf16>, vector<8x64xf32> -> vector<8x64xf32>
    %36 = vector.broadcast %32 : vector<1x64xf32> to vector<8x64xf32>
    %37 = arith.addf %36, %35 : vector<8x64xf32>
    %c0_22 = arith.constant 0 : index
    %c0_23 = arith.constant 0 : index
    %38 = vector.load %arg7[%c0_22, %c0_23] : memref<1x64xf32, #tpu.memory_space<vmem>>, vector<1x64xf32>
    %39 = vector.broadcast %38 : vector<1x64xf32> to vector<8x64xf32>
    %40 = arith.addf %37, %39 : vector<8x64xf32>
    %cst_24 = arith.constant 0.000000e+00 : f32
    %41 = vector.broadcast %cst_24 : f32 to vector<8x64xf32>
    %42 = arith.maximumf %40, %41 : vector<8x64xf32>
    %43 = arith.truncf %42 : vector<8x64xf32> to vector<8x64xbf16>
    %c0_25 = arith.constant 0 : index
    %c0_26 = arith.constant 0 : index
    %44 = vector.load %arg8[%c0_25, %c0_26] : memref<64x64xbf16, #tpu.memory_space<vmem>>, vector<64x64xbf16>
    %cst_27 = arith.constant dense<0.000000e+00> : vector<8x64xf32>
    %45 = tpu.matmul %43, %44, %cst_27 {dimension_numbers = #tpu.dot_dimension_numbers<[1], [0], [0], [1], [0, 0, 1, 1], [], []>} : vector<8x64xbf16>, vector<64x64xbf16>, vector<8x64xf32> -> vector<8x64xf32>
    %c0_28 = arith.constant 0 : index
    %c0_29 = arith.constant 0 : index
    %46 = vector.load %arg9[%c0_28, %c0_29] : memref<1x64xf32, #tpu.memory_space<vmem>>, vector<1x64xf32>
    %47 = vector.broadcast %46 : vector<1x64xf32> to vector<8x64xf32>
    %48 = arith.addf %45, %47 : vector<8x64xf32>
    %cst_30 = arith.constant 0.000000e+00 : f32
    %49 = vector.broadcast %cst_30 : f32 to vector<8x64xf32>
    %50 = arith.maximumf %48, %49 : vector<8x64xf32>
    %51 = arith.truncf %50 : vector<8x64xf32> to vector<8x64xbf16>
    %c0_31 = arith.constant 0 : index
    %c0_32 = arith.constant 0 : index
    %52 = vector.load %arg10[%c0_31, %c0_32] : memref<64x80xbf16, #tpu.memory_space<vmem>>, vector<64x80xbf16>
    %cst_33 = arith.constant dense<0.000000e+00> : vector<8x80xf32>
    %53 = tpu.matmul %51, %52, %cst_33 {dimension_numbers = #tpu.dot_dimension_numbers<[1], [0], [0], [1], [0, 0, 1, 1], [], []>} : vector<8x64xbf16>, vector<64x80xbf16>, vector<8x80xf32> -> vector<8x80xf32>
    %c0_34 = arith.constant 0 : index
    %c0_35 = arith.constant 0 : index
    %54 = vector.load %arg11[%c0_34, %c0_35] : memref<1x80xf32, #tpu.memory_space<vmem>>, vector<1x80xf32>
    %55 = vector.broadcast %54 : vector<1x80xf32> to vector<8x80xf32>
    %56 = arith.addf %53, %55 : vector<8x80xf32>
    %57 = math.tanh %56 : vector<8x80xf32>
    %cst_36 = arith.constant 1.000000e+00 : f32
    %58 = vector.broadcast %cst_36 : f32 to vector<8x80xf32>
    %59 = arith.mulf %58, %57 : vector<8x80xf32>
    %60 = vector.extract_strided_slice %59 {offsets = [0, 0], sizes = [8, 16], strides = [1, 1]} : vector<8x80xf32> to vector<8x16xf32>
    %61 = vector.extract_strided_slice %59 {offsets = [0, 16], sizes = [8, 64], strides = [1, 1]} : vector<8x80xf32> to vector<8x64xf32>
    %62 = arith.mulf %61, %16 : vector<8x64xf32>
    %63 = arith.truncf %62 : vector<8x64xf32> to vector<8x64xbf16>
    %c0_37 = arith.constant 0 : index
    %c0_38 = arith.constant 0 : index
    %64 = vector.load %arg13[%c0_37, %c0_38] : memref<64x16xbf16, #tpu.memory_space<vmem>>, vector<64x16xbf16>
    %cst_39 = arith.constant dense<0.000000e+00> : vector<8x16xf32>
    %65 = tpu.matmul %63, %64, %cst_39 {dimension_numbers = #tpu.dot_dimension_numbers<[1], [0], [0], [1], [0, 0, 1, 1], [], []>} : vector<8x64xbf16>, vector<64x16xbf16>, vector<8x16xf32> -> vector<8x16xf32>
    %cst_40 = arith.constant 5.000000e-01 : f32
    %66 = arith.mulf %cst_40, %10 : f32
    %67 = arith.addf %6, %60 : vector<8x16xf32>
    %68 = vector.broadcast %66 : f32 to vector<8x16xf32>
    %69 = arith.mulf %68, %67 : vector<8x16xf32>
    %70 = arith.addf %4, %69 : vector<8x16xf32>
    %71 = arith.addf %20, %65 : vector<8x16xf32>
    %cst_41 = arith.constant 5.000000e-01 : f32
    %72 = vector.broadcast %cst_41 : f32 to vector<8x16xf32>
    %73 = arith.mulf %72, %71 : vector<8x16xf32>
    %74 = arith.addf %70, %73 : vector<8x16xf32>
    %75 = arith.index_cast %c0_i32_8 : i32 to index
    %c0_42 = arith.constant 0 : index
    %c0_43 = arith.constant 0 : index
    %76 = vector.load %arg14[%75, %c0_42, %c0_43] : memref<8x8x16xf32, #tpu.memory_space<vmem>>, vector<1x8x16xf32>
    %77 = vector.shape_cast %76 : vector<1x8x16xf32> to vector<8x16xf32>
    %78 = vector.shape_cast %74 : vector<8x16xf32> to vector<1x8x16xf32>
    tpu.vector_store %arg14[%75, %c0_42, %c0_43], %78 {strides = array<i32>} : memref<8x8x16xf32, #tpu.memory_space<vmem>>, vector<1x8x16xf32>,
    %c1_i32 = arith.constant 1 : i32
    %79 = arith.addi %0, %c1_i32 : i32
    %80 = arith.index_cast %79 : i32 to index
    %81 = memref.load %arg3[%80] : memref<8xf32, #tpu.memory_space<smem>>
    %82 = arith.index_cast %c1_i32 : i32 to index
    %c0_44 = arith.constant 0 : index
    %c0_45 = arith.constant 0 : index
    %83 = vector.load %arg4[%82, %c0_44, %c0_45] : memref<8x8x4xf32, #tpu.memory_space<vmem>>, vector<1x8x4xf32>
    %84 = vector.shape_cast %83 : vector<1x8x4xf32> to vector<8x4xf32>
    %85 = arith.truncf %84 : vector<8x4xf32> to vector<8x4xbf16>
    %c0_46 = arith.constant 0 : index
    %c0_47 = arith.constant 0 : index
    %86 = vector.load %arg12[%c0_46, %c0_47] : memref<4x64xbf16, #tpu.memory_space<vmem>>, vector<4x64xbf16>
    %cst_48 = arith.constant dense<0.000000e+00> : vector<8x64xf32>
    %87 = tpu.matmul %85, %86, %cst_48 {dimension_numbers = #tpu.dot_dimension_numbers<[1], [0], [0], [1], [0, 0, 1, 1], [], []>} : vector<8x4xbf16>, vector<4x64xbf16>, vector<8x64xf32> -> vector<8x64xf32>
    %88 = arith.mulf %61, %87 : vector<8x64xf32>
    %89 = arith.truncf %88 : vector<8x64xf32> to vector<8x64xbf16>
    %c0_49 = arith.constant 0 : index
    %c0_50 = arith.constant 0 : index
    %90 = vector.load %arg13[%c0_49, %c0_50] : memref<64x16xbf16, #tpu.memory_space<vmem>>, vector<64x16xbf16>
    %cst_51 = arith.constant dense<0.000000e+00> : vector<8x16xf32>
    %91 = tpu.matmul %89, %90, %cst_51 {dimension_numbers = #tpu.dot_dimension_numbers<[1], [0], [0], [1], [0, 0, 1, 1], [], []>} : vector<8x64xbf16>, vector<64x16xbf16>, vector<8x16xf32> -> vector<8x16xf32>
    %cst_52 = arith.constant 2.000000e+00 : f32
    %92 = vector.broadcast %cst_52 : f32 to vector<8x16xf32>
    %93 = arith.mulf %92, %74 : vector<8x16xf32>
    %94 = arith.subf %93, %27 : vector<8x16xf32>
    %95 = vector.broadcast %81 : f32 to vector<8x16xf32>
    %96 = arith.mulf %60, %95 : vector<8x16xf32>
    %97 = arith.addf %94, %96 : vector<8x16xf32>
    %98 = arith.addf %97, %91 : vector<8x16xf32>
    %99 = arith.index_cast %79 : i32 to index
    %100 = memref.load %arg2[%99] : memref<8xf32, #tpu.memory_space<smem>>
    %c0_53 = arith.constant 0 : index
    %c0_54 = arith.constant 0 : index
    %101 = vector.load %arg5[%c0_53, %c0_54] : memref<1x64xf32, #tpu.memory_space<vmem>>, vector<1x64xf32>
    %102 = vector.broadcast %100 : f32 to vector<1x64xf32>
    %103 = arith.mulf %102, %101 : vector<1x64xf32>
    %104 = arith.truncf %98 : vector<8x16xf32> to vector<8x16xbf16>
    %c0_55 = arith.constant 0 : index
    %c0_56 = arith.constant 0 : index
    %105 = vector.load %arg6[%c0_55, %c0_56] : memref<16x64xbf16, #tpu.memory_space<vmem>>, vector<16x64xbf16>
    %cst_57 = arith.constant dense<0.000000e+00> : vector<8x64xf32>
    %106 = tpu.matmul %104, %105, %cst_57 {dimension_numbers = #tpu.dot_dimension_numbers<[1], [0], [0], [1], [0, 0, 1, 1], [], []>} : vector<8x16xbf16>, vector<16x64xbf16>, vector<8x64xf32> -> vector<8x64xf32>
    %107 = vector.broadcast %103 : vector<1x64xf32> to vector<8x64xf32>
    %108 = arith.addf %107, %106 : vector<8x64xf32>
    %c0_58 = arith.constant 0 : index
    %c0_59 = arith.constant 0 : index
    %109 = vector.load %arg7[%c0_58, %c0_59] : memref<1x64xf32, #tpu.memory_space<vmem>>, vector<1x64xf32>
    %110 = vector.broadcast %109 : vector<1x64xf32> to vector<8x64xf32>
    %111 = arith.addf %108, %110 : vector<8x64xf32>
    %cst_60 = arith.constant 0.000000e+00 : f32
    %112 = vector.broadcast %cst_60 : f32 to vector<8x64xf32>
    %113 = arith.maximumf %111, %112 : vector<8x64xf32>
    %114 = arith.truncf %113 : vector<8x64xf32> to vector<8x64xbf16>
    %c0_61 = arith.constant 0 : index
    %c0_62 = arith.constant 0 : index
    %115 = vector.load %arg8[%c0_61, %c0_62] : memref<64x64xbf16, #tpu.memory_space<vmem>>, vector<64x64xbf16>
    %cst_63 = arith.constant dense<0.000000e+00> : vector<8x64xf32>
    %116 = tpu.matmul %114, %115, %cst_63 {dimension_numbers = #tpu.dot_dimension_numbers<[1], [0], [0], [1], [0, 0, 1, 1], [], []>} : vector<8x64xbf16>, vector<64x64xbf16>, vector<8x64xf32> -> vector<8x64xf32>
    %c0_64 = arith.constant 0 : index
    %c0_65 = arith.constant 0 : index
    %117 = vector.load %arg9[%c0_64, %c0_65] : memref<1x64xf32, #tpu.memory_space<vmem>>, vector<1x64xf32>
    %118 = vector.broadcast %117 : vector<1x64xf32> to vector<8x64xf32>
    %119 = arith.addf %116, %118 : vector<8x64xf32>
    %cst_66 = arith.constant 0.000000e+00 : f32
    %120 = vector.broadcast %cst_66 : f32 to vector<8x64xf32>
    %121 = arith.maximumf %119, %120 : vector<8x64xf32>
    %122 = arith.truncf %121 : vector<8x64xf32> to vector<8x64xbf16>
    %c0_67 = arith.constant 0 : index
    %c0_68 = arith.constant 0 : index
    %123 = vector.load %arg10[%c0_67, %c0_68] : memref<64x80xbf16, #tpu.memory_space<vmem>>, vector<64x80xbf16>
    %cst_69 = arith.constant dense<0.000000e+00> : vector<8x80xf32>
    %124 = tpu.matmul %122, %123, %cst_69 {dimension_numbers = #tpu.dot_dimension_numbers<[1], [0], [0], [1], [0, 0, 1, 1], [], []>} : vector<8x64xbf16>, vector<64x80xbf16>, vector<8x80xf32> -> vector<8x80xf32>
    %c0_70 = arith.constant 0 : index
    %c0_71 = arith.constant 0 : index
    %125 = vector.load %arg11[%c0_70, %c0_71] : memref<1x80xf32, #tpu.memory_space<vmem>>, vector<1x80xf32>
    %126 = vector.broadcast %125 : vector<1x80xf32> to vector<8x80xf32>
    %127 = arith.addf %124, %126 : vector<8x80xf32>
    %128 = math.tanh %127 : vector<8x80xf32>
    %cst_72 = arith.constant 1.000000e+00 : f32
    %129 = vector.broadcast %cst_72 : f32 to vector<8x80xf32>
    %130 = arith.mulf %129, %128 : vector<8x80xf32>
    %131 = vector.extract_strided_slice %130 {offsets = [0, 0], sizes = [8, 16], strides = [1, 1]} : vector<8x80xf32> to vector<8x16xf32>
    %132 = vector.extract_strided_slice %130 {offsets = [0, 16], sizes = [8, 64], strides = [1, 1]} : vector<8x80xf32> to vector<8x64xf32>
    %133 = arith.mulf %132, %87 : vector<8x64xf32>
    %134 = arith.truncf %133 : vector<8x64xf32> to vector<8x64xbf16>
    %c0_73 = arith.constant 0 : index
    %c0_74 = arith.constant 0 : index
    %135 = vector.load %arg13[%c0_73, %c0_74] : memref<64x16xbf16, #tpu.memory_space<vmem>>, vector<64x16xbf16>
    %cst_75 = arith.constant dense<0.000000e+00> : vector<8x16xf32>
    %136 = tpu.matmul %134, %135, %cst_75 {dimension_numbers = #tpu.dot_dimension_numbers<[1], [0], [0], [1], [0, 0, 1, 1], [], []>} : vector<8x64xbf16>, vector<64x16xbf16>, vector<8x16xf32> -> vector<8x16xf32>
    %cst_76 = arith.constant 5.000000e-01 : f32
    %137 = arith.mulf %cst_76, %81 : f32
    %138 = arith.addf %60, %131 : vector<8x16xf32>
    %139 = vector.broadcast %137 : f32 to vector<8x16xf32>
    %140 = arith.mulf %139, %138 : vector<8x16xf32>
    %141 = arith.addf %74, %140 : vector<8x16xf32>
    %142 = arith.addf %91, %136 : vector<8x16xf32>
    %cst_77 = arith.constant 5.000000e-01 : f32
    %143 = vector.broadcast %cst_77 : f32 to vector<8x16xf32>
    %144 = arith.mulf %143, %142 : vector<8x16xf32>
    %145 = arith.addf %141, %144 : vector<8x16xf32>
    %146 = arith.index_cast %c1_i32 : i32 to index
    %c0_78 = arith.constant 0 : index
    %c0_79 = arith.constant 0 : index
    %147 = vector.load %arg14[%146, %c0_78, %c0_79] : memref<8x8x16xf32, #tpu.memory_space<vmem>>, vector<1x8x16xf32>
    %148 = vector.shape_cast %147 : vector<1x8x16xf32> to vector<8x16xf32>
    %149 = vector.shape_cast %145 : vector<8x16xf32> to vector<1x8x16xf32>
    tpu.vector_store %arg14[%146, %c0_78, %c0_79], %149 {strides = array<i32>} : memref<8x8x16xf32, #tpu.memory_space<vmem>>, vector<1x8x16xf32>,
    %c2_i32 = arith.constant 2 : i32
    %150 = arith.addi %0, %c2_i32 : i32
    %151 = arith.index_cast %150 : i32 to index
    %152 = memref.load %arg3[%151] : memref<8xf32, #tpu.memory_space<smem>>
    %153 = arith.index_cast %c2_i32 : i32 to index
    %c0_80 = arith.constant 0 : index
    %c0_81 = arith.constant 0 : index
    %154 = vector.load %arg4[%153, %c0_80, %c0_81] : memref<8x8x4xf32, #tpu.memory_space<vmem>>, vector<1x8x4xf32>
    %155 = vector.shape_cast %154 : vector<1x8x4xf32> to vector<8x4xf32>
    %156 = arith.truncf %155 : vector<8x4xf32> to vector<8x4xbf16>
    %c0_82 = arith.constant 0 : index
    %c0_83 = arith.constant 0 : index
    %157 = vector.load %arg12[%c0_82, %c0_83] : memref<4x64xbf16, #tpu.memory_space<vmem>>, vector<4x64xbf16>
    %cst_84 = arith.constant dense<0.000000e+00> : vector<8x64xf32>
    %158 = tpu.matmul %156, %157, %cst_84 {dimension_numbers = #tpu.dot_dimension_numbers<[1], [0], [0], [1], [0, 0, 1, 1], [], []>} : vector<8x4xbf16>, vector<4x64xbf16>, vector<8x64xf32> -> vector<8x64xf32>
    %159 = arith.mulf %132, %158 : vector<8x64xf32>
    %160 = arith.truncf %159 : vector<8x64xf32> to vector<8x64xbf16>
    %c0_85 = arith.constant 0 : index
    %c0_86 = arith.constant 0 : index
    %161 = vector.load %arg13[%c0_85, %c0_86] : memref<64x16xbf16, #tpu.memory_space<vmem>>, vector<64x16xbf16>
    %cst_87 = arith.constant dense<0.000000e+00> : vector<8x16xf32>
    %162 = tpu.matmul %160, %161, %cst_87 {dimension_numbers = #tpu.dot_dimension_numbers<[1], [0], [0], [1], [0, 0, 1, 1], [], []>} : vector<8x64xbf16>, vector<64x16xbf16>, vector<8x16xf32> -> vector<8x16xf32>
    %cst_88 = arith.constant 2.000000e+00 : f32
    %163 = vector.broadcast %cst_88 : f32 to vector<8x16xf32>
    %164 = arith.mulf %163, %145 : vector<8x16xf32>
    %165 = arith.subf %164, %98 : vector<8x16xf32>
    %166 = vector.broadcast %152 : f32 to vector<8x16xf32>
    %167 = arith.mulf %131, %166 : vector<8x16xf32>
    %168 = arith.addf %165, %167 : vector<8x16xf32>
    %169 = arith.addf %168, %162 : vector<8x16xf32>
    %170 = arith.index_cast %150 : i32 to index
    %171 = memref.load %arg2[%170] : memref<8xf32, #tpu.memory_space<smem>>
    %c0_89 = arith.constant 0 : index
    %c0_90 = arith.constant 0 : index
    %172 = vector.load %arg5[%c0_89, %c0_90] : memref<1x64xf32, #tpu.memory_space<vmem>>, vector<1x64xf32>
    %173 = vector.broadcast %171 : f32 to vector<1x64xf32>
    %174 = arith.mulf %173, %172 : vector<1x64xf32>
    %175 = arith.truncf %169 : vector<8x16xf32> to vector<8x16xbf16>
    %c0_91 = arith.constant 0 : index
    %c0_92 = arith.constant 0 : index
    %176 = vector.load %arg6[%c0_91, %c0_92] : memref<16x64xbf16, #tpu.memory_space<vmem>>, vector<16x64xbf16>
    %cst_93 = arith.constant dense<0.000000e+00> : vector<8x64xf32>
    %177 = tpu.matmul %175, %176, %cst_93 {dimension_numbers = #tpu.dot_dimension_numbers<[1], [0], [0], [1], [0, 0, 1, 1], [], []>} : vector<8x16xbf16>, vector<16x64xbf16>, vector<8x64xf32> -> vector<8x64xf32>
    %178 = vector.broadcast %174 : vector<1x64xf32> to vector<8x64xf32>
    %179 = arith.addf %178, %177 : vector<8x64xf32>
    %c0_94 = arith.constant 0 : index
    %c0_95 = arith.constant 0 : index
    %180 = vector.load %arg7[%c0_94, %c0_95] : memref<1x64xf32, #tpu.memory_space<vmem>>, vector<1x64xf32>
    %181 = vector.broadcast %180 : vector<1x64xf32> to vector<8x64xf32>
    %182 = arith.addf %179, %181 : vector<8x64xf32>
    %cst_96 = arith.constant 0.000000e+00 : f32
    %183 = vector.broadcast %cst_96 : f32 to vector<8x64xf32>
    %184 = arith.maximumf %182, %183 : vector<8x64xf32>
    %185 = arith.truncf %184 : vector<8x64xf32> to vector<8x64xbf16>
    %c0_97 = arith.constant 0 : index
    %c0_98 = arith.constant 0 : index
    %186 = vector.load %arg8[%c0_97, %c0_98] : memref<64x64xbf16, #tpu.memory_space<vmem>>, vector<64x64xbf16>
    %cst_99 = arith.constant dense<0.000000e+00> : vector<8x64xf32>
    %187 = tpu.matmul %185, %186, %cst_99 {dimension_numbers = #tpu.dot_dimension_numbers<[1], [0], [0], [1], [0, 0, 1, 1], [], []>} : vector<8x64xbf16>, vector<64x64xbf16>, vector<8x64xf32> -> vector<8x64xf32>
    %c0_100 = arith.constant 0 : index
    %c0_101 = arith.constant 0 : index
    %188 = vector.load %arg9[%c0_100, %c0_101] : memref<1x64xf32, #tpu.memory_space<vmem>>, vector<1x64xf32>
    %189 = vector.broadcast %188 : vector<1x64xf32> to vector<8x64xf32>
    %190 = arith.addf %187, %189 : vector<8x64xf32>
    %cst_102 = arith.constant 0.000000e+00 : f32
    %191 = vector.broadcast %cst_102 : f32 to vector<8x64xf32>
    %192 = arith.maximumf %190, %191 : vector<8x64xf32>
    %193 = arith.truncf %192 : vector<8x64xf32> to vector<8x64xbf16>
    %c0_103 = arith.constant 0 : index
    %c0_104 = arith.constant 0 : index
    %194 = vector.load %arg10[%c0_103, %c0_104] : memref<64x80xbf16, #tpu.memory_space<vmem>>, vector<64x80xbf16>
    %cst_105 = arith.constant dense<0.000000e+00> : vector<8x80xf32>
    %195 = tpu.matmul %193, %194, %cst_105 {dimension_numbers = #tpu.dot_dimension_numbers<[1], [0], [0], [1], [0, 0, 1, 1], [], []>} : vector<8x64xbf16>, vector<64x80xbf16>, vector<8x80xf32> -> vector<8x80xf32>
    %c0_106 = arith.constant 0 : index
    %c0_107 = arith.constant 0 : index
    %196 = vector.load %arg11[%c0_106, %c0_107] : memref<1x80xf32, #tpu.memory_space<vmem>>, vector<1x80xf32>
    %197 = vector.broadcast %196 : vector<1x80xf32> to vector<8x80xf32>
    %198 = arith.addf %195, %197 : vector<8x80xf32>
    %199 = math.tanh %198 : vector<8x80xf32>
    %cst_108 = arith.constant 1.000000e+00 : f32
    %200 = vector.broadcast %cst_108 : f32 to vector<8x80xf32>
    %201 = arith.mulf %200, %199 : vector<8x80xf32>
    %202 = vector.extract_strided_slice %201 {offsets = [0, 0], sizes = [8, 16], strides = [1, 1]} : vector<8x80xf32> to vector<8x16xf32>
    %203 = vector.extract_strided_slice %201 {offsets = [0, 16], sizes = [8, 64], strides = [1, 1]} : vector<8x80xf32> to vector<8x64xf32>
    %204 = arith.mulf %203, %158 : vector<8x64xf32>
    %205 = arith.truncf %204 : vector<8x64xf32> to vector<8x64xbf16>
    %c0_109 = arith.constant 0 : index
    %c0_110 = arith.constant 0 : index
    %206 = vector.load %arg13[%c0_109, %c0_110] : memref<64x16xbf16, #tpu.memory_space<vmem>>, vector<64x16xbf16>
    %cst_111 = arith.constant dense<0.000000e+00> : vector<8x16xf32>
    %207 = tpu.matmul %205, %206, %cst_111 {dimension_numbers = #tpu.dot_dimension_numbers<[1], [0], [0], [1], [0, 0, 1, 1], [], []>} : vector<8x64xbf16>, vector<64x16xbf16>, vector<8x16xf32> -> vector<8x16xf32>
    %cst_112 = arith.constant 5.000000e-01 : f32
    %208 = arith.mulf %cst_112, %152 : f32
    %209 = arith.addf %131, %202 : vector<8x16xf32>
    %210 = vector.broadcast %208 : f32 to vector<8x16xf32>
    %211 = arith.mulf %210, %209 : vector<8x16xf32>
    %212 = arith.addf %145, %211 : vector<8x16xf32>
    %213 = arith.addf %162, %207 : vector<8x16xf32>
    %cst_113 = arith.constant 5.000000e-01 : f32
    %214 = vector.broadcast %cst_113 : f32 to vector<8x16xf32>
    %215 = arith.mulf %214, %213 : vector<8x16xf32>
    %216 = arith.addf %212, %215 : vector<8x16xf32>
    %217 = arith.index_cast %c2_i32 : i32 to index
    %c0_114 = arith.constant 0 : index
    %c0_115 = arith.constant 0 : index
    %218 = vector.load %arg14[%217, %c0_114, %c0_115] : memref<8x8x16xf32, #tpu.memory_space<vmem>>, vector<1x8x16xf32>
    %219 = vector.shape_cast %218 : vector<1x8x16xf32> to vector<8x16xf32>
    %220 = vector.shape_cast %216 : vector<8x16xf32> to vector<1x8x16xf32>
    tpu.vector_store %arg14[%217, %c0_114, %c0_115], %220 {strides = array<i32>} : memref<8x8x16xf32, #tpu.memory_space<vmem>>, vector<1x8x16xf32>,
    %c3_i32 = arith.constant 3 : i32
    %221 = arith.addi %0, %c3_i32 : i32
    %222 = arith.index_cast %221 : i32 to index
    %223 = memref.load %arg3[%222] : memref<8xf32, #tpu.memory_space<smem>>
    %224 = arith.index_cast %c3_i32 : i32 to index
    %c0_116 = arith.constant 0 : index
    %c0_117 = arith.constant 0 : index
    %225 = vector.load %arg4[%224, %c0_116, %c0_117] : memref<8x8x4xf32, #tpu.memory_space<vmem>>, vector<1x8x4xf32>
    %226 = vector.shape_cast %225 : vector<1x8x4xf32> to vector<8x4xf32>
    %227 = arith.truncf %226 : vector<8x4xf32> to vector<8x4xbf16>
    %c0_118 = arith.constant 0 : index
    %c0_119 = arith.constant 0 : index
    %228 = vector.load %arg12[%c0_118, %c0_119] : memref<4x64xbf16, #tpu.memory_space<vmem>>, vector<4x64xbf16>
    %cst_120 = arith.constant dense<0.000000e+00> : vector<8x64xf32>
    %229 = tpu.matmul %227, %228, %cst_120 {dimension_numbers = #tpu.dot_dimension_numbers<[1], [0], [0], [1], [0, 0, 1, 1], [], []>} : vector<8x4xbf16>, vector<4x64xbf16>, vector<8x64xf32> -> vector<8x64xf32>
    %230 = arith.mulf %203, %229 : vector<8x64xf32>
    %231 = arith.truncf %230 : vector<8x64xf32> to vector<8x64xbf16>
    %c0_121 = arith.constant 0 : index
    %c0_122 = arith.constant 0 : index
    %232 = vector.load %arg13[%c0_121, %c0_122] : memref<64x16xbf16, #tpu.memory_space<vmem>>, vector<64x16xbf16>
    %cst_123 = arith.constant dense<0.000000e+00> : vector<8x16xf32>
    %233 = tpu.matmul %231, %232, %cst_123 {dimension_numbers = #tpu.dot_dimension_numbers<[1], [0], [0], [1], [0, 0, 1, 1], [], []>} : vector<8x64xbf16>, vector<64x16xbf16>, vector<8x16xf32> -> vector<8x16xf32>
    %cst_124 = arith.constant 2.000000e+00 : f32
    %234 = vector.broadcast %cst_124 : f32 to vector<8x16xf32>
    %235 = arith.mulf %234, %216 : vector<8x16xf32>
    %236 = arith.subf %235, %169 : vector<8x16xf32>
    %237 = vector.broadcast %223 : f32 to vector<8x16xf32>
    %238 = arith.mulf %202, %237 : vector<8x16xf32>
    %239 = arith.addf %236, %238 : vector<8x16xf32>
    %240 = arith.addf %239, %233 : vector<8x16xf32>
    %241 = arith.index_cast %221 : i32 to index
    %242 = memref.load %arg2[%241] : memref<8xf32, #tpu.memory_space<smem>>
    %c0_125 = arith.constant 0 : index
    %c0_126 = arith.constant 0 : index
    %243 = vector.load %arg5[%c0_125, %c0_126] : memref<1x64xf32, #tpu.memory_space<vmem>>, vector<1x64xf32>
    %244 = vector.broadcast %242 : f32 to vector<1x64xf32>
    %245 = arith.mulf %244, %243 : vector<1x64xf32>
    %246 = arith.truncf %240 : vector<8x16xf32> to vector<8x16xbf16>
    %c0_127 = arith.constant 0 : index
    %c0_128 = arith.constant 0 : index
    %247 = vector.load %arg6[%c0_127, %c0_128] : memref<16x64xbf16, #tpu.memory_space<vmem>>, vector<16x64xbf16>
    %cst_129 = arith.constant dense<0.000000e+00> : vector<8x64xf32>
    %248 = tpu.matmul %246, %247, %cst_129 {dimension_numbers = #tpu.dot_dimension_numbers<[1], [0], [0], [1], [0, 0, 1, 1], [], []>} : vector<8x16xbf16>, vector<16x64xbf16>, vector<8x64xf32> -> vector<8x64xf32>
    %249 = vector.broadcast %245 : vector<1x64xf32> to vector<8x64xf32>
    %250 = arith.addf %249, %248 : vector<8x64xf32>
    %c0_130 = arith.constant 0 : index
    %c0_131 = arith.constant 0 : index
    %251 = vector.load %arg7[%c0_130, %c0_131] : memref<1x64xf32, #tpu.memory_space<vmem>>, vector<1x64xf32>
    %252 = vector.broadcast %251 : vector<1x64xf32> to vector<8x64xf32>
    %253 = arith.addf %250, %252 : vector<8x64xf32>
    %cst_132 = arith.constant 0.000000e+00 : f32
    %254 = vector.broadcast %cst_132 : f32 to vector<8x64xf32>
    %255 = arith.maximumf %253, %254 : vector<8x64xf32>
    %256 = arith.truncf %255 : vector<8x64xf32> to vector<8x64xbf16>
    %c0_133 = arith.constant 0 : index
    %c0_134 = arith.constant 0 : index
    %257 = vector.load %arg8[%c0_133, %c0_134] : memref<64x64xbf16, #tpu.memory_space<vmem>>, vector<64x64xbf16>
    %cst_135 = arith.constant dense<0.000000e+00> : vector<8x64xf32>
    %258 = tpu.matmul %256, %257, %cst_135 {dimension_numbers = #tpu.dot_dimension_numbers<[1], [0], [0], [1], [0, 0, 1, 1], [], []>} : vector<8x64xbf16>, vector<64x64xbf16>, vector<8x64xf32> -> vector<8x64xf32>
    %c0_136 = arith.constant 0 : index
    %c0_137 = arith.constant 0 : index
    %259 = vector.load %arg9[%c0_136, %c0_137] : memref<1x64xf32, #tpu.memory_space<vmem>>, vector<1x64xf32>
    %260 = vector.broadcast %259 : vector<1x64xf32> to vector<8x64xf32>
    %261 = arith.addf %258, %260 : vector<8x64xf32>
    %cst_138 = arith.constant 0.000000e+00 : f32
    %262 = vector.broadcast %cst_138 : f32 to vector<8x64xf32>
    %263 = arith.maximumf %261, %262 : vector<8x64xf32>
    %264 = arith.truncf %263 : vector<8x64xf32> to vector<8x64xbf16>
    %c0_139 = arith.constant 0 : index
    %c0_140 = arith.constant 0 : index
    %265 = vector.load %arg10[%c0_139, %c0_140] : memref<64x80xbf16, #tpu.memory_space<vmem>>, vector<64x80xbf16>
    %cst_141 = arith.constant dense<0.000000e+00> : vector<8x80xf32>
    %266 = tpu.matmul %264, %265, %cst_141 {dimension_numbers = #tpu.dot_dimension_numbers<[1], [0], [0], [1], [0, 0, 1, 1], [], []>} : vector<8x64xbf16>, vector<64x80xbf16>, vector<8x80xf32> -> vector<8x80xf32>
    %c0_142 = arith.constant 0 : index
    %c0_143 = arith.constant 0 : index
    %267 = vector.load %arg11[%c0_142, %c0_143] : memref<1x80xf32, #tpu.memory_space<vmem>>, vector<1x80xf32>
    %268 = vector.broadcast %267 : vector<1x80xf32> to vector<8x80xf32>
    %269 = arith.addf %266, %268 : vector<8x80xf32>
    %270 = math.tanh %269 : vector<8x80xf32>
    %cst_144 = arith.constant 1.000000e+00 : f32
    %271 = vector.broadcast %cst_144 : f32 to vector<8x80xf32>
    %272 = arith.mulf %271, %270 : vector<8x80xf32>
    %273 = vector.extract_strided_slice %272 {offsets = [0, 0], sizes = [8, 16], strides = [1, 1]} : vector<8x80xf32> to vector<8x16xf32>
    %274 = vector.extract_strided_slice %272 {offsets = [0, 16], sizes = [8, 64], strides = [1, 1]} : vector<8x80xf32> to vector<8x64xf32>
    %275 = arith.mulf %274, %229 : vector<8x64xf32>
    %276 = arith.truncf %275 : vector<8x64xf32> to vector<8x64xbf16>
    %c0_145 = arith.constant 0 : index
    %c0_146 = arith.constant 0 : index
    %277 = vector.load %arg13[%c0_145, %c0_146] : memref<64x16xbf16, #tpu.memory_space<vmem>>, vector<64x16xbf16>
    %cst_147 = arith.constant dense<0.000000e+00> : vector<8x16xf32>
    %278 = tpu.matmul %276, %277, %cst_147 {dimension_numbers = #tpu.dot_dimension_numbers<[1], [0], [0], [1], [0, 0, 1, 1], [], []>} : vector<8x64xbf16>, vector<64x16xbf16>, vector<8x16xf32> -> vector<8x16xf32>
    %cst_148 = arith.constant 5.000000e-01 : f32
    %279 = arith.mulf %cst_148, %223 : f32
    %280 = arith.addf %202, %273 : vector<8x16xf32>
    %281 = vector.broadcast %279 : f32 to vector<8x16xf32>
    %282 = arith.mulf %281, %280 : vector<8x16xf32>
    %283 = arith.addf %216, %282 : vector<8x16xf32>
    %284 = arith.addf %233, %278 : vector<8x16xf32>
    %cst_149 = arith.constant 5.000000e-01 : f32
    %285 = vector.broadcast %cst_149 : f32 to vector<8x16xf32>
    %286 = arith.mulf %285, %284 : vector<8x16xf32>
    %287 = arith.addf %283, %286 : vector<8x16xf32>
    %288 = arith.index_cast %c3_i32 : i32 to index
    %c0_150 = arith.constant 0 : index
    %c0_151 = arith.constant 0 : index
    %289 = vector.load %arg14[%288, %c0_150, %c0_151] : memref<8x8x16xf32, #tpu.memory_space<vmem>>, vector<1x8x16xf32>
    %290 = vector.shape_cast %289 : vector<1x8x16xf32> to vector<8x16xf32>
    %291 = vector.shape_cast %287 : vector<8x16xf32> to vector<1x8x16xf32>
    tpu.vector_store %arg14[%288, %c0_150, %c0_151], %291 {strides = array<i32>} : memref<8x8x16xf32, #tpu.memory_space<vmem>>, vector<1x8x16xf32>,
    %c4_i32 = arith.constant 4 : i32
    %292 = arith.addi %0, %c4_i32 : i32
    %293 = arith.index_cast %292 : i32 to index
    %294 = memref.load %arg3[%293] : memref<8xf32, #tpu.memory_space<smem>>
    %295 = arith.index_cast %c4_i32 : i32 to index
    %c0_152 = arith.constant 0 : index
    %c0_153 = arith.constant 0 : index
    %296 = vector.load %arg4[%295, %c0_152, %c0_153] : memref<8x8x4xf32, #tpu.memory_space<vmem>>, vector<1x8x4xf32>
    %297 = vector.shape_cast %296 : vector<1x8x4xf32> to vector<8x4xf32>
    %298 = arith.truncf %297 : vector<8x4xf32> to vector<8x4xbf16>
    %c0_154 = arith.constant 0 : index
    %c0_155 = arith.constant 0 : index
    %299 = vector.load %arg12[%c0_154, %c0_155] : memref<4x64xbf16, #tpu.memory_space<vmem>>, vector<4x64xbf16>
    %cst_156 = arith.constant dense<0.000000e+00> : vector<8x64xf32>
    %300 = tpu.matmul %298, %299, %cst_156 {dimension_numbers = #tpu.dot_dimension_numbers<[1], [0], [0], [1], [0, 0, 1, 1], [], []>} : vector<8x4xbf16>, vector<4x64xbf16>, vector<8x64xf32> -> vector<8x64xf32>
    %301 = arith.mulf %274, %300 : vector<8x64xf32>
    %302 = arith.truncf %301 : vector<8x64xf32> to vector<8x64xbf16>
    %c0_157 = arith.constant 0 : index
    %c0_158 = arith.constant 0 : index
    %303 = vector.load %arg13[%c0_157, %c0_158] : memref<64x16xbf16, #tpu.memory_space<vmem>>, vector<64x16xbf16>
    %cst_159 = arith.constant dense<0.000000e+00> : vector<8x16xf32>
    %304 = tpu.matmul %302, %303, %cst_159 {dimension_numbers = #tpu.dot_dimension_numbers<[1], [0], [0], [1], [0, 0, 1, 1], [], []>} : vector<8x64xbf16>, vector<64x16xbf16>, vector<8x16xf32> -> vector<8x16xf32>
    %cst_160 = arith.constant 2.000000e+00 : f32
    %305 = vector.broadcast %cst_160 : f32 to vector<8x16xf32>
    %306 = arith.mulf %305, %287 : vector<8x16xf32>
    %307 = arith.subf %306, %240 : vector<8x16xf32>
    %308 = vector.broadcast %294 : f32 to vector<8x16xf32>
    %309 = arith.mulf %273, %308 : vector<8x16xf32>
    %310 = arith.addf %307, %309 : vector<8x16xf32>
    %311 = arith.addf %310, %304 : vector<8x16xf32>
    %312 = arith.index_cast %292 : i32 to index
    %313 = memref.load %arg2[%312] : memref<8xf32, #tpu.memory_space<smem>>
    %c0_161 = arith.constant 0 : index
    %c0_162 = arith.constant 0 : index
    %314 = vector.load %arg5[%c0_161, %c0_162] : memref<1x64xf32, #tpu.memory_space<vmem>>, vector<1x64xf32>
    %315 = vector.broadcast %313 : f32 to vector<1x64xf32>
    %316 = arith.mulf %315, %314 : vector<1x64xf32>
    %317 = arith.truncf %311 : vector<8x16xf32> to vector<8x16xbf16>
    %c0_163 = arith.constant 0 : index
    %c0_164 = arith.constant 0 : index
    %318 = vector.load %arg6[%c0_163, %c0_164] : memref<16x64xbf16, #tpu.memory_space<vmem>>, vector<16x64xbf16>
    %cst_165 = arith.constant dense<0.000000e+00> : vector<8x64xf32>
    %319 = tpu.matmul %317, %318, %cst_165 {dimension_numbers = #tpu.dot_dimension_numbers<[1], [0], [0], [1], [0, 0, 1, 1], [], []>} : vector<8x16xbf16>, vector<16x64xbf16>, vector<8x64xf32> -> vector<8x64xf32>
    %320 = vector.broadcast %316 : vector<1x64xf32> to vector<8x64xf32>
    %321 = arith.addf %320, %319 : vector<8x64xf32>
    %c0_166 = arith.constant 0 : index
    %c0_167 = arith.constant 0 : index
    %322 = vector.load %arg7[%c0_166, %c0_167] : memref<1x64xf32, #tpu.memory_space<vmem>>, vector<1x64xf32>
    %323 = vector.broadcast %322 : vector<1x64xf32> to vector<8x64xf32>
    %324 = arith.addf %321, %323 : vector<8x64xf32>
    %cst_168 = arith.constant 0.000000e+00 : f32
    %325 = vector.broadcast %cst_168 : f32 to vector<8x64xf32>
    %326 = arith.maximumf %324, %325 : vector<8x64xf32>
    %327 = arith.truncf %326 : vector<8x64xf32> to vector<8x64xbf16>
    %c0_169 = arith.constant 0 : index
    %c0_170 = arith.constant 0 : index
    %328 = vector.load %arg8[%c0_169, %c0_170] : memref<64x64xbf16, #tpu.memory_space<vmem>>, vector<64x64xbf16>
    %cst_171 = arith.constant dense<0.000000e+00> : vector<8x64xf32>
    %329 = tpu.matmul %327, %328, %cst_171 {dimension_numbers = #tpu.dot_dimension_numbers<[1], [0], [0], [1], [0, 0, 1, 1], [], []>} : vector<8x64xbf16>, vector<64x64xbf16>, vector<8x64xf32> -> vector<8x64xf32>
    %c0_172 = arith.constant 0 : index
    %c0_173 = arith.constant 0 : index
    %330 = vector.load %arg9[%c0_172, %c0_173] : memref<1x64xf32, #tpu.memory_space<vmem>>, vector<1x64xf32>
    %331 = vector.broadcast %330 : vector<1x64xf32> to vector<8x64xf32>
    %332 = arith.addf %329, %331 : vector<8x64xf32>
    %cst_174 = arith.constant 0.000000e+00 : f32
    %333 = vector.broadcast %cst_174 : f32 to vector<8x64xf32>
    %334 = arith.maximumf %332, %333 : vector<8x64xf32>
    %335 = arith.truncf %334 : vector<8x64xf32> to vector<8x64xbf16>
    %c0_175 = arith.constant 0 : index
    %c0_176 = arith.constant 0 : index
    %336 = vector.load %arg10[%c0_175, %c0_176] : memref<64x80xbf16, #tpu.memory_space<vmem>>, vector<64x80xbf16>
    %cst_177 = arith.constant dense<0.000000e+00> : vector<8x80xf32>
    %337 = tpu.matmul %335, %336, %cst_177 {dimension_numbers = #tpu.dot_dimension_numbers<[1], [0], [0], [1], [0, 0, 1, 1], [], []>} : vector<8x64xbf16>, vector<64x80xbf16>, vector<8x80xf32> -> vector<8x80xf32>
    %c0_178 = arith.constant 0 : index
    %c0_179 = arith.constant 0 : index
    %338 = vector.load %arg11[%c0_178, %c0_179] : memref<1x80xf32, #tpu.memory_space<vmem>>, vector<1x80xf32>
    %339 = vector.broadcast %338 : vector<1x80xf32> to vector<8x80xf32>
    %340 = arith.addf %337, %339 : vector<8x80xf32>
    %341 = math.tanh %340 : vector<8x80xf32>
    %cst_180 = arith.constant 1.000000e+00 : f32
    %342 = vector.broadcast %cst_180 : f32 to vector<8x80xf32>
    %343 = arith.mulf %342, %341 : vector<8x80xf32>
    %344 = vector.extract_strided_slice %343 {offsets = [0, 0], sizes = [8, 16], strides = [1, 1]} : vector<8x80xf32> to vector<8x16xf32>
    %345 = vector.extract_strided_slice %343 {offsets = [0, 16], sizes = [8, 64], strides = [1, 1]} : vector<8x80xf32> to vector<8x64xf32>
    %346 = arith.mulf %345, %300 : vector<8x64xf32>
    %347 = arith.truncf %346 : vector<8x64xf32> to vector<8x64xbf16>
    %c0_181 = arith.constant 0 : index
    %c0_182 = arith.constant 0 : index
    %348 = vector.load %arg13[%c0_181, %c0_182] : memref<64x16xbf16, #tpu.memory_space<vmem>>, vector<64x16xbf16>
    %cst_183 = arith.constant dense<0.000000e+00> : vector<8x16xf32>
    %349 = tpu.matmul %347, %348, %cst_183 {dimension_numbers = #tpu.dot_dimension_numbers<[1], [0], [0], [1], [0, 0, 1, 1], [], []>} : vector<8x64xbf16>, vector<64x16xbf16>, vector<8x16xf32> -> vector<8x16xf32>
    %cst_184 = arith.constant 5.000000e-01 : f32
    %350 = arith.mulf %cst_184, %294 : f32
    %351 = arith.addf %273, %344 : vector<8x16xf32>
    %352 = vector.broadcast %350 : f32 to vector<8x16xf32>
    %353 = arith.mulf %352, %351 : vector<8x16xf32>
    %354 = arith.addf %287, %353 : vector<8x16xf32>
    %355 = arith.addf %304, %349 : vector<8x16xf32>
    %cst_185 = arith.constant 5.000000e-01 : f32
    %356 = vector.broadcast %cst_185 : f32 to vector<8x16xf32>
    %357 = arith.mulf %356, %355 : vector<8x16xf32>
    %358 = arith.addf %354, %357 : vector<8x16xf32>
    %359 = arith.index_cast %c4_i32 : i32 to index
    %c0_186 = arith.constant 0 : index
    %c0_187 = arith.constant 0 : index
    %360 = vector.load %arg14[%359, %c0_186, %c0_187] : memref<8x8x16xf32, #tpu.memory_space<vmem>>, vector<1x8x16xf32>
    %361 = vector.shape_cast %360 : vector<1x8x16xf32> to vector<8x16xf32>
    %362 = vector.shape_cast %358 : vector<8x16xf32> to vector<1x8x16xf32>
    tpu.vector_store %arg14[%359, %c0_186, %c0_187], %362 {strides = array<i32>} : memref<8x8x16xf32, #tpu.memory_space<vmem>>, vector<1x8x16xf32>,
    %c5_i32 = arith.constant 5 : i32
    %363 = arith.addi %0, %c5_i32 : i32
    %364 = arith.index_cast %363 : i32 to index
    %365 = memref.load %arg3[%364] : memref<8xf32, #tpu.memory_space<smem>>
    %366 = arith.index_cast %c5_i32 : i32 to index
    %c0_188 = arith.constant 0 : index
    %c0_189 = arith.constant 0 : index
    %367 = vector.load %arg4[%366, %c0_188, %c0_189] : memref<8x8x4xf32, #tpu.memory_space<vmem>>, vector<1x8x4xf32>
    %368 = vector.shape_cast %367 : vector<1x8x4xf32> to vector<8x4xf32>
    %369 = arith.truncf %368 : vector<8x4xf32> to vector<8x4xbf16>
    %c0_190 = arith.constant 0 : index
    %c0_191 = arith.constant 0 : index
    %370 = vector.load %arg12[%c0_190, %c0_191] : memref<4x64xbf16, #tpu.memory_space<vmem>>, vector<4x64xbf16>
    %cst_192 = arith.constant dense<0.000000e+00> : vector<8x64xf32>
    %371 = tpu.matmul %369, %370, %cst_192 {dimension_numbers = #tpu.dot_dimension_numbers<[1], [0], [0], [1], [0, 0, 1, 1], [], []>} : vector<8x4xbf16>, vector<4x64xbf16>, vector<8x64xf32> -> vector<8x64xf32>
    %372 = arith.mulf %345, %371 : vector<8x64xf32>
    %373 = arith.truncf %372 : vector<8x64xf32> to vector<8x64xbf16>
    %c0_193 = arith.constant 0 : index
    %c0_194 = arith.constant 0 : index
    %374 = vector.load %arg13[%c0_193, %c0_194] : memref<64x16xbf16, #tpu.memory_space<vmem>>, vector<64x16xbf16>
    %cst_195 = arith.constant dense<0.000000e+00> : vector<8x16xf32>
    %375 = tpu.matmul %373, %374, %cst_195 {dimension_numbers = #tpu.dot_dimension_numbers<[1], [0], [0], [1], [0, 0, 1, 1], [], []>} : vector<8x64xbf16>, vector<64x16xbf16>, vector<8x16xf32> -> vector<8x16xf32>
    %cst_196 = arith.constant 2.000000e+00 : f32
    %376 = vector.broadcast %cst_196 : f32 to vector<8x16xf32>
    %377 = arith.mulf %376, %358 : vector<8x16xf32>
    %378 = arith.subf %377, %311 : vector<8x16xf32>
    %379 = vector.broadcast %365 : f32 to vector<8x16xf32>
    %380 = arith.mulf %344, %379 : vector<8x16xf32>
    %381 = arith.addf %378, %380 : vector<8x16xf32>
    %382 = arith.addf %381, %375 : vector<8x16xf32>
    %383 = arith.index_cast %363 : i32 to index
    %384 = memref.load %arg2[%383] : memref<8xf32, #tpu.memory_space<smem>>
    %c0_197 = arith.constant 0 : index
    %c0_198 = arith.constant 0 : index
    %385 = vector.load %arg5[%c0_197, %c0_198] : memref<1x64xf32, #tpu.memory_space<vmem>>, vector<1x64xf32>
    %386 = vector.broadcast %384 : f32 to vector<1x64xf32>
    %387 = arith.mulf %386, %385 : vector<1x64xf32>
    %388 = arith.truncf %382 : vector<8x16xf32> to vector<8x16xbf16>
    %c0_199 = arith.constant 0 : index
    %c0_200 = arith.constant 0 : index
    %389 = vector.load %arg6[%c0_199, %c0_200] : memref<16x64xbf16, #tpu.memory_space<vmem>>, vector<16x64xbf16>
    %cst_201 = arith.constant dense<0.000000e+00> : vector<8x64xf32>
    %390 = tpu.matmul %388, %389, %cst_201 {dimension_numbers = #tpu.dot_dimension_numbers<[1], [0], [0], [1], [0, 0, 1, 1], [], []>} : vector<8x16xbf16>, vector<16x64xbf16>, vector<8x64xf32> -> vector<8x64xf32>
    %391 = vector.broadcast %387 : vector<1x64xf32> to vector<8x64xf32>
    %392 = arith.addf %391, %390 : vector<8x64xf32>
    %c0_202 = arith.constant 0 : index
    %c0_203 = arith.constant 0 : index
    %393 = vector.load %arg7[%c0_202, %c0_203] : memref<1x64xf32, #tpu.memory_space<vmem>>, vector<1x64xf32>
    %394 = vector.broadcast %393 : vector<1x64xf32> to vector<8x64xf32>
    %395 = arith.addf %392, %394 : vector<8x64xf32>
    %cst_204 = arith.constant 0.000000e+00 : f32
    %396 = vector.broadcast %cst_204 : f32 to vector<8x64xf32>
    %397 = arith.maximumf %395, %396 : vector<8x64xf32>
    %398 = arith.truncf %397 : vector<8x64xf32> to vector<8x64xbf16>
    %c0_205 = arith.constant 0 : index
    %c0_206 = arith.constant 0 : index
    %399 = vector.load %arg8[%c0_205, %c0_206] : memref<64x64xbf16, #tpu.memory_space<vmem>>, vector<64x64xbf16>
    %cst_207 = arith.constant dense<0.000000e+00> : vector<8x64xf32>
    %400 = tpu.matmul %398, %399, %cst_207 {dimension_numbers = #tpu.dot_dimension_numbers<[1], [0], [0], [1], [0, 0, 1, 1], [], []>} : vector<8x64xbf16>, vector<64x64xbf16>, vector<8x64xf32> -> vector<8x64xf32>
    %c0_208 = arith.constant 0 : index
    %c0_209 = arith.constant 0 : index
    %401 = vector.load %arg9[%c0_208, %c0_209] : memref<1x64xf32, #tpu.memory_space<vmem>>, vector<1x64xf32>
    %402 = vector.broadcast %401 : vector<1x64xf32> to vector<8x64xf32>
    %403 = arith.addf %400, %402 : vector<8x64xf32>
    %cst_210 = arith.constant 0.000000e+00 : f32
    %404 = vector.broadcast %cst_210 : f32 to vector<8x64xf32>
    %405 = arith.maximumf %403, %404 : vector<8x64xf32>
    %406 = arith.truncf %405 : vector<8x64xf32> to vector<8x64xbf16>
    %c0_211 = arith.constant 0 : index
    %c0_212 = arith.constant 0 : index
    %407 = vector.load %arg10[%c0_211, %c0_212] : memref<64x80xbf16, #tpu.memory_space<vmem>>, vector<64x80xbf16>
    %cst_213 = arith.constant dense<0.000000e+00> : vector<8x80xf32>
    %408 = tpu.matmul %406, %407, %cst_213 {dimension_numbers = #tpu.dot_dimension_numbers<[1], [0], [0], [1], [0, 0, 1, 1], [], []>} : vector<8x64xbf16>, vector<64x80xbf16>, vector<8x80xf32> -> vector<8x80xf32>
    %c0_214 = arith.constant 0 : index
    %c0_215 = arith.constant 0 : index
    %409 = vector.load %arg11[%c0_214, %c0_215] : memref<1x80xf32, #tpu.memory_space<vmem>>, vector<1x80xf32>
    %410 = vector.broadcast %409 : vector<1x80xf32> to vector<8x80xf32>
    %411 = arith.addf %408, %410 : vector<8x80xf32>
    %412 = math.tanh %411 : vector<8x80xf32>
    %cst_216 = arith.constant 1.000000e+00 : f32
    %413 = vector.broadcast %cst_216 : f32 to vector<8x80xf32>
    %414 = arith.mulf %413, %412 : vector<8x80xf32>
    %415 = vector.extract_strided_slice %414 {offsets = [0, 0], sizes = [8, 16], strides = [1, 1]} : vector<8x80xf32> to vector<8x16xf32>
    %416 = vector.extract_strided_slice %414 {offsets = [0, 16], sizes = [8, 64], strides = [1, 1]} : vector<8x80xf32> to vector<8x64xf32>
    %417 = arith.mulf %416, %371 : vector<8x64xf32>
    %418 = arith.truncf %417 : vector<8x64xf32> to vector<8x64xbf16>
    %c0_217 = arith.constant 0 : index
    %c0_218 = arith.constant 0 : index
    %419 = vector.load %arg13[%c0_217, %c0_218] : memref<64x16xbf16, #tpu.memory_space<vmem>>, vector<64x16xbf16>
    %cst_219 = arith.constant dense<0.000000e+00> : vector<8x16xf32>
    %420 = tpu.matmul %418, %419, %cst_219 {dimension_numbers = #tpu.dot_dimension_numbers<[1], [0], [0], [1], [0, 0, 1, 1], [], []>} : vector<8x64xbf16>, vector<64x16xbf16>, vector<8x16xf32> -> vector<8x16xf32>
    %cst_220 = arith.constant 5.000000e-01 : f32
    %421 = arith.mulf %cst_220, %365 : f32
    %422 = arith.addf %344, %415 : vector<8x16xf32>
    %423 = vector.broadcast %421 : f32 to vector<8x16xf32>
    %424 = arith.mulf %423, %422 : vector<8x16xf32>
    %425 = arith.addf %358, %424 : vector<8x16xf32>
    %426 = arith.addf %375, %420 : vector<8x16xf32>
    %cst_221 = arith.constant 5.000000e-01 : f32
    %427 = vector.broadcast %cst_221 : f32 to vector<8x16xf32>
    %428 = arith.mulf %427, %426 : vector<8x16xf32>
    %429 = arith.addf %425, %428 : vector<8x16xf32>
    %430 = arith.index_cast %c5_i32 : i32 to index
    %c0_222 = arith.constant 0 : index
    %c0_223 = arith.constant 0 : index
    %431 = vector.load %arg14[%430, %c0_222, %c0_223] : memref<8x8x16xf32, #tpu.memory_space<vmem>>, vector<1x8x16xf32>
    %432 = vector.shape_cast %431 : vector<1x8x16xf32> to vector<8x16xf32>
    %433 = vector.shape_cast %429 : vector<8x16xf32> to vector<1x8x16xf32>
    tpu.vector_store %arg14[%430, %c0_222, %c0_223], %433 {strides = array<i32>} : memref<8x8x16xf32, #tpu.memory_space<vmem>>, vector<1x8x16xf32>,
    %c6_i32 = arith.constant 6 : i32
    %434 = arith.addi %0, %c6_i32 : i32
    %435 = arith.index_cast %434 : i32 to index
    %436 = memref.load %arg3[%435] : memref<8xf32, #tpu.memory_space<smem>>
    %437 = arith.index_cast %c6_i32 : i32 to index
    %c0_224 = arith.constant 0 : index
    %c0_225 = arith.constant 0 : index
    %438 = vector.load %arg4[%437, %c0_224, %c0_225] : memref<8x8x4xf32, #tpu.memory_space<vmem>>, vector<1x8x4xf32>
    %439 = vector.shape_cast %438 : vector<1x8x4xf32> to vector<8x4xf32>
    %440 = arith.truncf %439 : vector<8x4xf32> to vector<8x4xbf16>
    %c0_226 = arith.constant 0 : index
    %c0_227 = arith.constant 0 : index
    %441 = vector.load %arg12[%c0_226, %c0_227] : memref<4x64xbf16, #tpu.memory_space<vmem>>, vector<4x64xbf16>
    %cst_228 = arith.constant dense<0.000000e+00> : vector<8x64xf32>
    %442 = tpu.matmul %440, %441, %cst_228 {dimension_numbers = #tpu.dot_dimension_numbers<[1], [0], [0], [1], [0, 0, 1, 1], [], []>} : vector<8x4xbf16>, vector<4x64xbf16>, vector<8x64xf32> -> vector<8x64xf32>
    %443 = arith.mulf %416, %442 : vector<8x64xf32>
    %444 = arith.truncf %443 : vector<8x64xf32> to vector<8x64xbf16>
    %c0_229 = arith.constant 0 : index
    %c0_230 = arith.constant 0 : index
    %445 = vector.load %arg13[%c0_229, %c0_230] : memref<64x16xbf16, #tpu.memory_space<vmem>>, vector<64x16xbf16>
    %cst_231 = arith.constant dense<0.000000e+00> : vector<8x16xf32>
    %446 = tpu.matmul %444, %445, %cst_231 {dimension_numbers = #tpu.dot_dimension_numbers<[1], [0], [0], [1], [0, 0, 1, 1], [], []>} : vector<8x64xbf16>, vector<64x16xbf16>, vector<8x16xf32> -> vector<8x16xf32>
    %cst_232 = arith.constant 2.000000e+00 : f32
    %447 = vector.broadcast %cst_232 : f32 to vector<8x16xf32>
    %448 = arith.mulf %447, %429 : vector<8x16xf32>
    %449 = arith.subf %448, %382 : vector<8x16xf32>
    %450 = vector.broadcast %436 : f32 to vector<8x16xf32>
    %451 = arith.mulf %415, %450 : vector<8x16xf32>
    %452 = arith.addf %449, %451 : vector<8x16xf32>
    %453 = arith.addf %452, %446 : vector<8x16xf32>
    %454 = arith.index_cast %434 : i32 to index
    %455 = memref.load %arg2[%454] : memref<8xf32, #tpu.memory_space<smem>>
    %c0_233 = arith.constant 0 : index
    %c0_234 = arith.constant 0 : index
    %456 = vector.load %arg5[%c0_233, %c0_234] : memref<1x64xf32, #tpu.memory_space<vmem>>, vector<1x64xf32>
    %457 = vector.broadcast %455 : f32 to vector<1x64xf32>
    %458 = arith.mulf %457, %456 : vector<1x64xf32>
    %459 = arith.truncf %453 : vector<8x16xf32> to vector<8x16xbf16>
    %c0_235 = arith.constant 0 : index
    %c0_236 = arith.constant 0 : index
    %460 = vector.load %arg6[%c0_235, %c0_236] : memref<16x64xbf16, #tpu.memory_space<vmem>>, vector<16x64xbf16>
    %cst_237 = arith.constant dense<0.000000e+00> : vector<8x64xf32>
    %461 = tpu.matmul %459, %460, %cst_237 {dimension_numbers = #tpu.dot_dimension_numbers<[1], [0], [0], [1], [0, 0, 1, 1], [], []>} : vector<8x16xbf16>, vector<16x64xbf16>, vector<8x64xf32> -> vector<8x64xf32>
    %462 = vector.broadcast %458 : vector<1x64xf32> to vector<8x64xf32>
    %463 = arith.addf %462, %461 : vector<8x64xf32>
    %c0_238 = arith.constant 0 : index
    %c0_239 = arith.constant 0 : index
    %464 = vector.load %arg7[%c0_238, %c0_239] : memref<1x64xf32, #tpu.memory_space<vmem>>, vector<1x64xf32>
    %465 = vector.broadcast %464 : vector<1x64xf32> to vector<8x64xf32>
    %466 = arith.addf %463, %465 : vector<8x64xf32>
    %cst_240 = arith.constant 0.000000e+00 : f32
    %467 = vector.broadcast %cst_240 : f32 to vector<8x64xf32>
    %468 = arith.maximumf %466, %467 : vector<8x64xf32>
    %469 = arith.truncf %468 : vector<8x64xf32> to vector<8x64xbf16>
    %c0_241 = arith.constant 0 : index
    %c0_242 = arith.constant 0 : index
    %470 = vector.load %arg8[%c0_241, %c0_242] : memref<64x64xbf16, #tpu.memory_space<vmem>>, vector<64x64xbf16>
    %cst_243 = arith.constant dense<0.000000e+00> : vector<8x64xf32>
    %471 = tpu.matmul %469, %470, %cst_243 {dimension_numbers = #tpu.dot_dimension_numbers<[1], [0], [0], [1], [0, 0, 1, 1], [], []>} : vector<8x64xbf16>, vector<64x64xbf16>, vector<8x64xf32> -> vector<8x64xf32>
    %c0_244 = arith.constant 0 : index
    %c0_245 = arith.constant 0 : index
    %472 = vector.load %arg9[%c0_244, %c0_245] : memref<1x64xf32, #tpu.memory_space<vmem>>, vector<1x64xf32>
    %473 = vector.broadcast %472 : vector<1x64xf32> to vector<8x64xf32>
    %474 = arith.addf %471, %473 : vector<8x64xf32>
    %cst_246 = arith.constant 0.000000e+00 : f32
    %475 = vector.broadcast %cst_246 : f32 to vector<8x64xf32>
    %476 = arith.maximumf %474, %475 : vector<8x64xf32>
    %477 = arith.truncf %476 : vector<8x64xf32> to vector<8x64xbf16>
    %c0_247 = arith.constant 0 : index
    %c0_248 = arith.constant 0 : index
    %478 = vector.load %arg10[%c0_247, %c0_248] : memref<64x80xbf16, #tpu.memory_space<vmem>>, vector<64x80xbf16>
    %cst_249 = arith.constant dense<0.000000e+00> : vector<8x80xf32>
    %479 = tpu.matmul %477, %478, %cst_249 {dimension_numbers = #tpu.dot_dimension_numbers<[1], [0], [0], [1], [0, 0, 1, 1], [], []>} : vector<8x64xbf16>, vector<64x80xbf16>, vector<8x80xf32> -> vector<8x80xf32>
    %c0_250 = arith.constant 0 : index
    %c0_251 = arith.constant 0 : index
    %480 = vector.load %arg11[%c0_250, %c0_251] : memref<1x80xf32, #tpu.memory_space<vmem>>, vector<1x80xf32>
    %481 = vector.broadcast %480 : vector<1x80xf32> to vector<8x80xf32>
    %482 = arith.addf %479, %481 : vector<8x80xf32>
    %483 = math.tanh %482 : vector<8x80xf32>
    %cst_252 = arith.constant 1.000000e+00 : f32
    %484 = vector.broadcast %cst_252 : f32 to vector<8x80xf32>
    %485 = arith.mulf %484, %483 : vector<8x80xf32>
    %486 = vector.extract_strided_slice %485 {offsets = [0, 0], sizes = [8, 16], strides = [1, 1]} : vector<8x80xf32> to vector<8x16xf32>
    %487 = vector.extract_strided_slice %485 {offsets = [0, 16], sizes = [8, 64], strides = [1, 1]} : vector<8x80xf32> to vector<8x64xf32>
    %488 = arith.mulf %487, %442 : vector<8x64xf32>
    %489 = arith.truncf %488 : vector<8x64xf32> to vector<8x64xbf16>
    %c0_253 = arith.constant 0 : index
    %c0_254 = arith.constant 0 : index
    %490 = vector.load %arg13[%c0_253, %c0_254] : memref<64x16xbf16, #tpu.memory_space<vmem>>, vector<64x16xbf16>
    %cst_255 = arith.constant dense<0.000000e+00> : vector<8x16xf32>
    %491 = tpu.matmul %489, %490, %cst_255 {dimension_numbers = #tpu.dot_dimension_numbers<[1], [0], [0], [1], [0, 0, 1, 1], [], []>} : vector<8x64xbf16>, vector<64x16xbf16>, vector<8x16xf32> -> vector<8x16xf32>
    %cst_256 = arith.constant 5.000000e-01 : f32
    %492 = arith.mulf %cst_256, %436 : f32
    %493 = arith.addf %415, %486 : vector<8x16xf32>
    %494 = vector.broadcast %492 : f32 to vector<8x16xf32>
    %495 = arith.mulf %494, %493 : vector<8x16xf32>
    %496 = arith.addf %429, %495 : vector<8x16xf32>
    %497 = arith.addf %446, %491 : vector<8x16xf32>
    %cst_257 = arith.constant 5.000000e-01 : f32
    %498 = vector.broadcast %cst_257 : f32 to vector<8x16xf32>
    %499 = arith.mulf %498, %497 : vector<8x16xf32>
    %500 = arith.addf %496, %499 : vector<8x16xf32>
    %501 = arith.index_cast %c6_i32 : i32 to index
    %c0_258 = arith.constant 0 : index
    %c0_259 = arith.constant 0 : index
    %502 = vector.load %arg14[%501, %c0_258, %c0_259] : memref<8x8x16xf32, #tpu.memory_space<vmem>>, vector<1x8x16xf32>
    %503 = vector.shape_cast %502 : vector<1x8x16xf32> to vector<8x16xf32>
    %504 = vector.shape_cast %500 : vector<8x16xf32> to vector<1x8x16xf32>
    tpu.vector_store %arg14[%501, %c0_258, %c0_259], %504 {strides = array<i32>} : memref<8x8x16xf32, #tpu.memory_space<vmem>>, vector<1x8x16xf32>,
    %c7_i32 = arith.constant 7 : i32
    %505 = arith.addi %0, %c7_i32 : i32
    %506 = arith.index_cast %505 : i32 to index
    %507 = memref.load %arg3[%506] : memref<8xf32, #tpu.memory_space<smem>>
    %508 = arith.index_cast %c7_i32 : i32 to index
    %c0_260 = arith.constant 0 : index
    %c0_261 = arith.constant 0 : index
    %509 = vector.load %arg4[%508, %c0_260, %c0_261] : memref<8x8x4xf32, #tpu.memory_space<vmem>>, vector<1x8x4xf32>
    %510 = vector.shape_cast %509 : vector<1x8x4xf32> to vector<8x4xf32>
    %511 = arith.truncf %510 : vector<8x4xf32> to vector<8x4xbf16>
    %c0_262 = arith.constant 0 : index
    %c0_263 = arith.constant 0 : index
    %512 = vector.load %arg12[%c0_262, %c0_263] : memref<4x64xbf16, #tpu.memory_space<vmem>>, vector<4x64xbf16>
    %cst_264 = arith.constant dense<0.000000e+00> : vector<8x64xf32>
    %513 = tpu.matmul %511, %512, %cst_264 {dimension_numbers = #tpu.dot_dimension_numbers<[1], [0], [0], [1], [0, 0, 1, 1], [], []>} : vector<8x4xbf16>, vector<4x64xbf16>, vector<8x64xf32> -> vector<8x64xf32>
    %514 = arith.mulf %487, %513 : vector<8x64xf32>
    %515 = arith.truncf %514 : vector<8x64xf32> to vector<8x64xbf16>
    %c0_265 = arith.constant 0 : index
    %c0_266 = arith.constant 0 : index
    %516 = vector.load %arg13[%c0_265, %c0_266] : memref<64x16xbf16, #tpu.memory_space<vmem>>, vector<64x16xbf16>
    %cst_267 = arith.constant dense<0.000000e+00> : vector<8x16xf32>
    %517 = tpu.matmul %515, %516, %cst_267 {dimension_numbers = #tpu.dot_dimension_numbers<[1], [0], [0], [1], [0, 0, 1, 1], [], []>} : vector<8x64xbf16>, vector<64x16xbf16>, vector<8x16xf32> -> vector<8x16xf32>
    %cst_268 = arith.constant 2.000000e+00 : f32
    %518 = vector.broadcast %cst_268 : f32 to vector<8x16xf32>
    %519 = arith.mulf %518, %500 : vector<8x16xf32>
    %520 = arith.subf %519, %453 : vector<8x16xf32>
    %521 = vector.broadcast %507 : f32 to vector<8x16xf32>
    %522 = arith.mulf %486, %521 : vector<8x16xf32>
    %523 = arith.addf %520, %522 : vector<8x16xf32>
    %524 = arith.addf %523, %517 : vector<8x16xf32>
    %525 = arith.index_cast %505 : i32 to index
    %526 = memref.load %arg2[%525] : memref<8xf32, #tpu.memory_space<smem>>
    %c0_269 = arith.constant 0 : index
    %c0_270 = arith.constant 0 : index
    %527 = vector.load %arg5[%c0_269, %c0_270] : memref<1x64xf32, #tpu.memory_space<vmem>>, vector<1x64xf32>
    %528 = vector.broadcast %526 : f32 to vector<1x64xf32>
    %529 = arith.mulf %528, %527 : vector<1x64xf32>
    %530 = arith.truncf %524 : vector<8x16xf32> to vector<8x16xbf16>
    %c0_271 = arith.constant 0 : index
    %c0_272 = arith.constant 0 : index
    %531 = vector.load %arg6[%c0_271, %c0_272] : memref<16x64xbf16, #tpu.memory_space<vmem>>, vector<16x64xbf16>
    %cst_273 = arith.constant dense<0.000000e+00> : vector<8x64xf32>
    %532 = tpu.matmul %530, %531, %cst_273 {dimension_numbers = #tpu.dot_dimension_numbers<[1], [0], [0], [1], [0, 0, 1, 1], [], []>} : vector<8x16xbf16>, vector<16x64xbf16>, vector<8x64xf32> -> vector<8x64xf32>
    %533 = vector.broadcast %529 : vector<1x64xf32> to vector<8x64xf32>
    %534 = arith.addf %533, %532 : vector<8x64xf32>
    %c0_274 = arith.constant 0 : index
    %c0_275 = arith.constant 0 : index
    %535 = vector.load %arg7[%c0_274, %c0_275] : memref<1x64xf32, #tpu.memory_space<vmem>>, vector<1x64xf32>
    %536 = vector.broadcast %535 : vector<1x64xf32> to vector<8x64xf32>
    %537 = arith.addf %534, %536 : vector<8x64xf32>
    %cst_276 = arith.constant 0.000000e+00 : f32
    %538 = vector.broadcast %cst_276 : f32 to vector<8x64xf32>
    %539 = arith.maximumf %537, %538 : vector<8x64xf32>
    %540 = arith.truncf %539 : vector<8x64xf32> to vector<8x64xbf16>
    %c0_277 = arith.constant 0 : index
    %c0_278 = arith.constant 0 : index
    %541 = vector.load %arg8[%c0_277, %c0_278] : memref<64x64xbf16, #tpu.memory_space<vmem>>, vector<64x64xbf16>
    %cst_279 = arith.constant dense<0.000000e+00> : vector<8x64xf32>
    %542 = tpu.matmul %540, %541, %cst_279 {dimension_numbers = #tpu.dot_dimension_numbers<[1], [0], [0], [1], [0, 0, 1, 1], [], []>} : vector<8x64xbf16>, vector<64x64xbf16>, vector<8x64xf32> -> vector<8x64xf32>
    %c0_280 = arith.constant 0 : index
    %c0_281 = arith.constant 0 : index
    %543 = vector.load %arg9[%c0_280, %c0_281] : memref<1x64xf32, #tpu.memory_space<vmem>>, vector<1x64xf32>
    %544 = vector.broadcast %543 : vector<1x64xf32> to vector<8x64xf32>
    %545 = arith.addf %542, %544 : vector<8x64xf32>
    %cst_282 = arith.constant 0.000000e+00 : f32
    %546 = vector.broadcast %cst_282 : f32 to vector<8x64xf32>
    %547 = arith.maximumf %545, %546 : vector<8x64xf32>
    %548 = arith.truncf %547 : vector<8x64xf32> to vector<8x64xbf16>
    %c0_283 = arith.constant 0 : index
    %c0_284 = arith.constant 0 : index
    %549 = vector.load %arg10[%c0_283, %c0_284] : memref<64x80xbf16, #tpu.memory_space<vmem>>, vector<64x80xbf16>
    %cst_285 = arith.constant dense<0.000000e+00> : vector<8x80xf32>
    %550 = tpu.matmul %548, %549, %cst_285 {dimension_numbers = #tpu.dot_dimension_numbers<[1], [0], [0], [1], [0, 0, 1, 1], [], []>} : vector<8x64xbf16>, vector<64x80xbf16>, vector<8x80xf32> -> vector<8x80xf32>
    %c0_286 = arith.constant 0 : index
    %c0_287 = arith.constant 0 : index
    %551 = vector.load %arg11[%c0_286, %c0_287] : memref<1x80xf32, #tpu.memory_space<vmem>>, vector<1x80xf32>
    %552 = vector.broadcast %551 : vector<1x80xf32> to vector<8x80xf32>
    %553 = arith.addf %550, %552 : vector<8x80xf32>
    %554 = math.tanh %553 : vector<8x80xf32>
    %cst_288 = arith.constant 1.000000e+00 : f32
    %555 = vector.broadcast %cst_288 : f32 to vector<8x80xf32>
    %556 = arith.mulf %555, %554 : vector<8x80xf32>
    %557 = vector.extract_strided_slice %556 {offsets = [0, 0], sizes = [8, 16], strides = [1, 1]} : vector<8x80xf32> to vector<8x16xf32>
    %558 = vector.extract_strided_slice %556 {offsets = [0, 16], sizes = [8, 64], strides = [1, 1]} : vector<8x80xf32> to vector<8x64xf32>
    %559 = arith.mulf %558, %513 : vector<8x64xf32>
    %560 = arith.truncf %559 : vector<8x64xf32> to vector<8x64xbf16>
    %c0_289 = arith.constant 0 : index
    %c0_290 = arith.constant 0 : index
    %561 = vector.load %arg13[%c0_289, %c0_290] : memref<64x16xbf16, #tpu.memory_space<vmem>>, vector<64x16xbf16>
    %cst_291 = arith.constant dense<0.000000e+00> : vector<8x16xf32>
    %562 = tpu.matmul %560, %561, %cst_291 {dimension_numbers = #tpu.dot_dimension_numbers<[1], [0], [0], [1], [0, 0, 1, 1], [], []>} : vector<8x64xbf16>, vector<64x16xbf16>, vector<8x16xf32> -> vector<8x16xf32>
    %cst_292 = arith.constant 5.000000e-01 : f32
    %563 = arith.mulf %cst_292, %507 : f32
    %564 = arith.addf %486, %557 : vector<8x16xf32>
    %565 = vector.broadcast %563 : f32 to vector<8x16xf32>
    %566 = arith.mulf %565, %564 : vector<8x16xf32>
    %567 = arith.addf %500, %566 : vector<8x16xf32>
    %568 = arith.addf %517, %562 : vector<8x16xf32>
    %cst_293 = arith.constant 5.000000e-01 : f32
    %569 = vector.broadcast %cst_293 : f32 to vector<8x16xf32>
    %570 = arith.mulf %569, %568 : vector<8x16xf32>
    %571 = arith.addf %567, %570 : vector<8x16xf32>
    %572 = arith.index_cast %c7_i32 : i32 to index
    %c0_294 = arith.constant 0 : index
    %c0_295 = arith.constant 0 : index
    %573 = vector.load %arg14[%572, %c0_294, %c0_295] : memref<8x8x16xf32, #tpu.memory_space<vmem>>, vector<1x8x16xf32>
    %574 = vector.shape_cast %573 : vector<1x8x16xf32> to vector<8x16xf32>
    %575 = vector.shape_cast %571 : vector<8x16xf32> to vector<1x8x16xf32>
    tpu.vector_store %arg14[%572, %c0_294, %c0_295], %575 {strides = array<i32>} : memref<8x8x16xf32, #tpu.memory_space<vmem>>, vector<1x8x16xf32>,
    %c8_i32_296 = arith.constant 8 : i32
    %c0_297 = arith.constant 0 : index
    %c0_298 = arith.constant 0 : index
    %576 = vector.load %arg15[%c0_297, %c0_298] : memref<8x16xf32, #tpu.memory_space<vmem>>, vector<8x16xf32>
    tpu.vector_store %arg15[%c0_297, %c0_298], %571 {strides = array<i32>} : memref<8x16xf32, #tpu.memory_space<vmem>>, vector<8x16xf32>,
    %c0_299 = arith.constant 0 : index
    %c0_300 = arith.constant 0 : index
    %577 = vector.load %arg16[%c0_299, %c0_300] : memref<8x16xf32, #tpu.memory_space<vmem>>, vector<8x16xf32>
    tpu.vector_store %arg16[%c0_299, %c0_300], %524 {strides = array<i32>} : memref<8x16xf32, #tpu.memory_space<vmem>>, vector<8x16xf32>,
    %c0_301 = arith.constant 0 : index
    %c0_302 = arith.constant 0 : index
    %578 = vector.load %arg17[%c0_301, %c0_302] : memref<8x16xf32, #tpu.memory_space<vmem>>, vector<8x16xf32>
    tpu.vector_store %arg17[%c0_301, %c0_302], %557 {strides = array<i32>} : memref<8x16xf32, #tpu.memory_space<vmem>>, vector<8x16xf32>,
    %c0_303 = arith.constant 0 : index
    %c0_304 = arith.constant 0 : index
    %579 = vector.load %arg18[%c0_303, %c0_304] : memref<8x64xf32, #tpu.memory_space<vmem>>, vector<8x64xf32>
    tpu.vector_store %arg18[%c0_303, %c0_304], %558 {strides = array<i32>} : memref<8x64xf32, #tpu.memory_space<vmem>>, vector<8x64xf32>,
    return
  }
  func.func @transform_0(%arg0: i32, %arg1: i32) -> i32 {
    %c0_i32 = arith.constant 0 : i32
    %c0_i32_0 = arith.constant 0 : i32
    return %c0_i32 : i32
  }
  func.func @transform_1(%arg0: i32, %arg1: i32) -> i32 {
    %c0_i32 = arith.constant 0 : i32
    %c0_i32_0 = arith.constant 0 : i32
    return %c0_i32 : i32
  }
  func.func @transform_2(%arg0: i32, %arg1: i32) -> (i32, i32, i32) {
    %c0_i32 = arith.constant 0 : i32
    %c0_i32_0 = arith.constant 0 : i32
    return %arg1, %arg0, %c0_i32 : i32, i32, i32
  }
  func.func @transform_3(%arg0: i32, %arg1: i32) -> (i32, i32) {
    %c0_i32 = arith.constant 0 : i32
    %c0_i32_0 = arith.constant 0 : i32
    %c0_i32_1 = arith.constant 0 : i32
    return %c0_i32, %c0_i32_0 : i32, i32
  }
  func.func @transform_4(%arg0: i32, %arg1: i32) -> (i32, i32) {
    %c0_i32 = arith.constant 0 : i32
    %c0_i32_0 = arith.constant 0 : i32
    %c0_i32_1 = arith.constant 0 : i32
    return %c0_i32, %c0_i32_0 : i32, i32
  }
  func.func @transform_5(%arg0: i32, %arg1: i32) -> (i32, i32) {
    %c0_i32 = arith.constant 0 : i32
    %c0_i32_0 = arith.constant 0 : i32
    %c0_i32_1 = arith.constant 0 : i32
    return %c0_i32, %c0_i32_0 : i32, i32
  }
  func.func @transform_6(%arg0: i32, %arg1: i32) -> (i32, i32) {
    %c0_i32 = arith.constant 0 : i32
    %c0_i32_0 = arith.constant 0 : i32
    %c0_i32_1 = arith.constant 0 : i32
    return %c0_i32, %c0_i32_0 : i32, i32
  }
  func.func @transform_7(%arg0: i32, %arg1: i32) -> (i32, i32) {
    %c0_i32 = arith.constant 0 : i32
    %c0_i32_0 = arith.constant 0 : i32
    %c0_i32_1 = arith.constant 0 : i32
    return %c0_i32, %c0_i32_0 : i32, i32
  }
  func.func @transform_8(%arg0: i32, %arg1: i32) -> (i32, i32) {
    %c0_i32 = arith.constant 0 : i32
    %c0_i32_0 = arith.constant 0 : i32
    %c0_i32_1 = arith.constant 0 : i32
    return %c0_i32, %c0_i32_0 : i32, i32
  }
  func.func @transform_9(%arg0: i32, %arg1: i32) -> (i32, i32) {
    %c0_i32 = arith.constant 0 : i32
    %c0_i32_0 = arith.constant 0 : i32
    %c0_i32_1 = arith.constant 0 : i32
    return %c0_i32, %c0_i32_0 : i32, i32
  }
  func.func @transform_10(%arg0: i32, %arg1: i32) -> (i32, i32) {
    %c0_i32 = arith.constant 0 : i32
    %c0_i32_0 = arith.constant 0 : i32
    %c0_i32_1 = arith.constant 0 : i32
    return %c0_i32, %c0_i32_0 : i32, i32
  }
  func.func @transform_11(%arg0: i32, %arg1: i32) -> (i32, i32) {
    %c0_i32 = arith.constant 0 : i32
    %c0_i32_0 = arith.constant 0 : i32
    %c0_i32_1 = arith.constant 0 : i32
    return %c0_i32, %c0_i32_0 : i32, i32
  }
  func.func @transform_12(%arg0: i32, %arg1: i32) -> (i32, i32, i32) {
    %c0_i32 = arith.constant 0 : i32
    %c0_i32_0 = arith.constant 0 : i32
    return %arg1, %arg0, %c0_i32 : i32, i32, i32
  }
}

</mosaic_0001>

<llo_original>
// kernel: tpu_custom_call.1
$region0: #{tpu_custom_call.1}
  #allocation0 [shape = 'u32[]', space=smem, size = 0x4, offset = 0x4, fixed_abs, tag = 'smem constant byte address 0x4 - core index']
  #allocation1 [shape = 'u32[144,128]{1,0:T(1,128)}', space=vmem, size = 0x12000, scoped, tag = 'internal scratch']
  #allocation2 [shape = 'f32[8,16]{1,0:T(8,128)}', space=vmem, size = 0x1000, scoped, tag = 'scratch operand']
  #allocation3 [shape = 'f32[8,16]{1,0:T(8,128)}', space=vmem, size = 0x1000, scoped, tag = 'scratch operand']
  #allocation4 [shape = 'f32[8,16]{1,0:T(8,128)}', space=vmem, size = 0x1000, scoped, tag = 'scratch operand']
  #allocation5 [shape = 'f32[8,64]{1,0:T(8,128)}', space=vmem, size = 0x1000, scoped, tag = 'scratch operand']
  %s0 = inlined_call_operand.vmem [shape: f32[8], index: 0, kind: input, shape index: {}]
  %s1 = inlined_call_operand.vmem [shape: f32[8], index: 1, kind: input, shape index: {}]
  %s2 = inlined_call_operand.vmem [shape: f32[8,8,4], index: 2, kind: input, shape index: {}]
  %s3 = inlined_call_operand.vmem [shape: f32[1,64], index: 3, kind: input, shape index: {}]
  %s4 = inlined_call_operand.vmem [shape: bf16[16,64], index: 4, kind: input, shape index: {}]
  %s5 = inlined_call_operand.vmem [shape: f32[1,64], index: 5, kind: input, shape index: {}]
  %s6 = inlined_call_operand.vmem [shape: bf16[64,64], index: 6, kind: input, shape index: {}]
  %s7 = inlined_call_operand.vmem [shape: f32[1,64], index: 7, kind: input, shape index: {}]
  %s8 = inlined_call_operand.vmem [shape: bf16[64,80], index: 8, kind: input, shape index: {}]
  %s9 = inlined_call_operand.vmem [shape: f32[1,80], index: 9, kind: input, shape index: {}]
  %s10 = inlined_call_operand.vmem [shape: bf16[4,64], index: 10, kind: input, shape index: {}]
  %s11 = inlined_call_operand.vmem [shape: bf16[64,16], index: 11, kind: input, shape index: {}]
  %s12 = inlined_call_operand.hbm [shape: f32[8,8,16], index: 12, kind: output, shape index: {}]
  %s13 = sld [smem:[#allocation0]]
  $region70: #{tpu_custom_call.1} parent=0
    _
  %s15 = ssub.s32 1, %s13
  %s16 = scalar_select 0, %s15, %s13
  $region1: #{tpu_custom_call.1} parent=0
    #allocation6 [shape = 'u8[512]{0}', space=smem, size = 0x200, scoped, tag = 'input window, operand 0, single buffered']
    #allocation7 [shape = 's32[1]{0}', space=sflag, size = 0x4, scoped, tag = 'scoped memory for tpu_custom_call.1']
    #allocation8 [shape = 's32[1]{0}', space=sflag, size = 0x4, scoped, tag = 'scoped memory for tpu_custom_call.1']
    #allocation9 [shape = 'u8[512]{0}', space=smem, size = 0x200, scoped, tag = 'input window, operand 1, single buffered']
    #allocation10 [shape = 's32[1]{0}', space=sflag, size = 0x4, scoped, tag = 'scoped memory for tpu_custom_call.1']
    #allocation11 [shape = 'u8[32768]{0}', space=vmem, size = 0x8000, scoped, tag = 'output window, operand 0, single buffered']
    %17 = vsyncpa [#allocation8], 0
    %18 = vsyncpa [#allocation10], 0
    %19 = vsyncpa [#allocation7], 0
    // Predicated region
    $region2: #{tpu_custom_call.1} parent=1 // pred_check
      _
    $region3: #{tpu_custom_call.1} parent=1 // pred_check_branch
      %21 = sbr.rel (0) target = $region5
    $region4: #{tpu_custom_call.1} parent=1 // pred_region
      %s23 = ssub.s32 16, 16
      %24 = vsyncadd [#allocation8], %s23
      %s26 = sshll.u32 %s0, 4
      %s27 = int_to_ptr.vmem [resolvable:$true] %s26
      %29 = dma.vmem_to_smem %s27, 16, [#allocation6], [#allocation8]
    $region5: #{tpu_custom_call.1} parent=1 // pred_fallthru
      _
    // Predicated region
    $region6: #{tpu_custom_call.1} parent=1 // pred_check
      _
    $region7: #{tpu_custom_call.1} parent=1 // pred_check_branch
      %31 = sbr.rel (0) target = $region9
    $region8: #{tpu_custom_call.1} parent=1 // pred_region
      %s33 = ssub.s32 16, 16
      %34 = vsyncadd [#allocation10], %s33
      %s36 = sshll.u32 %s1, 4
      %s37 = int_to_ptr.vmem [resolvable:$true] %s36
      %39 = dma.vmem_to_smem %s37, 16, [#allocation9], [#allocation10]
    $region9: #{tpu_custom_call.1} parent=1 // pred_fallthru
      _
    // Predicated region
    $region10: #{tpu_custom_call.1} parent=1 // pred_check
      _
    $region11: #{tpu_custom_call.1} parent=1 // pred_check_branch
      %41 = sbr.rel (0) target = $region13
    $region12: #{tpu_custom_call.1} parent=1 // pred_region
      _
    $region13: #{tpu_custom_call.1} parent=1 // pred_fallthru
      _
    // Predicated region
    $region14: #{tpu_custom_call.1} parent=1 // pred_check
      _
    $region15: #{tpu_custom_call.1} parent=1 // pred_check_branch
      %43 = sbr.rel (0) target = $region17
    $region16: #{tpu_custom_call.1} parent=1 // pred_region
      _
    $region17: #{tpu_custom_call.1} parent=1 // pred_fallthru
      _
    // Predicated region
    $region18: #{tpu_custom_call.1} parent=1 // pred_check
      _
    $region19: #{tpu_custom_call.1} parent=1 // pred_check_branch
      %45 = sbr.rel (0) target = $region21
    $region20: #{tpu_custom_call.1} parent=1 // pred_region
      _
    $region21: #{tpu_custom_call.1} parent=1 // pred_fallthru
      _
    // Predicated region
    $region22: #{tpu_custom_call.1} parent=1 // pred_check
      _
    $region23: #{tpu_custom_call.1} parent=1 // pred_check_branch
      %47 = sbr.rel (0) target = $region25
    $region24: #{tpu_custom_call.1} parent=1 // pred_region
      _
    $region25: #{tpu_custom_call.1} parent=1 // pred_fallthru
      _
    // Predicated region
    $region26: #{tpu_custom_call.1} parent=1 // pred_check
      _
    $region27: #{tpu_custom_call.1} parent=1 // pred_check_branch
      %49 = sbr.rel (0) target = $region29
    $region28: #{tpu_custom_call.1} parent=1 // pred_region
      _
    $region29: #{tpu_custom_call.1} parent=1 // pred_fallthru
      _
    // Predicated region
    $region30: #{tpu_custom_call.1} parent=1 // pred_check
      _
    $region31: #{tpu_custom_call.1} parent=1 // pred_check_branch
      %51 = sbr.rel (0) target = $region33
    $region32: #{tpu_custom_call.1} parent=1 // pred_region
      _
    $region33: #{tpu_custom_call.1} parent=1 // pred_fallthru
      _
    // Predicated region
    $region34: #{tpu_custom_call.1} parent=1 // pred_check
      _
    $region35: #{tpu_custom_call.1} parent=1 // pred_check_branch
      %53 = sbr.rel (0) target = $region37
    $region36: #{tpu_custom_call.1} parent=1 // pred_region
      _
    $region37: #{tpu_custom_call.1} parent=1 // pred_fallthru
      _
    // Predicated region
    $region38: #{tpu_custom_call.1} parent=1 // pred_check
      _
    $region39: #{tpu_custom_call.1} parent=1 // pred_check_branch
      %55 = sbr.rel (0) target = $region41
    $region40: #{tpu_custom_call.1} parent=1 // pred_region
      _
    $region41: #{tpu_custom_call.1} parent=1 // pred_fallthru
      _
    // Predicated region
    $region42: #{tpu_custom_call.1} parent=1 // pred_check
      _
    $region43: #{tpu_custom_call.1} parent=1 // pred_check_branch
      %57 = sbr.rel (0) target = $region45
    $region44: #{tpu_custom_call.1} parent=1 // pred_region
      _
    $region45: #{tpu_custom_call.1} parent=1 // pred_fallthru
      _
    // Predicated region
    $region46: #{tpu_custom_call.1} parent=1 // pred_check
      _
    $region47: #{tpu_custom_call.1} parent=1 // pred_check_branch
      %59 = sbr.rel (0) target = $region49
    $region48: #{tpu_custom_call.1} parent=1 // pred_region
      _
    $region49: #{tpu_custom_call.1} parent=1 // pred_fallthru
      _
    // Predicated region
    $region50: #{tpu_custom_call.1} parent=1 // pred_check
      _
    $region51: #{tpu_custom_call.1} parent=1 // pred_check_branch
      %61 = sbr.rel (0) target = $region53
    $region52: #{tpu_custom_call.1} parent=1 // pred_region
      %62 = dma.done [#allocation8], 16
    $region53: #{tpu_custom_call.1} parent=1 // pred_fallthru
      _
    // Predicated region
    $region54: #{tpu_custom_call.1} parent=1 // pred_check
      _
    $region55: #{tpu_custom_call.1} parent=1 // pred_check_branch
      %64 = sbr.rel (0) target = $region57
    $region56: #{tpu_custom_call.1} parent=1 // pred_region
      %65 = dma.done [#allocation10], 16
    $region57: #{tpu_custom_call.1} parent=1 // pred_fallthru
      _
    %66 = sfence
    %s68 = smul.u32 0, 8
    %p69 = scmp.eq.s32.totalorder 0, 0
    // Predicated region
    $region58: #{tpu_custom_call.1} parent=1 // pred_check
      %p70 = pneg %p69
    $region59: #{tpu_custom_call.1} parent=1 // pred_check_branch
      %72 = sbr.rel (%p70) target = $region61
    $region60: #{tpu_custom_call.1} parent=1 // pred_region
      %vm73 = vcmask 130048
      %74 = vst.msk [vmem:[#allocation2] sm:$0xff] %vm73, 1.0
      %75 = vst.msk [vmem:[#allocation3] sm:$0xff] %vm73, 1.0
      %76 = vst.msk [vmem:[#allocation4] sm:$0xff] %vm73, 0.0
      %vm77 = vcmask 523264
      %78 = vst.msk [vmem:[#allocation5] sm:$0xff] %vm77, 0.0
    $region61: #{tpu_custom_call.1} parent=1 // pred_fallthru
      _
    %v79 = vld [vmem:[#allocation2] sm:$0xff]
    %v80 = vld [vmem:[#allocation3] sm:$0xff]
    %v81 = vld [vmem:[#allocation4] sm:$0xff]
    %v82 = vld [vmem:[#allocation5] sm:$0xff]
    %s83 = sld [smem:[#allocation9 + %s68]]
    %v84 = vld [vmem:[%s2] sm:$0xff]
    %v85 = vpack.c.bf16 %v84, %v84
    %v86 = vld [vmem:[%s10] sm:$0x3]
    %vm87 = vcmask 31744
    %v89 = vsel %vm87, %v85, 0
    %vm91 = vcmask 1041408
    %v93 = vsel %vm91, %v86, 0
    %95 = vmatprep.subr.bf16.mxu0 0
    %96 = vmatpush1.bf16.msra.mxu0 %v93
    %97 = vmatprep.subr.bf16.mxu0 0
    %98 = vmatpush1.bf16.msra.mxu0 0
    %99 = vmatprep.subr.bf16.mxu0 0
    %100 = vmatpush1.bf16.msra.mxu0 0
    %101 = vmatprep.subr.bf16.mxu0 0
    %102 = vmatpush1.bf16.msra.mxu0 0
    %103 = vmatprep.subr.bf16.mxu0 0
    %104 = vmatpush1.bf16.msra.mxu0 0
    %105 = vmatprep.subr.bf16.mxu0 0
    %106 = vmatpush1.bf16.msra.mxu0 0
    %107 = vmatprep.subr.bf16.mxu0 0
    %108 = vmatpush1.bf16.msra.mxu0 0
    %109 = vmatprep.subr.bf16.mxu0 0
    %110 = vmatpush1.bf16.msra.mxu0 0
    %111 = vmatprep.subr.bf16.mxu0 0
    %112 = vmatpush1.bf16.msra.mxu0 0
    %113 = vmatprep.subr.bf16.mxu0 0
    %114 = vmatpush1.bf16.msra.mxu0 0
    %115 = vmatprep.subr.bf16.mxu0 0
    %116 = vmatpush1.bf16.msra.mxu0 0
    %117 = vmatprep.subr.bf16.mxu0 0
    %118 = vmatpush1.bf16.msra.mxu0 0
    %119 = vmatprep.subr.bf16.mxu0 0
    %120 = vmatpush1.bf16.msra.mxu0 0
    %121 = vmatprep.subr.bf16.mxu0 0
    %122 = vmatpush1.bf16.msra.mxu0 0
    %123 = vmatprep.subr.bf16.mxu0 0
    %124 = vmatpush1.bf16.msra.mxu0 0
    %125 = vmatprep.subr.bf16.mxu0 0
    %126 = vmatpush1.bf16.msra.mxu0 0
    %127 = vmatprep.mubr.bf16.mxu0 0
    %128 = vmatmul.mubr.bf16.gmra.mrb[0].mxu0 %v89
    %v129 = vpop.f32.mrb[0].mxu0
    %v130 = vadd.f32 0.0, %v129
    %v131 = vpop.f32.mrb[0].mxu0
    %v132 = vpop.f32.mrb[0].mxu0
    %v133 = vpop.f32.mrb[0].mxu0
    %134 = vdwg.mxu0
    %v135 = vmul.f32 %v82, %v130
    %v136 = vpack.c.bf16 %v135, %v135
    %v137 = vld [vmem:[%s11] sm:$0xf]
    %v138 = vld [vmem:[%s11 + $0x4] sm:$0xf]
    %v139 = vld [vmem:[%s11 + $0x8] sm:$0xf]
    %v140 = vld [vmem:[%s11 + $0xc] sm:$0xf]
    %v141 = vld [vmem:[%s11 + $0x10] sm:$0xf]
    %v142 = vld [vmem:[%s11 + $0x14] sm:$0xf]
    %v143 = vld [vmem:[%s11 + $0x18] sm:$0xf]
    %v144 = vld [vmem:[%s11 + $0x1c] sm:$0xf]
    %v153 = vunpack.c.l.b16 %v137
    %v154 = vunpack.c.l.b16 %v138
    %v155 = vunpack.c.l.b16 %v139
    %v156 = vunpack.c.l.b16 %v140
    %v157 = vunpack.c.l.b16 %v141
    %v158 = vunpack.c.l.b16 %v142
    %v159 = vunpack.c.l.b16 %v143
    %v160 = vunpack.c.l.b16 %v144
    %v161 = vpack.c.b16 %v154, %v153
    %v162 = vpack.c.b16 %v156, %v155
    %v163 = vpack.c.b16 %v158, %v157
    %v164 = vpack.c.b16 %v160, %v159
    %vm169 = vcmask 523264
    %v171 = vsel %vm169, %v136, 0
    %173 = vmatprep.subr.bf16.mxu0 0
    %174 = vmatpush1.bf16.msra.mxu0 %v161
    %175 = vmatprep.subr.bf16.mxu0 0
    %176 = vmatpush1.bf16.msra.mxu0 %v162
    %177 = vmatprep.subr.bf16.mxu0 0
    %178 = vmatpush1.bf16.msra.mxu0 %v163
    %179 = vmatprep.subr.bf16.mxu0 0
    %180 = vmatpush1.bf16.msra.mxu0 %v164
    %181 = vmatprep.subr.bf16.mxu0 0
    %182 = vmatpush1.bf16.msra.mxu0 0
    %183 = vmatprep.subr.bf16.mxu0 0
    %184 = vmatpush1.bf16.msra.mxu0 0
    %185 = vmatprep.subr.bf16.mxu0 0
    %186 = vmatpush1.bf16.msra.mxu0 0
    %187 = vmatprep.subr.bf16.mxu0 0
    %188 = vmatpush1.bf16.msra.mxu0 0
    %189 = vmatprep.subr.bf16.mxu0 0
    %190 = vmatpush1.bf16.msra.mxu0 0
    %191 = vmatprep.subr.bf16.mxu0 0
    %192 = vmatpush1.bf16.msra.mxu0 0
    %193 = vmatprep.subr.bf16.mxu0 0
    %194 = vmatpush1.bf16.msra.mxu0 0
    %195 = vmatprep.subr.bf16.mxu0 0
    %196 = vmatpush1.bf16.msra.mxu0 0
    %197 = vmatprep.subr.bf16.mxu0 0
    %198 = vmatpush1.bf16.msra.mxu0 0
    %199 = vmatprep.subr.bf16.mxu0 0
    %200 = vmatpush1.bf16.msra.mxu0 0
    %201 = vmatprep.subr.bf16.mxu0 0
    %202 = vmatpush1.bf16.msra.mxu0 0
    %203 = vmatprep.subr.bf16.mxu0 0
    %204 = vmatpush1.bf16.msra.mxu0 0
    %205 = vmatprep.mubr.bf16.mxu0 0
    %206 = vmatmul.mubr.bf16.gmra.mrb[0].mxu0 %v171
    %v207 = vpop.f32.mrb[0].mxu0
    %v208 = vadd.f32 0.0, %v207
    %v209 = vpop.f32.mrb[0].mxu0
    %v210 = vpop.f32.mrb[0].mxu0
    %v211 = vpop.f32.mrb[0].mxu0
    %212 = vdwg.mxu0
    %v213 = vmul.f32 %v79, 2.0
    %v214 = vsub.f32 %v213, %v80
    %v215 = vstv %s83
    %v216 = vmul.f32 %v81, %v215
    %v217 = vadd.f32 %v214, %v216
    %v218 = vadd.f32 %v217, %v208
    %s219 = sld [smem:[#allocation6 + %s68]]
    %v220 = vld [vmem:[%s3] sm:$0x1]
    %v221 = vstv %s219
    %v222 = vmul.f32 %v221, %v220
    %v223 = vpack.c.bf16 %v218, %v218
    %v224 = vld [vmem:[%s4] sm:$0xf]
    %v225 = vld [vmem:[%s4 + $0x4] sm:$0xf]
    %v228 = vunpack.c.l.b16 %v224
    %v229 = vunpack.c.l.b16 %v225
    %v230 = vpack.c.b16 %v229, %v228
    %vm232 = vcmask 130048
    %v234 = vsel %vm232, %v223, 0
    %236 = vmatprep.subr.bf16.mxu0 0
    %237 = vmatpush1.bf16.msra.mxu0 %v230
    %238 = vmatprep.subr.bf16.mxu0 0
    %239 = vmatpush1.bf16.msra.mxu0 0
    %240 = vmatprep.subr.bf16.mxu0 0
    %241 = vmatpush1.bf16.msra.mxu0 0
    %242 = vmatprep.subr.bf16.mxu0 0
    %243 = vmatpush1.bf16.msra.mxu0 0
    %244 = vmatprep.subr.bf16.mxu0 0
    %245 = vmatpush1.bf16.msra.mxu0 0
    %246 = vmatprep.subr.bf16.mxu0 0
    %247 = vmatpush1.bf16.msra.mxu0 0
    %248 = vmatprep.subr.bf16.mxu0 0
    %249 = vmatpush1.bf16.msra.mxu0 0
    %250 = vmatprep.subr.bf16.mxu0 0
    %251 = vmatpush1.bf16.msra.mxu0 0
    %252 = vmatprep.subr.bf16.mxu0 0
    %253 = vmatpush1.bf16.msra.mxu0 0
    %254 = vmatprep.subr.bf16.mxu0 0
    %255 = vmatpush1.bf16.msra.mxu0 0
    %256 = vmatprep.subr.bf16.mxu0 0
    %257 = vmatpush1.bf16.msra.mxu0 0
    %258 = vmatprep.subr.bf16.mxu0 0
    %259 = vmatpush1.bf16.msra.mxu0 0
    %260 = vmatprep.subr.bf16.mxu0 0
    %261 = vmatpush1.bf16.msra.mxu0 0
    %262 = vmatprep.subr.bf16.mxu0 0
    %263 = vmatpush1.bf16.msra.mxu0 0
    %264 = vmatprep.subr.bf16.mxu0 0
    %265 = vmatpush1.bf16.msra.mxu0 0
    %266 = vmatprep.subr.bf16.mxu0 0
    %267 = vmatpush1.bf16.msra.mxu0 0
    %268 = vmatprep.mubr.bf16.mxu0 0
    %269 = vmatmul.mubr.bf16.gmra.mrb[0].mxu0 %v234
    %v270 = vpop.f32.mrb[0].mxu0
    %v271 = vadd.f32 0.0, %v270
    %v272 = vpop.f32.mrb[0].mxu0
    %v273 = vpop.f32.mrb[0].mxu0
    %v274 = vpop.f32.mrb[0].mxu0
    %275 = vdwg.mxu0
    %v277 = vlaneseq
    %v278 = vshrl.u32 %v277, 7
    %v279 = vsub.s32 0, %v278
    %v280 = vrot.slane %v222, %v279
    %v282 = vadd.f32 %v280, %v271
    %v283 = vld [vmem:[%s5] sm:$0x1]
    %v285 = vlaneseq
    %v286 = vshrl.u32 %v285, 7
    %v287 = vsub.s32 0, %v286
    %v288 = vrot.slane %v283, %v287
    %v290 = vadd.f32 %v282, %v288
    %v291 = vmax.f32 %v290, 0.0
    %v292 = vpack.c.bf16 %v291, %v291
    %v293 = vld [vmem:[%s6] sm:$0xf]
    %v294 = vld [vmem:[%s6 + $0x4] sm:$0xf]
    %v295 = vld [vmem:[%s6 + $0x8] sm:$0xf]
    %v296 = vld [vmem:[%s6 + $0xc] sm:$0xf]
    %v297 = vld [vmem:[%s6 + $0x10] sm:$0xf]
    %v298 = vld [vmem:[%s6 + $0x14] sm:$0xf]
    %v299 = vld [vmem:[%s6 + $0x18] sm:$0xf]
    %v300 = vld [vmem:[%s6 + $0x1c] sm:$0xf]
    %v301 = vld [vmem:[%s7] sm:$0x1]
    %v303 = vlaneseq
    %v304 = vshrl.u32 %v303, 7
    %v305 = vsub.s32 0, %v304
    %v306 = vrot.slane %v301, %v305
    %v316 = vunpack.c.l.b16 %v293
    %v317 = vunpack.c.l.b16 %v294
    %v318 = vunpack.c.l.b16 %v295
    %v319 = vunpack.c.l.b16 %v296
    %v320 = vunpack.c.l.b16 %v297
    %v321 = vunpack.c.l.b16 %v298
    %v322 = vunpack.c.l.b16 %v299
    %v323 = vunpack.c.l.b16 %v300
    %v324 = vpack.c.b16 %v317, %v316
    %v325 = vpack.c.b16 %v319, %v318
    %v326 = vpack.c.b16 %v321, %v320
    %v327 = vpack.c.b16 %v323, %v322
    %v333 = vsel %vm169, %v292, 0
    %335 = vmatprep.subr.bf16.mxu0 0
    %336 = vmatpush1.bf16.msra.mxu0 %v324
    %337 = vmatprep.subr.bf16.mxu0 0
    %338 = vmatpush1.bf16.msra.mxu0 %v325
    %339 = vmatprep.subr.bf16.mxu0 0
    %340 = vmatpush1.bf16.msra.mxu0 %v326
    %341 = vmatprep.subr.bf16.mxu0 0
    %342 = vmatpush1.bf16.msra.mxu0 %v327
    %343 = vmatprep.subr.bf16.mxu0 0
    %344 = vmatpush1.bf16.msra.mxu0 0
    %345 = vmatprep.subr.bf16.mxu0 0
    %346 = vmatpush1.bf16.msra.mxu0 0
    %347 = vmatprep.subr.bf16.mxu0 0
    %348 = vmatpush1.bf16.msra.mxu0 0
    %349 = vmatprep.subr.bf16.mxu0 0
    %350 = vmatpush1.bf16.msra.mxu0 0
    %351 = vmatprep.subr.bf16.mxu0 0
    %352 = vmatpush1.bf16.msra.mxu0 0
    %353 = vmatprep.subr.bf16.mxu0 0
    %354 = vmatpush1.bf16.msra.mxu0 0
    %355 = vmatprep.subr.bf16.mxu0 0
    %356 = vmatpush1.bf16.msra.mxu0 0
    %357 = vmatprep.subr.bf16.mxu0 0
    %358 = vmatpush1.bf16.msra.mxu0 0
    %359 = vmatprep.subr.bf16.mxu0 0
    %360 = vmatpush1.bf16.msra.mxu0 0
    %361 = vmatprep.subr.bf16.mxu0 0
    %362 = vmatpush1.bf16.msra.mxu0 0
    %363 = vmatprep.subr.bf16.mxu0 0
    %364 = vmatpush1.bf16.msra.mxu0 0
    %365 = vmatprep.subr.bf16.mxu0 0
    %366 = vmatpush1.bf16.msra.mxu0 0
    %367 = vmatprep.mubr.bf16.mxu0 0
    %368 = vmatmul.mubr.bf16.gmra.mrb[0].mxu0 %v333
    %v369 = vpop.f32.mrb[0].mxu0
    %v370 = vadd.f32 %v306, %v369
    %v371 = vpop.f32.mrb[0].mxu0
    %v372 = vpop.f32.mrb[0].mxu0
    %v373 = vpop.f32.mrb[0].mxu0
    %374 = vdwg.mxu0
    %v375 = vmax.f32 %v370, 0.0
    %v376 = vpack.c.bf16 %v375, %v375
    %v377 = vld [vmem:[%s8] sm:$0xf]
    %v378 = vld [vmem:[%s8 + $0x4] sm:$0xf]
    %v379 = vld [vmem:[%s8 + $0x8] sm:$0xf]
    %v380 = vld [vmem:[%s8 + $0xc] sm:$0xf]
    %v381 = vld [vmem:[%s8 + $0x10] sm:$0xf]
    %v382 = vld [vmem:[%s8 + $0x14] sm:$0xf]
    %v383 = vld [vmem:[%s8 + $0x18] sm:$0xf]
    %v384 = vld [vmem:[%s8 + $0x1c] sm:$0xf]
    %v385 = vld [vmem:[%s9] sm:$0x1]
    %v387 = vlaneseq
    %v388 = vshrl.u32 %v387, 7
    %v389 = vsub.s32 0, %v388
    %v390 = vrot.slane %v385, %v389
    %v400 = vunpack.c.l.b16 %v377
    %v401 = vunpack.c.l.b16 %v378
    %v402 = vunpack.c.l.b16 %v379
    %v403 = vunpack.c.l.b16 %v380
    %v404 = vunpack.c.l.b16 %v381
    %v405 = vunpack.c.l.b16 %v382
    %v406 = vunpack.c.l.b16 %v383
    %v407 = vunpack.c.l.b16 %v384
    %v408 = vpack.c.b16 %v401, %v400
    %v409 = vpack.c.b16 %v403, %v402
    %v410 = vpack.c.b16 %v405, %v404
    %v411 = vpack.c.b16 %v407, %v406
    %v417 = vsel %vm169, %v376, 0
    %419 = vmatprep.subr.bf16.mxu0 0
    %420 = vmatpush1.bf16.msra.mxu0 %v408
    %421 = vmatprep.subr.bf16.mxu0 0
    %422 = vmatpush1.bf16.msra.mxu0 %v409
    %423 = vmatprep.subr.bf16.mxu0 0
    %424 = vmatpush1.bf16.msra.mxu0 %v410
    %425 = vmatprep.subr.bf16.mxu0 0
    %426 = vmatpush1.bf16.msra.mxu0 %v411
    %427 = vmatprep.subr.bf16.mxu0 0
    %428 = vmatpush1.bf16.msra.mxu0 0
    %429 = vmatprep.subr.bf16.mxu0 0
    %430 = vmatpush1.bf16.msra.mxu0 0
    %431 = vmatprep.subr.bf16.mxu0 0
    %432 = vmatpush1.bf16.msra.mxu0 0
    %433 = vmatprep.subr.bf16.mxu0 0
    %434 = vmatpush1.bf16.msra.mxu0 0
    %435 = vmatprep.subr.bf16.mxu0 0
    %436 = vmatpush1.bf16.msra.mxu0 0
    %437 = vmatprep.subr.bf16.mxu0 0
    %438 = vmatpush1.bf16.msra.mxu0 0
    %439 = vmatprep.subr.bf16.mxu0 0
    %440 = vmatpush1.bf16.msra.mxu0 0
    %441 = vmatprep.subr.bf16.mxu0 0
    %442 = vmatpush1.bf16.msra.mxu0 0
    %443 = vmatprep.subr.bf16.mxu0 0
    %444 = vmatpush1.bf16.msra.mxu0 0
    %445 = vmatprep.subr.bf16.mxu0 0
    %446 = vmatpush1.bf16.msra.mxu0 0
    %447 = vmatprep.subr.bf16.mxu0 0
    %448 = vmatpush1.bf16.msra.mxu0 0
    %449 = vmatprep.subr.bf16.mxu0 0
    %450 = vmatpush1.bf16.msra.mxu0 0
    %451 = vmatprep.mubr.bf16.mxu0 0
    %452 = vmatmul.mubr.bf16.gmra.mrb[0].mxu0 %v417
    %v453 = vpop.f32.mrb[0].mxu0
    %v454 = vadd.f32 %v390, %v453
    %v455 = vpop.f32.mrb[0].mxu0
    %v456 = vpop.f32.mrb[0].mxu0
    %v457 = vpop.f32.mrb[0].mxu0
    %458 = vdwg.mxu0
    %v459 = vtanh.pop %v454
    %461 = vrot.lane.b32.xlu0 %v130, 16
    %v462 = vpop.permute.xlu0 %461
    %v464 = vmul.f32 %v459, %v462
    %v465 = vpack.c.bf16 %v464, %v464
    %467 = vrot.lane.b32.xlu0 %v465, 112
    %v468 = vpop.permute.xlu0 %467
    %v470 = vsel %vm169, %v468, 0
    %472 = vmatprep.subr.bf16.mxu0 0
    %473 = vmatpush1.bf16.msra.mxu0 %v161
    %474 = vmatprep.subr.bf16.mxu0 0
    %475 = vmatpush1.bf16.msra.mxu0 %v162
    %476 = vmatprep.subr.bf16.mxu0 0
    %477 = vmatpush1.bf16.msra.mxu0 %v163
    %478 = vmatprep.subr.bf16.mxu0 0
    %479 = vmatpush1.bf16.msra.mxu0 %v164
    %480 = vmatprep.subr.bf16.mxu0 0
    %481 = vmatpush1.bf16.msra.mxu0 0
    %482 = vmatprep.subr.bf16.mxu0 0
    %483 = vmatpush1.bf16.msra.mxu0 0
    %484 = vmatprep.subr.bf16.mxu0 0
    %485 = vmatpush1.bf16.msra.mxu0 0
    %486 = vmatprep.subr.bf16.mxu0 0
    %487 = vmatpush1.bf16.msra.mxu0 0
    %488 = vmatprep.subr.bf16.mxu0 0
    %489 = vmatpush1.bf16.msra.mxu0 0
    %490 = vmatprep.subr.bf16.mxu0 0
    %491 = vmatpush1.bf16.msra.mxu0 0
    %492 = vmatprep.subr.bf16.mxu0 0
    %493 = vmatpush1.bf16.msra.mxu0 0
    %494 = vmatprep.subr.bf16.mxu0 0
    %495 = vmatpush1.bf16.msra.mxu0 0
    %496 = vmatprep.subr.bf16.mxu0 0
    %497 = vmatpush1.bf16.msra.mxu0 0
    %498 = vmatprep.subr.bf16.mxu0 0
    %499 = vmatpush1.bf16.msra.mxu0 0
    %500 = vmatprep.subr.bf16.mxu0 0
    %501 = vmatpush1.bf16.msra.mxu0 0
    %502 = vmatprep.subr.bf16.mxu0 0
    %503 = vmatpush1.bf16.msra.mxu0 0
    %504 = vmatprep.mubr.bf16.mxu0 0
    %505 = vmatmul.mubr.bf16.gmra.mrb[0].mxu0 %v470
    %v506 = vpop.f32.mrb[0].mxu0
    %v507 = vadd.f32 0.0, %v506
    %v508 = vpop.f32.mrb[0].mxu0
    %v509 = vpop.f32.mrb[0].mxu0
    %v510 = vpop.f32.mrb[0].mxu0
    %511 = vdwg.mxu0
    %s512 = smul.f32 %s83, 0.5
    %v513 = vadd.f32 %v81, %v459
    %v514 = vstv %s512
    %v515 = vmul.f32 %v514, %v513
    %v516 = vadd.f32 %v79, %v515
    %v517 = vadd.f32 %v208, %v507
    %v518 = vmul.f32 %v517, 0.5
    %v519 = vadd.f32 %v516, %v518
    %520 = vst.msk [vmem:[#allocation11] sm:$0xff] %vm232, %v519
    %s521 = sadd.s32 %s68, 1
    %s522 = sld [smem:[#allocation9 + %s521]]
    %s523 = scalar_lea.vmem %s2, 8
    %v524 = vld [vmem:[%s523] sm:$0xff]
    %v525 = vpack.c.bf16 %v524, %v524
    %v526 = vld [vmem:[%s10] sm:$0x3]
    %v528 = vsel %vm87, %v525, 0
    %v531 = vsel %vm91, %v526, 0
    %533 = vmatprep.subr.bf16.mxu0 0
    %534 = vmatpush1.bf16.msra.mxu0 %v531
    %535 = vmatprep.subr.bf16.mxu0 0
    %536 = vmatpush1.bf16.msra.mxu0 0
    %537 = vmatprep.subr.bf16.mxu0 0
    %538 = vmatpush1.bf16.msra.mxu0 0
    %539 = vmatprep.subr.bf16.mxu0 0
    %540 = vmatpush1.bf16.msra.mxu0 0
    %541 = vmatprep.subr.bf16.mxu0 0
    %542 = vmatpush1.bf16.msra.mxu0 0
    %543 = vmatprep.subr.bf16.mxu0 0
    %544 = vmatpush1.bf16.msra.mxu0 0
    %545 = vmatprep.subr.bf16.mxu0 0
    %546 = vmatpush1.bf16.msra.mxu0 0
    %547 = vmatprep.subr.bf16.mxu0 0
    %548 = vmatpush1.bf16.msra.mxu0 0
    %549 = vmatprep.subr.bf16.mxu0 0
    %550 = vmatpush1.bf16.msra.mxu0 0
    %551 = vmatprep.subr.bf16.mxu0 0
    %552 = vmatpush1.bf16.msra.mxu0 0
    %553 = vmatprep.subr.bf16.mxu0 0
    %554 = vmatpush1.bf16.msra.mxu0 0
    %555 = vmatprep.subr.bf16.mxu0 0
    %556 = vmatpush1.bf16.msra.mxu0 0
    %557 = vmatprep.subr.bf16.mxu0 0
    %558 = vmatpush1.bf16.msra.mxu0 0
    %559 = vmatprep.subr.bf16.mxu0 0
    %560 = vmatpush1.bf16.msra.mxu0 0
    %561 = vmatprep.subr.bf16.mxu0 0
    %562 = vmatpush1.bf16.msra.mxu0 0
    %563 = vmatprep.subr.bf16.mxu0 0
    %564 = vmatpush1.bf16.msra.mxu0 0
    %565 = vmatprep.mubr.bf16.mxu0 0
    %566 = vmatmul.mubr.bf16.gmra.mrb[0].mxu0 %v528
    %v567 = vpop.f32.mrb[0].mxu0
    %v568 = vadd.f32 0.0, %v567
    %v569 = vpop.f32.mrb[0].mxu0
    %v570 = vpop.f32.mrb[0].mxu0
    %v571 = vpop.f32.mrb[0].mxu0
    %572 = vdwg.mxu0
    %574 = vrot.lane.b32.xlu0 %v568, 16
    %v575 = vpop.permute.xlu0 %574
    %v577 = vmul.f32 %v459, %v575
    %v578 = vpack.c.bf16 %v577, %v577
    %v579 = vld [vmem:[%s11] sm:$0xf]
    %v580 = vld [vmem:[%s11 + $0x4] sm:$0xf]
    %v581 = vld [vmem:[%s11 + $0x8] sm:$0xf]
    %v582 = vld [vmem:[%s11 + $0xc] sm:$0xf]
    %v583 = vld [vmem:[%s11 + $0x10] sm:$0xf]
    %v584 = vld [vmem:[%s11 + $0x14] sm:$0xf]
    %v585 = vld [vmem:[%s11 + $0x18] sm:$0xf]
    %v586 = vld [vmem:[%s11 + $0x1c] sm:$0xf]
    %588 = vrot.lane.b32.xlu0 %v578, 112
    %v589 = vpop.permute.xlu0 %588
    %v598 = vunpack.c.l.b16 %v579
    %v599 = vunpack.c.l.b16 %v580
    %v600 = vunpack.c.l.b16 %v581
    %v601 = vunpack.c.l.b16 %v582
    %v602 = vunpack.c.l.b16 %v583
    %v603 = vunpack.c.l.b16 %v584
    %v604 = vunpack.c.l.b16 %v585
    %v605 = vunpack.c.l.b16 %v586
    %v606 = vpack.c.b16 %v599, %v598
    %v607 = vpack.c.b16 %v601, %v600
    %v608 = vpack.c.b16 %v603, %v602
    %v609 = vpack.c.b16 %v605, %v604
    %v615 = vsel %vm169, %v589, 0
    %617 = vmatprep.subr.bf16.mxu0 0
    %618 = vmatpush1.bf16.msra.mxu0 %v606
    %619 = vmatprep.subr.bf16.mxu0 0
    %620 = vmatpush1.bf16.msra.mxu0 %v607
    %621 = vmatprep.subr.bf16.mxu0 0
    %622 = vmatpush1.bf16.msra.mxu0 %v608
    %623 = vmatprep.subr.bf16.mxu0 0
    %624 = vmatpush1.bf16.msra.mxu0 %v609
    %625 = vmatprep.subr.bf16.mxu0 0
    %626 = vmatpush1.bf16.msra.mxu0 0
    %627 = vmatprep.subr.bf16.mxu0 0
    %628 = vmatpush1.bf16.msra.mxu0 0
    %629 = vmatprep.subr.bf16.mxu0 0
    %630 = vmatpush1.bf16.msra.mxu0 0
    %631 = vmatprep.subr.bf16.mxu0 0
    %632 = vmatpush1.bf16.msra.mxu0 0
    %633 = vmatprep.subr.bf16.mxu0 0
    %634 = vmatpush1.bf16.msra.mxu0 0
    %635 = vmatprep.subr.bf16.mxu0 0
    %636 = vmatpush1.bf16.msra.mxu0 0
    %637 = vmatprep.subr.bf16.mxu0 0
    %638 = vmatpush1.bf16.msra.mxu0 0
    %639 = vmatprep.subr.bf16.mxu0 0
    %640 = vmatpush1.bf16.msra.mxu0 0
    %641 = vmatprep.subr.bf16.mxu0 0
    %642 = vmatpush1.bf16.msra.mxu0 0
    %643 = vmatprep.subr.bf16.mxu0 0
    %644 = vmatpush1.bf16.msra.mxu0 0
    %645 = vmatprep.subr.bf16.mxu0 0
    %646 = vmatpush1.bf16.msra.mxu0 0
    %647 = vmatprep.subr.bf16.mxu0 0
    %648 = vmatpush1.bf16.msra.mxu0 0
    %649 = vmatprep.mubr.bf16.mxu0 0
    %650 = vmatmul.mubr.bf16.gmra.mrb[0].mxu0 %v615
    %v651 = vpop.f32.mrb[0].mxu0
    %v652 = vadd.f32 0.0, %v651
    %v653 = vpop.f32.mrb[0].mxu0
    %v654 = vpop.f32.mrb[0].mxu0
    %v655 = vpop.f32.mrb[0].mxu0
    %656 = vdwg.mxu0
    %v657 = vmul.f32 %v519, 2.0
    %v658 = vsub.f32 %v657, %v218
    %v659 = vstv %s522
    %v660 = vmul.f32 %v459, %v659
    %v661 = vadd.f32 %v658, %v660
    %v662 = vadd.f32 %v661, %v652
    %s663 = sld [smem:[#allocation6 + %s521]]
    %v664 = vld [vmem:[%s3] sm:$0x1]
    %v665 = vstv %s663
    %v666 = vmul.f32 %v665, %v664
    %v667 = vpack.c.bf16 %v662, %v662
    %v668 = vld [vmem:[%s4] sm:$0xf]
    %v669 = vld [vmem:[%s4 + $0x4] sm:$0xf]
    %v672 = vunpack.c.l.b16 %v668
    %v673 = vunpack.c.l.b16 %v669
    %v674 = vpack.c.b16 %v673, %v672
    %v677 = vsel %vm232, %v667, 0
    %679 = vmatprep.subr.bf16.mxu0 0
    %680 = vmatpush1.bf16.msra.mxu0 %v674
    %681 = vmatprep.subr.bf16.mxu0 0
    %682 = vmatpush1.bf16.msra.mxu0 0
    %683 = vmatprep.subr.bf16.mxu0 0
    %684 = vmatpush1.bf16.msra.mxu0 0
    %685 = vmatprep.subr.bf16.mxu0 0
    %686 = vmatpush1.bf16.msra.mxu0 0
    %687 = vmatprep.subr.bf16.mxu0 0
    %688 = vmatpush1.bf16.msra.mxu0 0
    %689 = vmatprep.subr.bf16.mxu0 0
    %690 = vmatpush1.bf16.msra.mxu0 0
    %691 = vmatprep.subr.bf16.mxu0 0
    %692 = vmatpush1.bf16.msra.mxu0 0
    %693 = vmatprep.subr.bf16.mxu0 0
    %694 = vmatpush1.bf16.msra.mxu0 0
    %695 = vmatprep.subr.bf16.mxu0 0
    %696 = vmatpush1.bf16.msra.mxu0 0
    %697 = vmatprep.subr.bf16.mxu0 0
    %698 = vmatpush1.bf16.msra.mxu0 0
    %699 = vmatprep.subr.bf16.mxu0 0
    %700 = vmatpush1.bf16.msra.mxu0 0
    %701 = vmatprep.subr.bf16.mxu0 0
    %702 = vmatpush1.bf16.msra.mxu0 0
    %703 = vmatprep.subr.bf16.mxu0 0
    %704 = vmatpush1.bf16.msra.mxu0 0
    %705 = vmatprep.subr.bf16.mxu0 0
    %706 = vmatpush1.bf16.msra.mxu0 0
    %707 = vmatprep.subr.bf16.mxu0 0
    %708 = vmatpush1.bf16.msra.mxu0 0
    %709 = vmatprep.subr.bf16.mxu0 0
    %710 = vmatpush1.bf16.msra.mxu0 0
    %711 = vmatprep.mubr.bf16.mxu0 0
    %712 = vmatmul.mubr.bf16.gmra.mrb[0].mxu0 %v677
    %v713 = vpop.f32.mrb[0].mxu0
    %v714 = vadd.f32 0.0, %v713
    %v715 = vpop.f32.mrb[0].mxu0
    %v716 = vpop.f32.mrb[0].mxu0
    %v717 = vpop.f32.mrb[0].mxu0
    %718 = vdwg.mxu0
    %v720 = vlaneseq
    %v721 = vshrl.u32 %v720, 7
    %v722 = vsub.s32 0, %v721
    %v723 = vrot.slane %v666, %v722
    %v725 = vadd.f32 %v723, %v714
    %v726 = vld [vmem:[%s5] sm:$0x1]
    %v728 = vlaneseq
    %v729 = vshrl.u32 %v728, 7
    %v730 = vsub.s32 0, %v729
    %v731 = vrot.slane %v726, %v730
    %v733 = vadd.f32 %v725, %v731
    %v734 = vmax.f32 %v733, 0.0
    %v735 = vpack.c.bf16 %v734, %v734
    %v736 = vld [vmem:[%s6] sm:$0xf]
    %v737 = vld [vmem:[%s6 + $0x4] sm:$0xf]
    %v738 = vld [vmem:[%s6 + $0x8] sm:$0xf]
    %v739 = vld [vmem:[%s6 + $0xc] sm:$0xf]
    %v740 = vld [vmem:[%s6 + $0x10] sm:$0xf]
    %v741 = vld [vmem:[%s6 + $0x14] sm:$0xf]
    %v742 = vld [vmem:[%s6 + $0x18] sm:$0xf]
    %v743 = vld [vmem:[%s6 + $0x1c] sm:$0xf]
    %v744 = vld [vmem:[%s7] sm:$0x1]
    %v746 = vlaneseq
    %v747 = vshrl.u32 %v746, 7
    %v748 = vsub.s32 0, %v747
    %v749 = vrot.slane %v744, %v748
    %v759 = vunpack.c.l.b16 %v736
    %v760 = vunpack.c.l.b16 %v737
    %v761 = vunpack.c.l.b16 %v738
    %v762 = vunpack.c.l.b16 %v739
    %v763 = vunpack.c.l.b16 %v740
    %v764 = vunpack.c.l.b16 %v741
    %v765 = vunpack.c.l.b16 %v742
    %v766 = vunpack.c.l.b16 %v743
    %v767 = vpack.c.b16 %v760, %v759
    %v768 = vpack.c.b16 %v762, %v761
    %v769 = vpack.c.b16 %v764, %v763
    %v770 = vpack.c.b16 %v766, %v765
    %v776 = vsel %vm169, %v735, 0
    %778 = vmatprep.subr.bf16.mxu0 0
    %779 = vmatpush1.bf16.msra.mxu0 %v767
    %780 = vmatprep.subr.bf16.mxu0 0
    %781 = vmatpush1.bf16.msra.mxu0 %v768
    %782 = vmatprep.subr.bf16.mxu0 0
    %783 = vmatpush1.bf16.msra.mxu0 %v769
    %784 = vmatprep.subr.bf16.mxu0 0
    %785 = vmatpush1.bf16.msra.mxu0 %v770
    %786 = vmatprep.subr.bf16.mxu0 0
    %787 = vmatpush1.bf16.msra.mxu0 0
    %788 = vmatprep.subr.bf16.mxu0 0
    %789 = vmatpush1.bf16.msra.mxu0 0
    %790 = vmatprep.subr.bf16.mxu0 0
    %791 = vmatpush1.bf16.msra.mxu0 0
    %792 = vmatprep.subr.bf16.mxu0 0
    %793 = vmatpush1.bf16.msra.mxu0 0
    %794 = vmatprep.subr.bf16.mxu0 0
    %795 = vmatpush1.bf16.msra.mxu0 0
    %796 = vmatprep.subr.bf16.mxu0 0
    %797 = vmatpush1.bf16.msra.mxu0 0
    %798 = vmatprep.subr.bf16.mxu0 0
    %799 = vmatpush1.bf16.msra.mxu0 0
    %800 = vmatprep.subr.bf16.mxu0 0
    %801 = vmatpush1.bf16.msra.mxu0 0
    %802 = vmatprep.subr.bf16.mxu0 0
    %803 = vmatpush1.bf16.msra.mxu0 0
    %804 = vmatprep.subr.bf16.mxu0 0
    %805 = vmatpush1.bf16.msra.mxu0 0
    %806 = vmatprep.subr.bf16.mxu0 0
    %807 = vmatpush1.bf16.msra.mxu0 0
    %808 = vmatprep.subr.bf16.mxu0 0
    %809 = vmatpush1.bf16.msra.mxu0 0
    %810 = vmatprep.mubr.bf16.mxu0 0
    %811 = vmatmul.mubr.bf16.gmra.mrb[0].mxu0 %v776
    %v812 = vpop.f32.mrb[0].mxu0
    %v813 = vadd.f32 %v749, %v812
    %v814 = vpop.f32.mrb[0].mxu0
    %v815 = vpop.f32.mrb[0].mxu0
    %v816 = vpop.f32.mrb[0].mxu0
    %817 = vdwg.mxu0
    %v818 = vmax.f32 %v813, 0.0
    %v819 = vpack.c.bf16 %v818, %v818
    %v820 = vld [vmem:[%s8] sm:$0xf]
    %v821 = vld [vmem:[%s8 + $0x4] sm:$0xf]
    %v822 = vld [vmem:[%s8 + $0x8] sm:$0xf]
    %v823 = vld [vmem:[%s8 + $0xc] sm:$0xf]
    %v824 = vld [vmem:[%s8 + $0x10] sm:$0xf]
    %v825 = vld [vmem:[%s8 + $0x14] sm:$0xf]
    %v826 = vld [vmem:[%s8 + $0x18] sm:$0xf]
    %v827 = vld [vmem:[%s8 + $0x1c] sm:$0xf]
    %v828 = vld [vmem:[%s9] sm:$0x1]
    %v830 = vlaneseq
    %v831 = vshrl.u32 %v830, 7
    %v832 = vsub.s32 0, %v831
    %v833 = vrot.slane %v828, %v832
    %v843 = vunpack.c.l.b16 %v820
    %v844 = vunpack.c.l.b16 %v821
    %v845 = vunpack.c.l.b16 %v822
    %v846 = vunpack.c.l.b16 %v823
    %v847 = vunpack.c.l.b16 %v824
    %v848 = vunpack.c.l.b16 %v825
    %v849 = vunpack.c.l.b16 %v826
    %v850 = vunpack.c.l.b16 %v827
    %v851 = vpack.c.b16 %v844, %v843
    %v852 = vpack.c.b16 %v846, %v845
    %v853 = vpack.c.b16 %v848, %v847
    %v854 = vpack.c.b16 %v850, %v849
    %v860 = vsel %vm169, %v819, 0
    %862 = vmatprep.subr.bf16.mxu0 0
    %863 = vmatpush1.bf16.msra.mxu0 %v851
    %864 = vmatprep.subr.bf16.mxu0 0
    %865 = vmatpush1.bf16.msra.mxu0 %v852
    %866 = vmatprep.subr.bf16.mxu0 0
    %867 = vmatpush1.bf16.msra.mxu0 %v853
    %868 = vmatprep.subr.bf16.mxu0 0
    %869 = vmatpush1.bf16.msra.mxu0 %v854
    %870 = vmatprep.subr.bf16.mxu0 0
    %871 = vmatpush1.bf16.msra.mxu0 0
    %872 = vmatprep.subr.bf16.mxu0 0
    %873 = vmatpush1.bf16.msra.mxu0 0
    %874 = vmatprep.subr.bf16.mxu0 0
    %875 = vmatpush1.bf16.msra.mxu0 0
    %876 = vmatprep.subr.bf16.mxu0 0
    %877 = vmatpush1.bf16.msra.mxu0 0
    %878 = vmatprep.subr.bf16.mxu0 0
    %879 = vmatpush1.bf16.msra.mxu0 0
    %880 = vmatprep.subr.bf16.mxu0 0
    %881 = vmatpush1.bf16.msra.mxu0 0
    %882 = vmatprep.subr.bf16.mxu0 0
    %883 = vmatpush1.bf16.msra.mxu0 0
    %884 = vmatprep.subr.bf16.mxu0 0
    %885 = vmatpush1.bf16.msra.mxu0 0
    %886 = vmatprep.subr.bf16.mxu0 0
    %887 = vmatpush1.bf16.msra.mxu0 0
    %888 = vmatprep.subr.bf16.mxu0 0
    %889 = vmatpush1.bf16.msra.mxu0 0
    %890 = vmatprep.subr.bf16.mxu0 0
    %891 = vmatpush1.bf16.msra.mxu0 0
    %892 = vmatprep.subr.bf16.mxu0 0
    %893 = vmatpush1.bf16.msra.mxu0 0
    %894 = vmatprep.mubr.bf16.mxu0 0
    %895 = vmatmul.mubr.bf16.gmra.mrb[0].mxu0 %v860
    %v896 = vpop.f32.mrb[0].mxu0
    %v897 = vadd.f32 %v833, %v896
    %v898 = vpop.f32.mrb[0].mxu0
    %v899 = vpop.f32.mrb[0].mxu0
    %v900 = vpop.f32.mrb[0].mxu0
    %901 = vdwg.mxu0
    %v902 = vtanh.pop %v897
    %v903 = vmul.f32 %v902, %v575
    %v904 = vpack.c.bf16 %v903, %v903
    %906 = vrot.lane.b32.xlu0 %v904, 112
    %v907 = vpop.permute.xlu0 %906
    %v909 = vsel %vm169, %v907, 0
    %911 = vmatprep.subr.bf16.mxu0 0
    %912 = vmatpush1.bf16.msra.mxu0 %v606
    %913 = vmatprep.subr.bf16.mxu0 0
    %914 = vmatpush1.bf16.msra.mxu0 %v607
    %915 = vmatprep.subr.bf16.mxu0 0
    %916 = vmatpush1.bf16.msra.mxu0 %v608
    %917 = vmatprep.subr.bf16.mxu0 0
    %918 = vmatpush1.bf16.msra.mxu0 %v609
    %919 = vmatprep.subr.bf16.mxu0 0
    %920 = vmatpush1.bf16.msra.mxu0 0
    %921 = vmatprep.subr.bf16.mxu0 0
    %922 = vmatpush1.bf16.msra.mxu0 0
    %923 = vmatprep.subr.bf16.mxu0 0
    %924 = vmatpush1.bf16.msra.mxu0 0
    %925 = vmatprep.subr.bf16.mxu0 0
    %926 = vmatpush1.bf16.msra.mxu0 0
    %927 = vmatprep.subr.bf16.mxu0 0
    %928 = vmatpush1.bf16.msra.mxu0 0
    %929 = vmatprep.subr.bf16.mxu0 0
    %930 = vmatpush1.bf16.msra.mxu0 0
    %931 = vmatprep.subr.bf16.mxu0 0
    %932 = vmatpush1.bf16.msra.mxu0 0
    %933 = vmatprep.subr.bf16.mxu0 0
    %934 = vmatpush1.bf16.msra.mxu0 0
    %935 = vmatprep.subr.bf16.mxu0 0
    %936 = vmatpush1.bf16.msra.mxu0 0
    %937 = vmatprep.subr.bf16.mxu0 0
    %938 = vmatpush1.bf16.msra.mxu0 0
    %939 = vmatprep.subr.bf16.mxu0 0
    %940 = vmatpush1.bf16.msra.mxu0 0
    %941 = vmatprep.subr.bf16.mxu0 0
    %942 = vmatpush1.bf16.msra.mxu0 0
    %943 = vmatprep.mubr.bf16.mxu0 0
    %944 = vmatmul.mubr.bf16.gmra.mrb[0].mxu0 %v909
    %v945 = vpop.f32.mrb[0].mxu0
    %v946 = vadd.f32 0.0, %v945
    %v947 = vpop.f32.mrb[0].mxu0
    %v948 = vpop.f32.mrb[0].mxu0
    %v949 = vpop.f32.mrb[0].mxu0
    %950 = vdwg.mxu0
    %s951 = smul.f32 %s522, 0.5
    %v952 = vadd.f32 %v459, %v902
    %v953 = vstv %s951
    %v954 = vmul.f32 %v953, %v952
    %v955 = vadd.f32 %v519, %v954
    %v956 = vadd.f32 %v652, %v946
    %v957 = vmul.f32 %v956, 0.5
    %v958 = vadd.f32 %v955, %v957
    %s959 = scalar_lea.vmem [#allocation11], 8
    %960 = vst.msk [vmem:[%s959] sm:$0xff] %vm232, %v958
    %s961 = sadd.s32 %s68, 2
    %s962 = sld [smem:[#allocation9 + %s961]]
    %s963 = scalar_lea.vmem %s2, 16
    %v964 = vld [vmem:[%s963] sm:$0xff]
    %v965 = vpack.c.bf16 %v964, %v964
    %v966 = vld [vmem:[%s10] sm:$0x3]
    %v968 = vsel %vm87, %v965, 0
    %v971 = vsel %vm91, %v966, 0
    %973 = vmatprep.subr.bf16.mxu0 0
    %974 = vmatpush1.bf16.msra.mxu0 %v971
    %975 = vmatprep.subr.bf16.mxu0 0
    %976 = vmatpush1.bf16.msra.mxu0 0
    %977 = vmatprep.subr.bf16.mxu0 0
    %978 = vmatpush1.bf16.msra.mxu0 0
    %979 = vmatprep.subr.bf16.mxu0 0
    %980 = vmatpush1.bf16.msra.mxu0 0
    %981 = vmatprep.subr.bf16.mxu0 0
    %982 = vmatpush1.bf16.msra.mxu0 0
    %983 = vmatprep.subr.bf16.mxu0 0
    %984 = vmatpush1.bf16.msra.mxu0 0
    %985 = vmatprep.subr.bf16.mxu0 0
    %986 = vmatpush1.bf16.msra.mxu0 0
    %987 = vmatprep.subr.bf16.mxu0 0
    %988 = vmatpush1.bf16.msra.mxu0 0
    %989 = vmatprep.subr.bf16.mxu0 0
    %990 = vmatpush1.bf16.msra.mxu0 0
    %991 = vmatprep.subr.bf16.mxu0 0
    %992 = vmatpush1.bf16.msra.mxu0 0
    %993 = vmatprep.subr.bf16.mxu0 0
    %994 = vmatpush1.bf16.msra.mxu0 0
    %995 = vmatprep.subr.bf16.mxu0 0
    %996 = vmatpush1.bf16.msra.mxu0 0
    %997 = vmatprep.subr.bf16.mxu0 0
    %998 = vmatpush1.bf16.msra.mxu0 0
    %999 = vmatprep.subr.bf16.mxu0 0
    %1000 = vmatpush1.bf16.msra.mxu0 0
    %1001 = vmatprep.subr.bf16.mxu0 0
    %1002 = vmatpush1.bf16.msra.mxu0 0
    %1003 = vmatprep.subr.bf16.mxu0 0
    %1004 = vmatpush1.bf16.msra.mxu0 0
    %1005 = vmatprep.mubr.bf16.mxu0 0
    %1006 = vmatmul.mubr.bf16.gmra.mrb[0].mxu0 %v968
    %v1007 = vpop.f32.mrb[0].mxu0
    %v1008 = vadd.f32 0.0, %v1007
    %v1009 = vpop.f32.mrb[0].mxu0
    %v1010 = vpop.f32.mrb[0].mxu0
    %v1011 = vpop.f32.mrb[0].mxu0
    %1012 = vdwg.mxu0
    %1014 = vrot.lane.b32.xlu0 %v1008, 16
    %v1015 = vpop.permute.xlu0 %1014
    %v1017 = vmul.f32 %v902, %v1015
    %v1018 = vpack.c.bf16 %v1017, %v1017
    %v1019 = vld [vmem:[%s11] sm:$0xf]
    %v1020 = vld [vmem:[%s11 + $0x4] sm:$0xf]
    %v1021 = vld [vmem:[%s11 + $0x8] sm:$0xf]
    %v1022 = vld [vmem:[%s11 + $0xc] sm:$0xf]
    %v1023 = vld [vmem:[%s11 + $0x10] sm:$0xf]
    %v1024 = vld [vmem:[%s11 + $0x14] sm:$0xf]
    %v1025 = vld [vmem:[%s11 + $0x18] sm:$0xf]
    %v1026 = vld [vmem:[%s11 + $0x1c] sm:$0xf]
    %1028 = vrot.lane.b32.xlu0 %v1018, 112
    %v1029 = vpop.permute.xlu0 %1028
    %v1038 = vunpack.c.l.b16 %v1019
    %v1039 = vunpack.c.l.b16 %v1020
    %v1040 = vunpack.c.l.b16 %v1021
    %v1041 = vunpack.c.l.b16 %v1022
    %v1042 = vunpack.c.l.b16 %v1023
    %v1043 = vunpack.c.l.b16 %v1024
    %v1044 = vunpack.c.l.b16 %v1025
    %v1045 = vunpack.c.l.b16 %v1026
    %v1046 = vpack.c.b16 %v1039, %v1038
    %v1047 = vpack.c.b16 %v1041, %v1040
    %v1048 = vpack.c.b16 %v1043, %v1042
    %v1049 = vpack.c.b16 %v1045, %v1044
    %v1055 = vsel %vm169, %v1029, 0
    %1057 = vmatprep.subr.bf16.mxu0 0
    %1058 = vmatpush1.bf16.msra.mxu0 %v1046
    %1059 = vmatprep.subr.bf16.mxu0 0
    %1060 = vmatpush1.bf16.msra.mxu0 %v1047
    %1061 = vmatprep.subr.bf16.mxu0 0
    %1062 = vmatpush1.bf16.msra.mxu0 %v1048
    %1063 = vmatprep.subr.bf16.mxu0 0
    %1064 = vmatpush1.bf16.msra.mxu0 %v1049
    %1065 = vmatprep.subr.bf16.mxu0 0
    %1066 = vmatpush1.bf16.msra.mxu0 0
    %1067 = vmatprep.subr.bf16.mxu0 0
    %1068 = vmatpush1.bf16.msra.mxu0 0
    %1069 = vmatprep.subr.bf16.mxu0 0
    %1070 = vmatpush1.bf16.msra.mxu0 0
    %1071 = vmatprep.subr.bf16.mxu0 0
    %1072 = vmatpush1.bf16.msra.mxu0 0
    %1073 = vmatprep.subr.bf16.mxu0 0
    %1074 = vmatpush1.bf16.msra.mxu0 0
    %1075 = vmatprep.subr.bf16.mxu0 0
    %1076 = vmatpush1.bf16.msra.mxu0 0
    %1077 = vmatprep.subr.bf16.mxu0 0
    %1078 = vmatpush1.bf16.msra.mxu0 0
    %1079 = vmatprep.subr.bf16.mxu0 0
    %1080 = vmatpush1.bf16.msra.mxu0 0
    %1081 = vmatprep.subr.bf16.mxu0 0
    %1082 = vmatpush1.bf16.msra.mxu0 0
    %1083 = vmatprep.subr.bf16.mxu0 0
    %1084 = vmatpush1.bf16.msra.mxu0 0
    %1085 = vmatprep.subr.bf16.mxu0 0
    %1086 = vmatpush1.bf16.msra.mxu0 0
    %1087 = vmatprep.subr.bf16.mxu0 0
    %1088 = vmatpush1.bf16.msra.mxu0 0
    %1089 = vmatprep.mubr.bf16.mxu0 0
    %1090 = vmatmul.mubr.bf16.gmra.mrb[0].mxu0 %v1055
    %v1091 = vpop.f32.mrb[0].mxu0
    %v1092 = vadd.f32 0.0, %v1091
    %v1093 = vpop.f32.mrb[0].mxu0
    %v1094 = vpop.f32.mrb[0].mxu0
    %v1095 = vpop.f32.mrb[0].mxu0
    %1096 = vdwg.mxu0
    %v1097 = vmul.f32 %v958, 2.0
    %v1098 = vsub.f32 %v1097, %v662
    %v1099 = vstv %s962
    %v1100 = vmul.f32 %v902, %v1099
    %v1101 = vadd.f32 %v1098, %v1100
    %v1102 = vadd.f32 %v1101, %v1092
    %s1103 = sld [smem:[#allocation6 + %s961]]
    %v1104 = vld [vmem:[%s3] sm:$0x1]
    %v1105 = vstv %s1103
    %v1106 = vmul.f32 %v1105, %v1104
    %v1107 = vpack.c.bf16 %v1102, %v1102
    %v1108 = vld [vmem:[%s4] sm:$0xf]
    %v1109 = vld [vmem:[%s4 + $0x4] sm:$0xf]
    %v1112 = vunpack.c.l.b16 %v1108
    %v1113 = vunpack.c.l.b16 %v1109
    %v1114 = vpack.c.b16 %v1113, %v1112
    %v1117 = vsel %vm232, %v1107, 0
    %1119 = vmatprep.subr.bf16.mxu0 0
    %1120 = vmatpush1.bf16.msra.mxu0 %v1114
    %1121 = vmatprep.subr.bf16.mxu0 0
    %1122 = vmatpush1.bf16.msra.mxu0 0
    %1123 = vmatprep.subr.bf16.mxu0 0
    %1124 = vmatpush1.bf16.msra.mxu0 0
    %1125 = vmatprep.subr.bf16.mxu0 0
    %1126 = vmatpush1.bf16.msra.mxu0 0
    %1127 = vmatprep.subr.bf16.mxu0 0
    %1128 = vmatpush1.bf16.msra.mxu0 0
    %1129 = vmatprep.subr.bf16.mxu0 0
    %1130 = vmatpush1.bf16.msra.mxu0 0
    %1131 = vmatprep.subr.bf16.mxu0 0
    %1132 = vmatpush1.bf16.msra.mxu0 0
    %1133 = vmatprep.subr.bf16.mxu0 0
    %1134 = vmatpush1.bf16.msra.mxu0 0
    %1135 = vmatprep.subr.bf16.mxu0 0
    %1136 = vmatpush1.bf16.msra.mxu0 0
    %1137 = vmatprep.subr.bf16.mxu0 0
    %1138 = vmatpush1.bf16.msra.mxu0 0
    %1139 = vmatprep.subr.bf16.mxu0 0
    %1140 = vmatpush1.bf16.msra.mxu0 0
    %1141 = vmatprep.subr.bf16.mxu0 0
    %1142 = vmatpush1.bf16.msra.mxu0 0
    %1143 = vmatprep.subr.bf16.mxu0 0
    %1144 = vmatpush1.bf16.msra.mxu0 0
    %1145 = vmatprep.subr.bf16.mxu0 0
    %1146 = vmatpush1.bf16.msra.mxu0 0
    %1147 = vmatprep.subr.bf16.mxu0 0
    %1148 = vmatpush1.bf16.msra.mxu0 0
    %1149 = vmatprep.subr.bf16.mxu0 0
    %1150 = vmatpush1.bf16.msra.mxu0 0
    %1151 = vmatprep.mubr.bf16.mxu0 0
    %1152 = vmatmul.mubr.bf16.gmra.mrb[0].mxu0 %v1117
    %v1153 = vpop.f32.mrb[0].mxu0
    %v1154 = vadd.f32 0.0, %v1153
    %v1155 = vpop.f32.mrb[0].mxu0
    %v1156 = vpop.f32.mrb[0].mxu0
    %v1157 = vpop.f32.mrb[0].mxu0
    %1158 = vdwg.mxu0
    %v1160 = vlaneseq
    %v1161 = vshrl.u32 %v1160, 7
    %v1162 = vsub.s32 0, %v1161
    %v1163 = vrot.slane %v1106, %v1162
    %v1165 = vadd.f32 %v1163, %v1154
    %v1166 = vld [vmem:[%s5] sm:$0x1]
    %v1168 = vlaneseq
    %v1169 = vshrl.u32 %v1168, 7
    %v1170 = vsub.s32 0, %v1169
    %v1171 = vrot.slane %v1166, %v1170
    %v1173 = vadd.f32 %v1165, %v1171
    %v1174 = vmax.f32 %v1173, 0.0
    %v1175 = vpack.c.bf16 %v1174, %v1174
    %v1176 = vld [vmem:[%s6] sm:$0xf]
    %v1177 = vld [vmem:[%s6 + $0x4] sm:$0xf]
    %v1178 = vld [vmem:[%s6 + $0x8] sm:$0xf]
    %v1179 = vld [vmem:[%s6 + $0xc] sm:$0xf]
    %v1180 = vld [vmem:[%s6 + $0x10] sm:$0xf]
    %v1181 = vld [vmem:[%s6 + $0x14] sm:$0xf]
    %v1182 = vld [vmem:[%s6 + $0x18] sm:$0xf]
    %v1183 = vld [vmem:[%s6 + $0x1c] sm:$0xf]
    %v1184 = vld [vmem:[%s7] sm:$0x1]
    %v1186 = vlaneseq
    %v1187 = vshrl.u32 %v1186, 7
    %v1188 = vsub.s32 0, %v1187
    %v1189 = vrot.slane %v1184, %v1188
    %v1199 = vunpack.c.l.b16 %v1176
    %v1200 = vunpack.c.l.b16 %v1177
    %v1201 = vunpack.c.l.b16 %v1178
    %v1202 = vunpack.c.l.b16 %v1179
    %v1203 = vunpack.c.l.b16 %v1180
    %v1204 = vunpack.c.l.b16 %v1181
    %v1205 = vunpack.c.l.b16 %v1182
    %v1206 = vunpack.c.l.b16 %v1183
    %v1207 = vpack.c.b16 %v1200, %v1199
    %v1208 = vpack.c.b16 %v1202, %v1201
    %v1209 = vpack.c.b16 %v1204, %v1203
    %v1210 = vpack.c.b16 %v1206, %v1205
    %v1216 = vsel %vm169, %v1175, 0
    %1218 = vmatprep.subr.bf16.mxu0 0
    %1219 = vmatpush1.bf16.msra.mxu0 %v1207
    %1220 = vmatprep.subr.bf16.mxu0 0
    %1221 = vmatpush1.bf16.msra.mxu0 %v1208
    %1222 = vmatprep.subr.bf16.mxu0 0
    %1223 = vmatpush1.bf16.msra.mxu0 %v1209
    %1224 = vmatprep.subr.bf16.mxu0 0
    %1225 = vmatpush1.bf16.msra.mxu0 %v1210
    %1226 = vmatprep.subr.bf16.mxu0 0
    %1227 = vmatpush1.bf16.msra.mxu0 0
    %1228 = vmatprep.subr.bf16.mxu0 0
    %1229 = vmatpush1.bf16.msra.mxu0 0
    %1230 = vmatprep.subr.bf16.mxu0 0
    %1231 = vmatpush1.bf16.msra.mxu0 0
    %1232 = vmatprep.subr.bf16.mxu0 0
    %1233 = vmatpush1.bf16.msra.mxu0 0
    %1234 = vmatprep.subr.bf16.mxu0 0
    %1235 = vmatpush1.bf16.msra.mxu0 0
    %1236 = vmatprep.subr.bf16.mxu0 0
    %1237 = vmatpush1.bf16.msra.mxu0 0
    %1238 = vmatprep.subr.bf16.mxu0 0
    %1239 = vmatpush1.bf16.msra.mxu0 0
    %1240 = vmatprep.subr.bf16.mxu0 0
    %1241 = vmatpush1.bf16.msra.mxu0 0
    %1242 = vmatprep.subr.bf16.mxu0 0
    %1243 = vmatpush1.bf16.msra.mxu0 0
    %1244 = vmatprep.subr.bf16.mxu0 0
    %1245 = vmatpush1.bf16.msra.mxu0 0
    %1246 = vmatprep.subr.bf16.mxu0 0
    %1247 = vmatpush1.bf16.msra.mxu0 0
    %1248 = vmatprep.subr.bf16.mxu0 0
    %1249 = vmatpush1.bf16.msra.mxu0 0
    %1250 = vmatprep.mubr.bf16.mxu0 0
    %1251 = vmatmul.mubr.bf16.gmra.mrb[0].mxu0 %v1216
    %v1252 = vpop.f32.mrb[0].mxu0
    %v1253 = vadd.f32 %v1189, %v1252
    %v1254 = vpop.f32.mrb[0].mxu0
    %v1255 = vpop.f32.mrb[0].mxu0
    %v1256 = vpop.f32.mrb[0].mxu0
    %1257 = vdwg.mxu0
    %v1258 = vmax.f32 %v1253, 0.0
    %v1259 = vpack.c.bf16 %v1258, %v1258
    %v1260 = vld [vmem:[%s8] sm:$0xf]
    %v1261 = vld [vmem:[%s8 + $0x4] sm:$0xf]
    %v1262 = vld [vmem:[%s8 + $0x8] sm:$0xf]
    %v1263 = vld [vmem:[%s8 + $0xc] sm:$0xf]
    %v1264 = vld [vmem:[%s8 + $0x10] sm:$0xf]
    %v1265 = vld [vmem:[%s8 + $0x14] sm:$0xf]
    %v1266 = vld [vmem:[%s8 + $0x18] sm:$0xf]
    %v1267 = vld [vmem:[%s8 + $0x1c] sm:$0xf]
    %v1268 = vld [vmem:[%s9] sm:$0x1]
    %v1270 = vlaneseq
    %v1271 = vshrl.u32 %v1270, 7
    %v1272 = vsub.s32 0, %v1271
    %v1273 = vrot.slane %v1268, %v1272
    %v1283 = vunpack.c.l.b16 %v1260
    %v1284 = vunpack.c.l.b16 %v1261
    %v1285 = vunpack.c.l.b16 %v1262
    %v1286 = vunpack.c.l.b16 %v1263
    %v1287 = vunpack.c.l.b16 %v1264
    %v1288 = vunpack.c.l.b16 %v1265
    %v1289 = vunpack.c.l.b16 %v1266
    %v1290 = vunpack.c.l.b16 %v1267
    %v1291 = vpack.c.b16 %v1284, %v1283
    %v1292 = vpack.c.b16 %v1286, %v1285
    %v1293 = vpack.c.b16 %v1288, %v1287
    %v1294 = vpack.c.b16 %v1290, %v1289
    %v1300 = vsel %vm169, %v1259, 0
    %1302 = vmatprep.subr.bf16.mxu0 0
    %1303 = vmatpush1.bf16.msra.mxu0 %v1291
    %1304 = vmatprep.subr.bf16.mxu0 0
    %1305 = vmatpush1.bf16.msra.mxu0 %v1292
    %1306 = vmatprep.subr.bf16.mxu0 0
    %1307 = vmatpush1.bf16.msra.mxu0 %v1293
    %1308 = vmatprep.subr.bf16.mxu0 0
    %1309 = vmatpush1.bf16.msra.mxu0 %v1294
    %1310 = vmatprep.subr.bf16.mxu0 0
    %1311 = vmatpush1.bf16.msra.mxu0 0
    %1312 = vmatprep.subr.bf16.mxu0 0
    %1313 = vmatpush1.bf16.msra.mxu0 0
    %1314 = vmatprep.subr.bf16.mxu0 0
    %1315 = vmatpush1.bf16.msra.mxu0 0
    %1316 = vmatprep.subr.bf16.mxu0 0
    %1317 = vmatpush1.bf16.msra.mxu0 0
    %1318 = vmatprep.subr.bf16.mxu0 0
    %1319 = vmatpush1.bf16.msra.mxu0 0
    %1320 = vmatprep.subr.bf16.mxu0 0
    %1321 = vmatpush1.bf16.msra.mxu0 0
    %1322 = vmatprep.subr.bf16.mxu0 0
    %1323 = vmatpush1.bf16.msra.mxu0 0
    %1324 = vmatprep.subr.bf16.mxu0 0
    %1325 = vmatpush1.bf16.msra.mxu0 0
    %1326 = vmatprep.subr.bf16.mxu0 0
    %1327 = vmatpush1.bf16.msra.mxu0 0
    %1328 = vmatprep.subr.bf16.mxu0 0
    %1329 = vmatpush1.bf16.msra.mxu0 0
    %1330 = vmatprep.subr.bf16.mxu0 0
    %1331 = vmatpush1.bf16.msra.mxu0 0
    %1332 = vmatprep.subr.bf16.mxu0 0
    %1333 = vmatpush1.bf16.msra.mxu0 0
    %1334 = vmatprep.mubr.bf16.mxu0 0
    %1335 = vmatmul.mubr.bf16.gmra.mrb[0].mxu0 %v1300
    %v1336 = vpop.f32.mrb[0].mxu0
    %v1337 = vadd.f32 %v1273, %v1336
    %v1338 = vpop.f32.mrb[0].mxu0
    %v1339 = vpop.f32.mrb[0].mxu0
    %v1340 = vpop.f32.mrb[0].mxu0
    %1341 = vdwg.mxu0
    %v1342 = vtanh.pop %v1337
    %v1343 = vmul.f32 %v1342, %v1015
    %v1344 = vpack.c.bf16 %v1343, %v1343
    %1346 = vrot.lane.b32.xlu0 %v1344, 112
    %v1347 = vpop.permute.xlu0 %1346
    %v1349 = vsel %vm169, %v1347, 0
    %1351 = vmatprep.subr.bf16.mxu0 0
    %1352 = vmatpush1.bf16.msra.mxu0 %v1046
    %1353 = vmatprep.subr.bf16.mxu0 0
    %1354 = vmatpush1.bf16.msra.mxu0 %v1047
    %1355 = vmatprep.subr.bf16.mxu0 0
    %1356 = vmatpush1.bf16.msra.mxu0 %v1048
    %1357 = vmatprep.subr.bf16.mxu0 0
    %1358 = vmatpush1.bf16.msra.mxu0 %v1049
    %1359 = vmatprep.subr.bf16.mxu0 0
    %1360 = vmatpush1.bf16.msra.mxu0 0
    %1361 = vmatprep.subr.bf16.mxu0 0
    %1362 = vmatpush1.bf16.msra.mxu0 0
    %1363 = vmatprep.subr.bf16.mxu0 0
    %1364 = vmatpush1.bf16.msra.mxu0 0
    %1365 = vmatprep.subr.bf16.mxu0 0
    %1366 = vmatpush1.bf16.msra.mxu0 0
    %1367 = vmatprep.subr.bf16.mxu0 0
    %1368 = vmatpush1.bf16.msra.mxu0 0
    %1369 = vmatprep.subr.bf16.mxu0 0
    %1370 = vmatpush1.bf16.msra.mxu0 0
    %1371 = vmatprep.subr.bf16.mxu0 0
    %1372 = vmatpush1.bf16.msra.mxu0 0
    %1373 = vmatprep.subr.bf16.mxu0 0
    %1374 = vmatpush1.bf16.msra.mxu0 0
    %1375 = vmatprep.subr.bf16.mxu0 0
    %1376 = vmatpush1.bf16.msra.mxu0 0
    %1377 = vmatprep.subr.bf16.mxu0 0
    %1378 = vmatpush1.bf16.msra.mxu0 0
    %1379 = vmatprep.subr.bf16.mxu0 0
    %1380 = vmatpush1.bf16.msra.mxu0 0
    %1381 = vmatprep.subr.bf16.mxu0 0
    %1382 = vmatpush1.bf16.msra.mxu0 0
    %1383 = vmatprep.mubr.bf16.mxu0 0
    %1384 = vmatmul.mubr.bf16.gmra.mrb[0].mxu0 %v1349
    %v1385 = vpop.f32.mrb[0].mxu0
    %v1386 = vadd.f32 0.0, %v1385
    %v1387 = vpop.f32.mrb[0].mxu0
    %v1388 = vpop.f32.mrb[0].mxu0
    %v1389 = vpop.f32.mrb[0].mxu0
    %1390 = vdwg.mxu0
    %s1391 = smul.f32 %s962, 0.5
    %v1392 = vadd.f32 %v902, %v1342
    %v1393 = vstv %s1391
    %v1394 = vmul.f32 %v1393, %v1392
    %v1395 = vadd.f32 %v958, %v1394
    %v1396 = vadd.f32 %v1092, %v1386
    %v1397 = vmul.f32 %v1396, 0.5
    %v1398 = vadd.f32 %v1395, %v1397
    %s1399 = scalar_lea.vmem [#allocation11], 16
    %1400 = vst.msk [vmem:[%s1399] sm:$0xff] %vm232, %v1398
    %s1401 = sadd.s32 %s68, 3
    %s1402 = sld [smem:[#allocation9 + %s1401]]
    %s1403 = scalar_lea.vmem %s2, 24
    %v1404 = vld [vmem:[%s1403] sm:$0xff]
    %v1405 = vpack.c.bf16 %v1404, %v1404
    %v1406 = vld [vmem:[%s10] sm:$0x3]
    %v1408 = vsel %vm87, %v1405, 0
    %v1411 = vsel %vm91, %v1406, 0
    %1413 = vmatprep.subr.bf16.mxu0 0
    %1414 = vmatpush1.bf16.msra.mxu0 %v1411
    %1415 = vmatprep.subr.bf16.mxu0 0
    %1416 = vmatpush1.bf16.msra.mxu0 0
    %1417 = vmatprep.subr.bf16.mxu0 0
    %1418 = vmatpush1.bf16.msra.mxu0 0
    %1419 = vmatprep.subr.bf16.mxu0 0
    %1420 = vmatpush1.bf16.msra.mxu0 0
    %1421 = vmatprep.subr.bf16.mxu0 0
    %1422 = vmatpush1.bf16.msra.mxu0 0
    %1423 = vmatprep.subr.bf16.mxu0 0
    %1424 = vmatpush1.bf16.msra.mxu0 0
    %1425 = vmatprep.subr.bf16.mxu0 0
    %1426 = vmatpush1.bf16.msra.mxu0 0
    %1427 = vmatprep.subr.bf16.mxu0 0
    %1428 = vmatpush1.bf16.msra.mxu0 0
    %1429 = vmatprep.subr.bf16.mxu0 0
    %1430 = vmatpush1.bf16.msra.mxu0 0
    %1431 = vmatprep.subr.bf16.mxu0 0
    %1432 = vmatpush1.bf16.msra.mxu0 0
    %1433 = vmatprep.subr.bf16.mxu0 0
    %1434 = vmatpush1.bf16.msra.mxu0 0
    %1435 = vmatprep.subr.bf16.mxu0 0
    %1436 = vmatpush1.bf16.msra.mxu0 0
    %1437 = vmatprep.subr.bf16.mxu0 0
    %1438 = vmatpush1.bf16.msra.mxu0 0
    %1439 = vmatprep.subr.bf16.mxu0 0
    %1440 = vmatpush1.bf16.msra.mxu0 0
    %1441 = vmatprep.subr.bf16.mxu0 0
    %1442 = vmatpush1.bf16.msra.mxu0 0
    %1443 = vmatprep.subr.bf16.mxu0 0
    %1444 = vmatpush1.bf16.msra.mxu0 0
    %1445 = vmatprep.mubr.bf16.mxu0 0
    %1446 = vmatmul.mubr.bf16.gmra.mrb[0].mxu0 %v1408
    %v1447 = vpop.f32.mrb[0].mxu0
    %v1448 = vadd.f32 0.0, %v1447
    %v1449 = vpop.f32.mrb[0].mxu0
    %v1450 = vpop.f32.mrb[0].mxu0
    %v1451 = vpop.f32.mrb[0].mxu0
    %1452 = vdwg.mxu0
    %1454 = vrot.lane.b32.xlu0 %v1448, 16
    %v1455 = vpop.permute.xlu0 %1454
    %v1457 = vmul.f32 %v1342, %v1455
    %v1458 = vpack.c.bf16 %v1457, %v1457
    %v1459 = vld [vmem:[%s11] sm:$0xf]
    %v1460 = vld [vmem:[%s11 + $0x4] sm:$0xf]
    %v1461 = vld [vmem:[%s11 + $0x8] sm:$0xf]
    %v1462 = vld [vmem:[%s11 + $0xc] sm:$0xf]
    %v1463 = vld [vmem:[%s11 + $0x10] sm:$0xf]
    %v1464 = vld [vmem:[%s11 + $0x14] sm:$0xf]
    %v1465 = vld [vmem:[%s11 + $0x18] sm:$0xf]
    %v1466 = vld [vmem:[%s11 + $0x1c] sm:$0xf]
    %1468 = vrot.lane.b32.xlu0 %v1458, 112
    %v1469 = vpop.permute.xlu0 %1468
    %v1478 = vunpack.c.l.b16 %v1459
    %v1479 = vunpack.c.l.b16 %v1460
    %v1480 = vunpack.c.l.b16 %v1461
    %v1481 = vunpack.c.l.b16 %v1462
    %v1482 = vunpack.c.l.b16 %v1463
    %v1483 = vunpack.c.l.b16 %v1464
    %v1484 = vunpack.c.l.b16 %v1465
    %v1485 = vunpack.c.l.b16 %v1466
    %v1486 = vpack.c.b16 %v1479, %v1478
    %v1487 = vpack.c.b16 %v1481, %v1480
    %v1488 = vpack.c.b16 %v1483, %v1482
    %v1489 = vpack.c.b16 %v1485, %v1484
    %v1495 = vsel %vm169, %v1469, 0
    %1497 = vmatprep.subr.bf16.mxu0 0
    %1498 = vmatpush1.bf16.msra.mxu0 %v1486
    %1499 = vmatprep.subr.bf16.mxu0 0
    %1500 = vmatpush1.bf16.msra.mxu0 %v1487
    %1501 = vmatprep.subr.bf16.mxu0 0
    %1502 = vmatpush1.bf16.msra.mxu0 %v1488
    %1503 = vmatprep.subr.bf16.mxu0 0
    %1504 = vmatpush1.bf16.msra.mxu0 %v1489
    %1505 = vmatprep.subr.bf16.mxu0 0
    %1506 = vmatpush1.bf16.msra.mxu0 0
    %1507 = vmatprep.subr.bf16.mxu0 0
    %1508 = vmatpush1.bf16.msra.mxu0 0
    %1509 = vmatprep.subr.bf16.mxu0 0
    %1510 = vmatpush1.bf16.msra.mxu0 0
    %1511 = vmatprep.subr.bf16.mxu0 0
    %1512 = vmatpush1.bf16.msra.mxu0 0
    %1513 = vmatprep.subr.bf16.mxu0 0
    %1514 = vmatpush1.bf16.msra.mxu0 0
    %1515 = vmatprep.subr.bf16.mxu0 0
    %1516 = vmatpush1.bf16.msra.mxu0 0
    %1517 = vmatprep.subr.bf16.mxu0 0
    %1518 = vmatpush1.bf16.msra.mxu0 0
    %1519 = vmatprep.subr.bf16.mxu0 0
    %1520 = vmatpush1.bf16.msra.mxu0 0
    %1521 = vmatprep.subr.bf16.mxu0 0
    %1522 = vmatpush1.bf16.msra.mxu0 0
    %1523 = vmatprep.subr.bf16.mxu0 0
    %1524 = vmatpush1.bf16.msra.mxu0 0
    %1525 = vmatprep.subr.bf16.mxu0 0
    %1526 = vmatpush1.bf16.msra.mxu0 0
    %1527 = vmatprep.subr.bf16.mxu0 0
    %1528 = vmatpush1.bf16.msra.mxu0 0
    %1529 = vmatprep.mubr.bf16.mxu0 0
    %1530 = vmatmul.mubr.bf16.gmra.mrb[0].mxu0 %v1495
    %v1531 = vpop.f32.mrb[0].mxu0
    %v1532 = vadd.f32 0.0, %v1531
    %v1533 = vpop.f32.mrb[0].mxu0
    %v1534 = vpop.f32.mrb[0].mxu0
    %v1535 = vpop.f32.mrb[0].mxu0
    %1536 = vdwg.mxu0
    %v1537 = vmul.f32 %v1398, 2.0
    %v1538 = vsub.f32 %v1537, %v1102
    %v1539 = vstv %s1402
    %v1540 = vmul.f32 %v1342, %v1539
    %v1541 = vadd.f32 %v1538, %v1540
    %v1542 = vadd.f32 %v1541, %v1532
    %s1543 = sld [smem:[#allocation6 + %s1401]]
    %v1544 = vld [vmem:[%s3] sm:$0x1]
    %v1545 = vstv %s1543
    %v1546 = vmul.f32 %v1545, %v1544
    %v1547 = vpack.c.bf16 %v1542, %v1542
    %v1548 = vld [vmem:[%s4] sm:$0xf]
    %v1549 = vld [vmem:[%s4 + $0x4] sm:$0xf]
    %v1552 = vunpack.c.l.b16 %v1548
    %v1553 = vunpack.c.l.b16 %v1549
    %v1554 = vpack.c.b16 %v1553, %v1552
    %v1557 = vsel %vm232, %v1547, 0
    %1559 = vmatprep.subr.bf16.mxu0 0
    %1560 = vmatpush1.bf16.msra.mxu0 %v1554
    %1561 = vmatprep.subr.bf16.mxu0 0
    %1562 = vmatpush1.bf16.msra.mxu0 0
    %1563 = vmatprep.subr.bf16.mxu0 0
    %1564 = vmatpush1.bf16.msra.mxu0 0
    %1565 = vmatprep.subr.bf16.mxu0 0
    %1566 = vmatpush1.bf16.msra.mxu0 0
    %1567 = vmatprep.subr.bf16.mxu0 0
    %1568 = vmatpush1.bf16.msra.mxu0 0
    %1569 = vmatprep.subr.bf16.mxu0 0
    %1570 = vmatpush1.bf16.msra.mxu0 0
    %1571 = vmatprep.subr.bf16.mxu0 0
    %1572 = vmatpush1.bf16.msra.mxu0 0
    %1573 = vmatprep.subr.bf16.mxu0 0
    %1574 = vmatpush1.bf16.msra.mxu0 0
    %1575 = vmatprep.subr.bf16.mxu0 0
    %1576 = vmatpush1.bf16.msra.mxu0 0
    %1577 = vmatprep.subr.bf16.mxu0 0
    %1578 = vmatpush1.bf16.msra.mxu0 0
    %1579 = vmatprep.subr.bf16.mxu0 0
    %1580 = vmatpush1.bf16.msra.mxu0 0
    %1581 = vmatprep.subr.bf16.mxu0 0
    %1582 = vmatpush1.bf16.msra.mxu0 0
    %1583 = vmatprep.subr.bf16.mxu0 0
    %1584 = vmatpush1.bf16.msra.mxu0 0
    %1585 = vmatprep.subr.bf16.mxu0 0
    %1586 = vmatpush1.bf16.msra.mxu0 0
    %1587 = vmatprep.subr.bf16.mxu0 0
    %1588 = vmatpush1.bf16.msra.mxu0 0
    %1589 = vmatprep.subr.bf16.mxu0 0
    %1590 = vmatpush1.bf16.msra.mxu0 0
    %1591 = vmatprep.mubr.bf16.mxu0 0
    %1592 = vmatmul.mubr.bf16.gmra.mrb[0].mxu0 %v1557
    %v1593 = vpop.f32.mrb[0].mxu0
    %v1594 = vadd.f32 0.0, %v1593
    %v1595 = vpop.f32.mrb[0].mxu0
    %v1596 = vpop.f32.mrb[0].mxu0
    %v1597 = vpop.f32.mrb[0].mxu0
    %1598 = vdwg.mxu0
    %v1600 = vlaneseq
    %v1601 = vshrl.u32 %v1600, 7
    %v1602 = vsub.s32 0, %v1601
    %v1603 = vrot.slane %v1546, %v1602
    %v1605 = vadd.f32 %v1603, %v1594
    %v1606 = vld [vmem:[%s5] sm:$0x1]
    %v1608 = vlaneseq
    %v1609 = vshrl.u32 %v1608, 7
    %v1610 = vsub.s32 0, %v1609
    %v1611 = vrot.slane %v1606, %v1610
    %v1613 = vadd.f32 %v1605, %v1611
    %v1614 = vmax.f32 %v1613, 0.0
    %v1615 = vpack.c.bf16 %v1614, %v1614
    %v1616 = vld [vmem:[%s6] sm:$0xf]
    %v1617 = vld [vmem:[%s6 + $0x4] sm:$0xf]
    %v1618 = vld [vmem:[%s6 + $0x8] sm:$0xf]
    %v1619 = vld [vmem:[%s6 + $0xc] sm:$0xf]
    %v1620 = vld [vmem:[%s6 + $0x10] sm:$0xf]
    %v1621 = vld [vmem:[%s6 + $0x14] sm:$0xf]
    %v1622 = vld [vmem:[%s6 + $0x18] sm:$0xf]
    %v1623 = vld [vmem:[%s6 + $0x1c] sm:$0xf]
    %v1624 = vld [vmem:[%s7] sm:$0x1]
    %v1626 = vlaneseq
    %v1627 = vshrl.u32 %v1626, 7
    %v1628 = vsub.s32 0, %v1627
    %v1629 = vrot.slane %v1624, %v1628
    %v1639 = vunpack.c.l.b16 %v1616
    %v1640 = vunpack.c.l.b16 %v1617
    %v1641 = vunpack.c.l.b16 %v1618
    %v1642 = vunpack.c.l.b16 %v1619
    %v1643 = vunpack.c.l.b16 %v1620
    %v1644 = vunpack.c.l.b16 %v1621
    %v1645 = vunpack.c.l.b16 %v1622
    %v1646 = vunpack.c.l.b16 %v1623
    %v1647 = vpack.c.b16 %v1640, %v1639
    %v1648 = vpack.c.b16 %v1642, %v1641
    %v1649 = vpack.c.b16 %v1644, %v1643
    %v1650 = vpack.c.b16 %v1646, %v1645
    %v1656 = vsel %vm169, %v1615, 0
    %1658 = vmatprep.subr.bf16.mxu0 0
    %1659 = vmatpush1.bf16.msra.mxu0 %v1647
    %1660 = vmatprep.subr.bf16.mxu0 0
    %1661 = vmatpush1.bf16.msra.mxu0 %v1648
    %1662 = vmatprep.subr.bf16.mxu0 0
    %1663 = vmatpush1.bf16.msra.mxu0 %v1649
    %1664 = vmatprep.subr.bf16.mxu0 0
    %1665 = vmatpush1.bf16.msra.mxu0 %v1650
    %1666 = vmatprep.subr.bf16.mxu0 0
    %1667 = vmatpush1.bf16.msra.mxu0 0
    %1668 = vmatprep.subr.bf16.mxu0 0
    %1669 = vmatpush1.bf16.msra.mxu0 0
    %1670 = vmatprep.subr.bf16.mxu0 0
    %1671 = vmatpush1.bf16.msra.mxu0 0
    %1672 = vmatprep.subr.bf16.mxu0 0
    %1673 = vmatpush1.bf16.msra.mxu0 0
    %1674 = vmatprep.subr.bf16.mxu0 0
    %1675 = vmatpush1.bf16.msra.mxu0 0
    %1676 = vmatprep.subr.bf16.mxu0 0
    %1677 = vmatpush1.bf16.msra.mxu0 0
    %1678 = vmatprep.subr.bf16.mxu0 0
    %1679 = vmatpush1.bf16.msra.mxu0 0
    %1680 = vmatprep.subr.bf16.mxu0 0
    %1681 = vmatpush1.bf16.msra.mxu0 0
    %1682 = vmatprep.subr.bf16.mxu0 0
    %1683 = vmatpush1.bf16.msra.mxu0 0
    %1684 = vmatprep.subr.bf16.mxu0 0
    %1685 = vmatpush1.bf16.msra.mxu0 0
    %1686 = vmatprep.subr.bf16.mxu0 0
    %1687 = vmatpush1.bf16.msra.mxu0 0
    %1688 = vmatprep.subr.bf16.mxu0 0
    %1689 = vmatpush1.bf16.msra.mxu0 0
    %1690 = vmatprep.mubr.bf16.mxu0 0
    %1691 = vmatmul.mubr.bf16.gmra.mrb[0].mxu0 %v1656
    %v1692 = vpop.f32.mrb[0].mxu0
    %v1693 = vadd.f32 %v1629, %v1692
    %v1694 = vpop.f32.mrb[0].mxu0
    %v1695 = vpop.f32.mrb[0].mxu0
    %v1696 = vpop.f32.mrb[0].mxu0
    %1697 = vdwg.mxu0
    %v1698 = vmax.f32 %v1693, 0.0
    %v1699 = vpack.c.bf16 %v1698, %v1698
    %v1700 = vld [vmem:[%s8] sm:$0xf]
    %v1701 = vld [vmem:[%s8 + $0x4] sm:$0xf]
    %v1702 = vld [vmem:[%s8 + $0x8] sm:$0xf]
    %v1703 = vld [vmem:[%s8 + $0xc] sm:$0xf]
    %v1704 = vld [vmem:[%s8 + $0x10] sm:$0xf]
    %v1705 = vld [vmem:[%s8 + $0x14] sm:$0xf]
    %v1706 = vld [vmem:[%s8 + $0x18] sm:$0xf]
    %v1707 = vld [vmem:[%s8 + $0x1c] sm:$0xf]
    %v1708 = vld [vmem:[%s9] sm:$0x1]
    %v1710 = vlaneseq
    %v1711 = vshrl.u32 %v1710, 7
    %v1712 = vsub.s32 0, %v1711
    %v1713 = vrot.slane %v1708, %v1712
    %v1723 = vunpack.c.l.b16 %v1700
    %v1724 = vunpack.c.l.b16 %v1701
    %v1725 = vunpack.c.l.b16 %v1702
    %v1726 = vunpack.c.l.b16 %v1703
    %v1727 = vunpack.c.l.b16 %v1704
    %v1728 = vunpack.c.l.b16 %v1705
    %v1729 = vunpack.c.l.b16 %v1706
    %v1730 = vunpack.c.l.b16 %v1707
    %v1731 = vpack.c.b16 %v1724, %v1723
    %v1732 = vpack.c.b16 %v1726, %v1725
    %v1733 = vpack.c.b16 %v1728, %v1727
    %v1734 = vpack.c.b16 %v1730, %v1729
    %v1740 = vsel %vm169, %v1699, 0
    %1742 = vmatprep.subr.bf16.mxu0 0
    %1743 = vmatpush1.bf16.msra.mxu0 %v1731
    %1744 = vmatprep.subr.bf16.mxu0 0
    %1745 = vmatpush1.bf16.msra.mxu0 %v1732
    %1746 = vmatprep.subr.bf16.mxu0 0
    %1747 = vmatpush1.bf16.msra.mxu0 %v1733
    %1748 = vmatprep.subr.bf16.mxu0 0
    %1749 = vmatpush1.bf16.msra.mxu0 %v1734
    %1750 = vmatprep.subr.bf16.mxu0 0
    %1751 = vmatpush1.bf16.msra.mxu0 0
    %1752 = vmatprep.subr.bf16.mxu0 0
    %1753 = vmatpush1.bf16.msra.mxu0 0
    %1754 = vmatprep.subr.bf16.mxu0 0
    %1755 = vmatpush1.bf16.msra.mxu0 0
    %1756 = vmatprep.subr.bf16.mxu0 0
    %1757 = vmatpush1.bf16.msra.mxu0 0
    %1758 = vmatprep.subr.bf16.mxu0 0
    %1759 = vmatpush1.bf16.msra.mxu0 0
    %1760 = vmatprep.subr.bf16.mxu0 0
    %1761 = vmatpush1.bf16.msra.mxu0 0
    %1762 = vmatprep.subr.bf16.mxu0 0
    %1763 = vmatpush1.bf16.msra.mxu0 0
    %1764 = vmatprep.subr.bf16.mxu0 0
    %1765 = vmatpush1.bf16.msra.mxu0 0
    %1766 = vmatprep.subr.bf16.mxu0 0
    %1767 = vmatpush1.bf16.msra.mxu0 0
    %1768 = vmatprep.subr.bf16.mxu0 0
    %1769 = vmatpush1.bf16.msra.mxu0 0
    %1770 = vmatprep.subr.bf16.mxu0 0
    %1771 = vmatpush1.bf16.msra.mxu0 0
    %1772 = vmatprep.subr.bf16.mxu0 0
    %1773 = vmatpush1.bf16.msra.mxu0 0
    %1774 = vmatprep.mubr.bf16.mxu0 0
    %1775 = vmatmul.mubr.bf16.gmra.mrb[0].mxu0 %v1740
    %v1776 = vpop.f32.mrb[0].mxu0
    %v1777 = vadd.f32 %v1713, %v1776
    %v1778 = vpop.f32.mrb[0].mxu0
    %v1779 = vpop.f32.mrb[0].mxu0
    %v1780 = vpop.f32.mrb[0].mxu0
    %1781 = vdwg.mxu0
    %v1782 = vtanh.pop %v1777
    %v1783 = vmul.f32 %v1782, %v1455
    %v1784 = vpack.c.bf16 %v1783, %v1783
    %1786 = vrot.lane.b32.xlu0 %v1784, 112
    %v1787 = vpop.permute.xlu0 %1786
    %v1789 = vsel %vm169, %v1787, 0
    %1791 = vmatprep.subr.bf16.mxu0 0
    %1792 = vmatpush1.bf16.msra.mxu0 %v1486
    %1793 = vmatprep.subr.bf16.mxu0 0
    %1794 = vmatpush1.bf16.msra.mxu0 %v1487
    %1795 = vmatprep.subr.bf16.mxu0 0
    %1796 = vmatpush1.bf16.msra.mxu0 %v1488
    %1797 = vmatprep.subr.bf16.mxu0 0
    %1798 = vmatpush1.bf16.msra.mxu0 %v1489
    %1799 = vmatprep.subr.bf16.mxu0 0
    %1800 = vmatpush1.bf16.msra.mxu0 0
    %1801 = vmatprep.subr.bf16.mxu0 0
    %1802 = vmatpush1.bf16.msra.mxu0 0
    %1803 = vmatprep.subr.bf16.mxu0 0
    %1804 = vmatpush1.bf16.msra.mxu0 0
    %1805 = vmatprep.subr.bf16.mxu0 0
    %1806 = vmatpush1.bf16.msra.mxu0 0
    %1807 = vmatprep.subr.bf16.mxu0 0
    %1808 = vmatpush1.bf16.msra.mxu0 0
    %1809 = vmatprep.subr.bf16.mxu0 0
    %1810 = vmatpush1.bf16.msra.mxu0 0
    %1811 = vmatprep.subr.bf16.mxu0 0
    %1812 = vmatpush1.bf16.msra.mxu0 0
    %1813 = vmatprep.subr.bf16.mxu0 0
    %1814 = vmatpush1.bf16.msra.mxu0 0
    %1815 = vmatprep.subr.bf16.mxu0 0
    %1816 = vmatpush1.bf16.msra.mxu0 0
    %1817 = vmatprep.subr.bf16.mxu0 0
    %1818 = vmatpush1.bf16.msra.mxu0 0
    %1819 = vmatprep.subr.bf16.mxu0 0
    %1820 = vmatpush1.bf16.msra.mxu0 0
    %1821 = vmatprep.subr.bf16.mxu0 0
    %1822 = vmatpush1.bf16.msra.mxu0 0
    %1823 = vmatprep.mubr.bf16.mxu0 0
    %1824 = vmatmul.mubr.bf16.gmra.mrb[0].mxu0 %v1789
    %v1825 = vpop.f32.mrb[0].mxu0
    %v1826 = vadd.f32 0.0, %v1825
    %v1827 = vpop.f32.mrb[0].mxu0
    %v1828 = vpop.f32.mrb[0].mxu0
    %v1829 = vpop.f32.mrb[0].mxu0
    %1830 = vdwg.mxu0
    %s1831 = smul.f32 %s1402, 0.5
    %v1832 = vadd.f32 %v1342, %v1782
    %v1833 = vstv %s1831
    %v1834 = vmul.f32 %v1833, %v1832
    %v1835 = vadd.f32 %v1398, %v1834
    %v1836 = vadd.f32 %v1532, %v1826
    %v1837 = vmul.f32 %v1836, 0.5
    %v1838 = vadd.f32 %v1835, %v1837
    %s1839 = scalar_lea.vmem [#allocation11], 24
    %1840 = vst.msk [vmem:[%s1839] sm:$0xff] %vm232, %v1838
    %s1841 = sadd.s32 %s68, 4
    %s1842 = sld [smem:[#allocation9 + %s1841]]
    %s1843 = scalar_lea.vmem %s2, 32
    %v1844 = vld [vmem:[%s1843] sm:$0xff]
    %v1845 = vpack.c.bf16 %v1844, %v1844
    %v1846 = vld [vmem:[%s10] sm:$0x3]
    %v1848 = vsel %vm87, %v1845, 0
    %v1851 = vsel %vm91, %v1846, 0
    %1853 = vmatprep.subr.bf16.mxu0 0
    %1854 = vmatpush1.bf16.msra.mxu0 %v1851
    %1855 = vmatprep.subr.bf16.mxu0 0
    %1856 = vmatpush1.bf16.msra.mxu0 0
    %1857 = vmatprep.subr.bf16.mxu0 0
    %1858 = vmatpush1.bf16.msra.mxu0 0
    %1859 = vmatprep.subr.bf16.mxu0 0
    %1860 = vmatpush1.bf16.msra.mxu0 0
    %1861 = vmatprep.subr.bf16.mxu0 0
    %1862 = vmatpush1.bf16.msra.mxu0 0
    %1863 = vmatprep.subr.bf16.mxu0 0
    %1864 = vmatpush1.bf16.msra.mxu0 0
    %1865 = vmatprep.subr.bf16.mxu0 0
    %1866 = vmatpush1.bf16.msra.mxu0 0
    %1867 = vmatprep.subr.bf16.mxu0 0
    %1868 = vmatpush1.bf16.msra.mxu0 0
    %1869 = vmatprep.subr.bf16.mxu0 0
    %1870 = vmatpush1.bf16.msra.mxu0 0
    %1871 = vmatprep.subr.bf16.mxu0 0
    %1872 = vmatpush1.bf16.msra.mxu0 0
    %1873 = vmatprep.subr.bf16.mxu0 0
    %1874 = vmatpush1.bf16.msra.mxu0 0
    %1875 = vmatprep.subr.bf16.mxu0 0
    %1876 = vmatpush1.bf16.msra.mxu0 0
    %1877 = vmatprep.subr.bf16.mxu0 0
    %1878 = vmatpush1.bf16.msra.mxu0 0
    %1879 = vmatprep.subr.bf16.mxu0 0
    %1880 = vmatpush1.bf16.msra.mxu0 0
    %1881 = vmatprep.subr.bf16.mxu0 0
    %1882 = vmatpush1.bf16.msra.mxu0 0
    %1883 = vmatprep.subr.bf16.mxu0 0
    %1884 = vmatpush1.bf16.msra.mxu0 0
    %1885 = vmatprep.mubr.bf16.mxu0 0
    %1886 = vmatmul.mubr.bf16.gmra.mrb[0].mxu0 %v1848
    %v1887 = vpop.f32.mrb[0].mxu0
    %v1888 = vadd.f32 0.0, %v1887
    %v1889 = vpop.f32.mrb[0].mxu0
    %v1890 = vpop.f32.mrb[0].mxu0
    %v1891 = vpop.f32.mrb[0].mxu0
    %1892 = vdwg.mxu0
    %1894 = vrot.lane.b32.xlu0 %v1888, 16
    %v1895 = vpop.permute.xlu0 %1894
    %v1897 = vmul.f32 %v1782, %v1895
    %v1898 = vpack.c.bf16 %v1897, %v1897
    %v1899 = vld [vmem:[%s11] sm:$0xf]
    %v1900 = vld [vmem:[%s11 + $0x4] sm:$0xf]
    %v1901 = vld [vmem:[%s11 + $0x8] sm:$0xf]
    %v1902 = vld [vmem:[%s11 + $0xc] sm:$0xf]
    %v1903 = vld [vmem:[%s11 + $0x10] sm:$0xf]
    %v1904 = vld [vmem:[%s11 + $0x14] sm:$0xf]
    %v1905 = vld [vmem:[%s11 + $0x18] sm:$0xf]
    %v1906 = vld [vmem:[%s11 + $0x1c] sm:$0xf]
    %1908 = vrot.lane.b32.xlu0 %v1898, 112
    %v1909 = vpop.permute.xlu0 %1908
    %v1918 = vunpack.c.l.b16 %v1899
    %v1919 = vunpack.c.l.b16 %v1900
    %v1920 = vunpack.c.l.b16 %v1901
    %v1921 = vunpack.c.l.b16 %v1902
    %v1922 = vunpack.c.l.b16 %v1903
    %v1923 = vunpack.c.l.b16 %v1904
    %v1924 = vunpack.c.l.b16 %v1905
    %v1925 = vunpack.c.l.b16 %v1906
    %v1926 = vpack.c.b16 %v1919, %v1918
    %v1927 = vpack.c.b16 %v1921, %v1920
    %v1928 = vpack.c.b16 %v1923, %v1922
    %v1929 = vpack.c.b16 %v1925, %v1924
    %v1935 = vsel %vm169, %v1909, 0
    %1937 = vmatprep.subr.bf16.mxu0 0
    %1938 = vmatpush1.bf16.msra.mxu0 %v1926
    %1939 = vmatprep.subr.bf16.mxu0 0
    %1940 = vmatpush1.bf16.msra.mxu0 %v1927
    %1941 = vmatprep.subr.bf16.mxu0 0
    %1942 = vmatpush1.bf16.msra.mxu0 %v1928
    %1943 = vmatprep.subr.bf16.mxu0 0
    %1944 = vmatpush1.bf16.msra.mxu0 %v1929
    %1945 = vmatprep.subr.bf16.mxu0 0
    %1946 = vmatpush1.bf16.msra.mxu0 0
    %1947 = vmatprep.subr.bf16.mxu0 0
    %1948 = vmatpush1.bf16.msra.mxu0 0
    %1949 = vmatprep.subr.bf16.mxu0 0
    %1950 = vmatpush1.bf16.msra.mxu0 0
    %1951 = vmatprep.subr.bf16.mxu0 0
    %1952 = vmatpush1.bf16.msra.mxu0 0
    %1953 = vmatprep.subr.bf16.mxu0 0
    %1954 = vmatpush1.bf16.msra.mxu0 0
    %1955 = vmatprep.subr.bf16.mxu0 0
    %1956 = vmatpush1.bf16.msra.mxu0 0
    %1957 = vmatprep.subr.bf16.mxu0 0
    %1958 = vmatpush1.bf16.msra.mxu0 0
    %1959 = vmatprep.subr.bf16.mxu0 0
    %1960 = vmatpush1.bf16.msra.mxu0 0
    %1961 = vmatprep.subr.bf16.mxu0 0
    %1962 = vmatpush1.bf16.msra.mxu0 0
    %1963 = vmatprep.subr.bf16.mxu0 0
    %1964 = vmatpush1.bf16.msra.mxu0 0
    %1965 = vmatprep.subr.bf16.mxu0 0
    %1966 = vmatpush1.bf16.msra.mxu0 0
    %1967 = vmatprep.subr.bf16.mxu0 0
    %1968 = vmatpush1.bf16.msra.mxu0 0
    %1969 = vmatprep.mubr.bf16.mxu0 0
    %1970 = vmatmul.mubr.bf16.gmra.mrb[0].mxu0 %v1935
    %v1971 = vpop.f32.mrb[0].mxu0
    %v1972 = vadd.f32 0.0, %v1971
    %v1973 = vpop.f32.mrb[0].mxu0
    %v1974 = vpop.f32.mrb[0].mxu0
    %v1975 = vpop.f32.mrb[0].mxu0
    %1976 = vdwg.mxu0
    %v1977 = vmul.f32 %v1838, 2.0
    %v1978 = vsub.f32 %v1977, %v1542
    %v1979 = vstv %s1842
    %v1980 = vmul.f32 %v1782, %v1979
    %v1981 = vadd.f32 %v1978, %v1980
    %v1982 = vadd.f32 %v1981, %v1972
    %s1983 = sld [smem:[#allocation6 + %s1841]]
    %v1984 = vld [vmem:[%s3] sm:$0x1]
    %v1985 = vstv %s1983
    %v1986 = vmul.f32 %v1985, %v1984
    %v1987 = vpack.c.bf16 %v1982, %v1982
    %v1988 = vld [vmem:[%s4] sm:$0xf]
    %v1989 = vld [vmem:[%s4 + $0x4] sm:$0xf]
    %v1992 = vunpack.c.l.b16 %v1988
    %v1993 = vunpack.c.l.b16 %v1989
    %v1994 = vpack.c.b16 %v1993, %v1992
    %v1997 = vsel %vm232, %v1987, 0
    %1999 = vmatprep.subr.bf16.mxu0 0
    %2000 = vmatpush1.bf16.msra.mxu0 %v1994
    %2001 = vmatprep.subr.bf16.mxu0 0
    %2002 = vmatpush1.bf16.msra.mxu0 0
    %2003 = vmatprep.subr.bf16.mxu0 0
    %2004 = vmatpush1.bf16.msra.mxu0 0
    %2005 = vmatprep.subr.bf16.mxu0 0
    %2006 = vmatpush1.bf16.msra.mxu0 0
    %2007 = vmatprep.subr.bf16.mxu0 0
    %2008 = vmatpush1.bf16.msra.mxu0 0
    %2009 = vmatprep.subr.bf16.mxu0 0
    %2010 = vmatpush1.bf16.msra.mxu0 0
    %2011 = vmatprep.subr.bf16.mxu0 0
    %2012 = vmatpush1.bf16.msra.mxu0 0
    %2013 = vmatprep.subr.bf16.mxu0 0
    %2014 = vmatpush1.bf16.msra.mxu0 0
    %2015 = vmatprep.subr.bf16.mxu0 0
    %2016 = vmatpush1.bf16.msra.mxu0 0
    %2017 = vmatprep.subr.bf16.mxu0 0
    %2018 = vmatpush1.bf16.msra.mxu0 0
    %2019 = vmatprep.subr.bf16.mxu0 0
    %2020 = vmatpush1.bf16.msra.mxu0 0
    %2021 = vmatprep.subr.bf16.mxu0 0
    %2022 = vmatpush1.bf16.msra.mxu0 0
    %2023 = vmatprep.subr.bf16.mxu0 0
    %2024 = vmatpush1.bf16.msra.mxu0 0
    %2025 = vmatprep.subr.bf16.mxu0 0
    %2026 = vmatpush1.bf16.msra.mxu0 0
    %2027 = vmatprep.subr.bf16.mxu0 0
    %2028 = vmatpush1.bf16.msra.mxu0 0
    %2029 = vmatprep.subr.bf16.mxu0 0
    %2030 = vmatpush1.bf16.msra.mxu0 0
    %2031 = vmatprep.mubr.bf16.mxu0 0
    %2032 = vmatmul.mubr.bf16.gmra.mrb[0].mxu0 %v1997
    %v2033 = vpop.f32.mrb[0].mxu0
    %v2034 = vadd.f32 0.0, %v2033
    %v2035 = vpop.f32.mrb[0].mxu0
    %v2036 = vpop.f32.mrb[0].mxu0
    %v2037 = vpop.f32.mrb[0].mxu0
    %2038 = vdwg.mxu0
    %v2040 = vlaneseq
    %v2041 = vshrl.u32 %v2040, 7
    %v2042 = vsub.s32 0, %v2041
    %v2043 = vrot.slane %v1986, %v2042
    %v2045 = vadd.f32 %v2043, %v2034
    %v2046 = vld [vmem:[%s5] sm:$0x1]
    %v2048 = vlaneseq
    %v2049 = vshrl.u32 %v2048, 7
    %v2050 = vsub.s32 0, %v2049
    %v2051 = vrot.slane %v2046, %v2050
    %v2053 = vadd.f32 %v2045, %v2051
    %v2054 = vmax.f32 %v2053, 0.0
    %v2055 = vpack.c.bf16 %v2054, %v2054
    %v2056 = vld [vmem:[%s6] sm:$0xf]
    %v2057 = vld [vmem:[%s6 + $0x4] sm:$0xf]
    %v2058 = vld [vmem:[%s6 + $0x8] sm:$0xf]
    %v2059 = vld [vmem:[%s6 + $0xc] sm:$0xf]
    %v2060 = vld [vmem:[%s6 + $0x10] sm:$0xf]
    %v2061 = vld [vmem:[%s6 + $0x14] sm:$0xf]
    %v2062 = vld [vmem:[%s6 + $0x18] sm:$0xf]
    %v2063 = vld [vmem:[%s6 + $0x1c] sm:$0xf]
    %v2064 = vld [vmem:[%s7] sm:$0x1]
    %v2066 = vlaneseq
    %v2067 = vshrl.u32 %v2066, 7
    %v2068 = vsub.s32 0, %v2067
    %v2069 = vrot.slane %v2064, %v2068
    %v2079 = vunpack.c.l.b16 %v2056
    %v2080 = vunpack.c.l.b16 %v2057
    %v2081 = vunpack.c.l.b16 %v2058
    %v2082 = vunpack.c.l.b16 %v2059
    %v2083 = vunpack.c.l.b16 %v2060
    %v2084 = vunpack.c.l.b16 %v2061
    %v2085 = vunpack.c.l.b16 %v2062
    %v2086 = vunpack.c.l.b16 %v2063
    %v2087 = vpack.c.b16 %v2080, %v2079
    %v2088 = vpack.c.b16 %v2082, %v2081
    %v2089 = vpack.c.b16 %v2084, %v2083
    %v2090 = vpack.c.b16 %v2086, %v2085
    %v2096 = vsel %vm169, %v2055, 0
    %2098 = vmatprep.subr.bf16.mxu0 0
    %2099 = vmatpush1.bf16.msra.mxu0 %v2087
    %2100 = vmatprep.subr.bf16.mxu0 0
    %2101 = vmatpush1.bf16.msra.mxu0 %v2088
    %2102 = vmatprep.subr.bf16.mxu0 0
    %2103 = vmatpush1.bf16.msra.mxu0 %v2089
    %2104 = vmatprep.subr.bf16.mxu0 0
    %2105 = vmatpush1.bf16.msra.mxu0 %v2090
    %2106 = vmatprep.subr.bf16.mxu0 0
    %2107 = vmatpush1.bf16.msra.mxu0 0
    %2108 = vmatprep.subr.bf16.mxu0 0
    %2109 = vmatpush1.bf16.msra.mxu0 0
    %2110 = vmatprep.subr.bf16.mxu0 0
    %2111 = vmatpush1.bf16.msra.mxu0 0
    %2112 = vmatprep.subr.bf16.mxu0 0
    %2113 = vmatpush1.bf16.msra.mxu0 0
    %2114 = vmatprep.subr.bf16.mxu0 0
    %2115 = vmatpush1.bf16.msra.mxu0 0
    %2116 = vmatprep.subr.bf16.mxu0 0
    %2117 = vmatpush1.bf16.msra.mxu0 0
    %2118 = vmatprep.subr.bf16.mxu0 0
    %2119 = vmatpush1.bf16.msra.mxu0 0
    %2120 = vmatprep.subr.bf16.mxu0 0
    %2121 = vmatpush1.bf16.msra.mxu0 0
    %2122 = vmatprep.subr.bf16.mxu0 0
    %2123 = vmatpush1.bf16.msra.mxu0 0
    %2124 = vmatprep.subr.bf16.mxu0 0
    %2125 = vmatpush1.bf16.msra.mxu0 0
    %2126 = vmatprep.subr.bf16.mxu0 0
    %2127 = vmatpush1.bf16.msra.mxu0 0
    %2128 = vmatprep.subr.bf16.mxu0 0
    %2129 = vmatpush1.bf16.msra.mxu0 0
    %2130 = vmatprep.mubr.bf16.mxu0 0
    %2131 = vmatmul.mubr.bf16.gmra.mrb[0].mxu0 %v2096
    %v2132 = vpop.f32.mrb[0].mxu0
    %v2133 = vadd.f32 %v2069, %v2132
    %v2134 = vpop.f32.mrb[0].mxu0
    %v2135 = vpop.f32.mrb[0].mxu0
    %v2136 = vpop.f32.mrb[0].mxu0
    %2137 = vdwg.mxu0
    %v2138 = vmax.f32 %v2133, 0.0
    %v2139 = vpack.c.bf16 %v2138, %v2138
    %v2140 = vld [vmem:[%s8] sm:$0xf]
    %v2141 = vld [vmem:[%s8 + $0x4] sm:$0xf]
    %v2142 = vld [vmem:[%s8 + $0x8] sm:$0xf]
    %v2143 = vld [vmem:[%s8 + $0xc] sm:$0xf]
    %v2144 = vld [vmem:[%s8 + $0x10] sm:$0xf]
    %v2145 = vld [vmem:[%s8 + $0x14] sm:$0xf]
    %v2146 = vld [vmem:[%s8 + $0x18] sm:$0xf]
    %v2147 = vld [vmem:[%s8 + $0x1c] sm:$0xf]
    %v2148 = vld [vmem:[%s9] sm:$0x1]
    %v2150 = vlaneseq
    %v2151 = vshrl.u32 %v2150, 7
    %v2152 = vsub.s32 0, %v2151
    %v2153 = vrot.slane %v2148, %v2152
    %v2163 = vunpack.c.l.b16 %v2140
    %v2164 = vunpack.c.l.b16 %v2141
    %v2165 = vunpack.c.l.b16 %v2142
    %v2166 = vunpack.c.l.b16 %v2143
    %v2167 = vunpack.c.l.b16 %v2144
    %v2168 = vunpack.c.l.b16 %v2145
    %v2169 = vunpack.c.l.b16 %v2146
    %v2170 = vunpack.c.l.b16 %v2147
    %v2171 = vpack.c.b16 %v2164, %v2163
    %v2172 = vpack.c.b16 %v2166, %v2165
    %v2173 = vpack.c.b16 %v2168, %v2167
    %v2174 = vpack.c.b16 %v2170, %v2169
    %v2180 = vsel %vm169, %v2139, 0
    %2182 = vmatprep.subr.bf16.mxu0 0
    %2183 = vmatpush1.bf16.msra.mxu0 %v2171
    %2184 = vmatprep.subr.bf16.mxu0 0
    %2185 = vmatpush1.bf16.msra.mxu0 %v2172
    %2186 = vmatprep.subr.bf16.mxu0 0
    %2187 = vmatpush1.bf16.msra.mxu0 %v2173
    %2188 = vmatprep.subr.bf16.mxu0 0
    %2189 = vmatpush1.bf16.msra.mxu0 %v2174
    %2190 = vmatprep.subr.bf16.mxu0 0
    %2191 = vmatpush1.bf16.msra.mxu0 0
    %2192 = vmatprep.subr.bf16.mxu0 0
    %2193 = vmatpush1.bf16.msra.mxu0 0
    %2194 = vmatprep.subr.bf16.mxu0 0
    %2195 = vmatpush1.bf16.msra.mxu0 0
    %2196 = vmatprep.subr.bf16.mxu0 0
    %2197 = vmatpush1.bf16.msra.mxu0 0
    %2198 = vmatprep.subr.bf16.mxu0 0
    %2199 = vmatpush1.bf16.msra.mxu0 0
    %2200 = vmatprep.subr.bf16.mxu0 0
    %2201 = vmatpush1.bf16.msra.mxu0 0
    %2202 = vmatprep.subr.bf16.mxu0 0
    %2203 = vmatpush1.bf16.msra.mxu0 0
    %2204 = vmatprep.subr.bf16.mxu0 0
    %2205 = vmatpush1.bf16.msra.mxu0 0
    %2206 = vmatprep.subr.bf16.mxu0 0
    %2207 = vmatpush1.bf16.msra.mxu0 0
    %2208 = vmatprep.subr.bf16.mxu0 0
    %2209 = vmatpush1.bf16.msra.mxu0 0
    %2210 = vmatprep.subr.bf16.mxu0 0
    %2211 = vmatpush1.bf16.msra.mxu0 0
    %2212 = vmatprep.subr.bf16.mxu0 0
    %2213 = vmatpush1.bf16.msra.mxu0 0
    %2214 = vmatprep.mubr.bf16.mxu0 0
    %2215 = vmatmul.mubr.bf16.gmra.mrb[0].mxu0 %v2180
    %v2216 = vpop.f32.mrb[0].mxu0
    %v2217 = vadd.f32 %v2153, %v2216
    %v2218 = vpop.f32.mrb[0].mxu0
    %v2219 = vpop.f32.mrb[0].mxu0
    %v2220 = vpop.f32.mrb[0].mxu0
    %2221 = vdwg.mxu0
    %v2222 = vtanh.pop %v2217
    %v2223 = vmul.f32 %v2222, %v1895
    %v2224 = vpack.c.bf16 %v2223, %v2223
    %2226 = vrot.lane.b32.xlu0 %v2224, 112
    %v2227 = vpop.permute.xlu0 %2226
    %v2229 = vsel %vm169, %v2227, 0
    %2231 = vmatprep.subr.bf16.mxu0 0
    %2232 = vmatpush1.bf16.msra.mxu0 %v1926
    %2233 = vmatprep.subr.bf16.mxu0 0
    %2234 = vmatpush1.bf16.msra.mxu0 %v1927
    %2235 = vmatprep.subr.bf16.mxu0 0
    %2236 = vmatpush1.bf16.msra.mxu0 %v1928
    %2237 = vmatprep.subr.bf16.mxu0 0
    %2238 = vmatpush1.bf16.msra.mxu0 %v1929
    %2239 = vmatprep.subr.bf16.mxu0 0
    %2240 = vmatpush1.bf16.msra.mxu0 0
    %2241 = vmatprep.subr.bf16.mxu0 0
    %2242 = vmatpush1.bf16.msra.mxu0 0
    %2243 = vmatprep.subr.bf16.mxu0 0
    %2244 = vmatpush1.bf16.msra.mxu0 0
    %2245 = vmatprep.subr.bf16.mxu0 0
    %2246 = vmatpush1.bf16.msra.mxu0 0
    %2247 = vmatprep.subr.bf16.mxu0 0
    %2248 = vmatpush1.bf16.msra.mxu0 0
    %2249 = vmatprep.subr.bf16.mxu0 0
    %2250 = vmatpush1.bf16.msra.mxu0 0
    %2251 = vmatprep.subr.bf16.mxu0 0
    %2252 = vmatpush1.bf16.msra.mxu0 0
    %2253 = vmatprep.subr.bf16.mxu0 0
    %2254 = vmatpush1.bf16.msra.mxu0 0
    %2255 = vmatprep.subr.bf16.mxu0 0
    %2256 = vmatpush1.bf16.msra.mxu0 0
    %2257 = vmatprep.subr.bf16.mxu0 0
    %2258 = vmatpush1.bf16.msra.mxu0 0
    %2259 = vmatprep.subr.bf16.mxu0 0
    %2260 = vmatpush1.bf16.msra.mxu0 0
    %2261 = vmatprep.subr.bf16.mxu0 0
    %2262 = vmatpush1.bf16.msra.mxu0 0
    %2263 = vmatprep.mubr.bf16.mxu0 0
    %2264 = vmatmul.mubr.bf16.gmra.mrb[0].mxu0 %v2229
    %v2265 = vpop.f32.mrb[0].mxu0
    %v2266 = vadd.f32 0.0, %v2265
    %v2267 = vpop.f32.mrb[0].mxu0
    %v2268 = vpop.f32.mrb[0].mxu0
    %v2269 = vpop.f32.mrb[0].mxu0
    %2270 = vdwg.mxu0
    %s2271 = smul.f32 %s1842, 0.5
    %v2272 = vadd.f32 %v1782, %v2222
    %v2273 = vstv %s2271
    %v2274 = vmul.f32 %v2273, %v2272
    %v2275 = vadd.f32 %v1838, %v2274
    %v2276 = vadd.f32 %v1972, %v2266
    %v2277 = vmul.f32 %v2276, 0.5
    %v2278 = vadd.f32 %v2275, %v2277
    %s2279 = scalar_lea.vmem [#allocation11], 32
    %2280 = vst.msk [vmem:[%s2279] sm:$0xff] %vm232, %v2278
    %s2281 = sadd.s32 %s68, 5
    %s2282 = sld [smem:[#allocation9 + %s2281]]
    %s2283 = scalar_lea.vmem %s2, 40
    %v2284 = vld [vmem:[%s2283] sm:$0xff]
    %v2285 = vpack.c.bf16 %v2284, %v2284
    %v2286 = vld [vmem:[%s10] sm:$0x3]
    %v2288 = vsel %vm87, %v2285, 0
    %v2291 = vsel %vm91, %v2286, 0
    %2293 = vmatprep.subr.bf16.mxu0 0
    %2294 = vmatpush1.bf16.msra.mxu0 %v2291
    %2295 = vmatprep.subr.bf16.mxu0 0
    %2296 = vmatpush1.bf16.msra.mxu0 0
    %2297 = vmatprep.subr.bf16.mxu0 0
    %2298 = vmatpush1.bf16.msra.mxu0 0
    %2299 = vmatprep.subr.bf16.mxu0 0
    %2300 = vmatpush1.bf16.msra.mxu0 0
    %2301 = vmatprep.subr.bf16.mxu0 0
    %2302 = vmatpush1.bf16.msra.mxu0 0
    %2303 = vmatprep.subr.bf16.mxu0 0
    %2304 = vmatpush1.bf16.msra.mxu0 0
    %2305 = vmatprep.subr.bf16.mxu0 0
    %2306 = vmatpush1.bf16.msra.mxu0 0
    %2307 = vmatprep.subr.bf16.mxu0 0
    %2308 = vmatpush1.bf16.msra.mxu0 0
    %2309 = vmatprep.subr.bf16.mxu0 0
    %2310 = vmatpush1.bf16.msra.mxu0 0
    %2311 = vmatprep.subr.bf16.mxu0 0
    %2312 = vmatpush1.bf16.msra.mxu0 0
    %2313 = vmatprep.subr.bf16.mxu0 0
    %2314 = vmatpush1.bf16.msra.mxu0 0
    %2315 = vmatprep.subr.bf16.mxu0 0
    %2316 = vmatpush1.bf16.msra.mxu0 0
    %2317 = vmatprep.subr.bf16.mxu0 0
    %2318 = vmatpush1.bf16.msra.mxu0 0
    %2319 = vmatprep.subr.bf16.mxu0 0
    %2320 = vmatpush1.bf16.msra.mxu0 0
    %2321 = vmatprep.subr.bf16.mxu0 0
    %2322 = vmatpush1.bf16.msra.mxu0 0
    %2323 = vmatprep.subr.bf16.mxu0 0
    %2324 = vmatpush1.bf16.msra.mxu0 0
    %2325 = vmatprep.mubr.bf16.mxu0 0
    %2326 = vmatmul.mubr.bf16.gmra.mrb[0].mxu0 %v2288
    %v2327 = vpop.f32.mrb[0].mxu0
    %v2328 = vadd.f32 0.0, %v2327
    %v2329 = vpop.f32.mrb[0].mxu0
    %v2330 = vpop.f32.mrb[0].mxu0
    %v2331 = vpop.f32.mrb[0].mxu0
    %2332 = vdwg.mxu0
    %2334 = vrot.lane.b32.xlu0 %v2328, 16
    %v2335 = vpop.permute.xlu0 %2334
    %v2337 = vmul.f32 %v2222, %v2335
    %v2338 = vpack.c.bf16 %v2337, %v2337
    %v2339 = vld [vmem:[%s11] sm:$0xf]
    %v2340 = vld [vmem:[%s11 + $0x4] sm:$0xf]
    %v2341 = vld [vmem:[%s11 + $0x8] sm:$0xf]
    %v2342 = vld [vmem:[%s11 + $0xc] sm:$0xf]
    %v2343 = vld [vmem:[%s11 + $0x10] sm:$0xf]
    %v2344 = vld [vmem:[%s11 + $0x14] sm:$0xf]
    %v2345 = vld [vmem:[%s11 + $0x18] sm:$0xf]
    %v2346 = vld [vmem:[%s11 + $0x1c] sm:$0xf]
    %2348 = vrot.lane.b32.xlu0 %v2338, 112
    %v2349 = vpop.permute.xlu0 %2348
    %v2358 = vunpack.c.l.b16 %v2339
    %v2359 = vunpack.c.l.b16 %v2340
    %v2360 = vunpack.c.l.b16 %v2341
    %v2361 = vunpack.c.l.b16 %v2342
    %v2362 = vunpack.c.l.b16 %v2343
    %v2363 = vunpack.c.l.b16 %v2344
    %v2364 = vunpack.c.l.b16 %v2345
    %v2365 = vunpack.c.l.b16 %v2346
    %v2366 = vpack.c.b16 %v2359, %v2358
    %v2367 = vpack.c.b16 %v2361, %v2360
    %v2368 = vpack.c.b16 %v2363, %v2362
    %v2369 = vpack.c.b16 %v2365, %v2364
    %v2375 = vsel %vm169, %v2349, 0
    %2377 = vmatprep.subr.bf16.mxu0 0
    %2378 = vmatpush1.bf16.msra.mxu0 %v2366
    %2379 = vmatprep.subr.bf16.mxu0 0
    %2380 = vmatpush1.bf16.msra.mxu0 %v2367
    %2381 = vmatprep.subr.bf16.mxu0 0
    %2382 = vmatpush1.bf16.msra.mxu0 %v2368
    %2383 = vmatprep.subr.bf16.mxu0 0
    %2384 = vmatpush1.bf16.msra.mxu0 %v2369
    %2385 = vmatprep.subr.bf16.mxu0 0
    %2386 = vmatpush1.bf16.msra.mxu0 0
    %2387 = vmatprep.subr.bf16.mxu0 0
    %2388 = vmatpush1.bf16.msra.mxu0 0
    %2389 = vmatprep.subr.bf16.mxu0 0
    %2390 = vmatpush1.bf16.msra.mxu0 0
    %2391 = vmatprep.subr.bf16.mxu0 0
    %2392 = vmatpush1.bf16.msra.mxu0 0
    %2393 = vmatprep.subr.bf16.mxu0 0
    %2394 = vmatpush1.bf16.msra.mxu0 0
    %2395 = vmatprep.subr.bf16.mxu0 0
    %2396 = vmatpush1.bf16.msra.mxu0 0
    %2397 = vmatprep.subr.bf16.mxu0 0
    %2398 = vmatpush1.bf16.msra.mxu0 0
    %2399 = vmatprep.subr.bf16.mxu0 0
    %2400 = vmatpush1.bf16.msra.mxu0 0
    %2401 = vmatprep.subr.bf16.mxu0 0
    %2402 = vmatpush1.bf16.msra.mxu0 0
    %2403 = vmatprep.subr.bf16.mxu0 0
    %2404 = vmatpush1.bf16.msra.mxu0 0
    %2405 = vmatprep.subr.bf16.mxu0 0
    %2406 = vmatpush1.bf16.msra.mxu0 0
    %2407 = vmatprep.subr.bf16.mxu0 0
    %2408 = vmatpush1.bf16.msra.mxu0 0
    %2409 = vmatprep.mubr.bf16.mxu0 0
    %2410 = vmatmul.mubr.bf16.gmra.mrb[0].mxu0 %v2375
    %v2411 = vpop.f32.mrb[0].mxu0
    %v2412 = vadd.f32 0.0, %v2411
    %v2413 = vpop.f32.mrb[0].mxu0
    %v2414 = vpop.f32.mrb[0].mxu0
    %v2415 = vpop.f32.mrb[0].mxu0
    %2416 = vdwg.mxu0
    %v2417 = vmul.f32 %v2278, 2.0
    %v2418 = vsub.f32 %v2417, %v1982
    %v2419 = vstv %s2282
    %v2420 = vmul.f32 %v2222, %v2419
    %v2421 = vadd.f32 %v2418, %v2420
    %v2422 = vadd.f32 %v2421, %v2412
    %s2423 = sld [smem:[#allocation6 + %s2281]]
    %v2424 = vld [vmem:[%s3] sm:$0x1]
    %v2425 = vstv %s2423
    %v2426 = vmul.f32 %v2425, %v2424
    %v2427 = vpack.c.bf16 %v2422, %v2422
    %v2428 = vld [vmem:[%s4] sm:$0xf]
    %v2429 = vld [vmem:[%s4 + $0x4] sm:$0xf]
    %v2432 = vunpack.c.l.b16 %v2428
    %v2433 = vunpack.c.l.b16 %v2429
    %v2434 = vpack.c.b16 %v2433, %v2432
    %v2437 = vsel %vm232, %v2427, 0
    %2439 = vmatprep.subr.bf16.mxu0 0
    %2440 = vmatpush1.bf16.msra.mxu0 %v2434
    %2441 = vmatprep.subr.bf16.mxu0 0
    %2442 = vmatpush1.bf16.msra.mxu0 0
    %2443 = vmatprep.subr.bf16.mxu0 0
    %2444 = vmatpush1.bf16.msra.mxu0 0
    %2445 = vmatprep.subr.bf16.mxu0 0
    %2446 = vmatpush1.bf16.msra.mxu0 0
    %2447 = vmatprep.subr.bf16.mxu0 0
    %2448 = vmatpush1.bf16.msra.mxu0 0
    %2449 = vmatprep.subr.bf16.mxu0 0
    %2450 = vmatpush1.bf16.msra.mxu0 0
    %2451 = vmatprep.subr.bf16.mxu0 0
    %2452 = vmatpush1.bf16.msra.mxu0 0
    %2453 = vmatprep.subr.bf16.mxu0 0
    %2454 = vmatpush1.bf16.msra.mxu0 0
    %2455 = vmatprep.subr.bf16.mxu0 0
    %2456 = vmatpush1.bf16.msra.mxu0 0
    %2457 = vmatprep.subr.bf16.mxu0 0
    %2458 = vmatpush1.bf16.msra.mxu0 0
    %2459 = vmatprep.subr.bf16.mxu0 0
    %2460 = vmatpush1.bf16.msra.mxu0 0
    %2461 = vmatprep.subr.bf16.mxu0 0
    %2462 = vmatpush1.bf16.msra.mxu0 0
    %2463 = vmatprep.subr.bf16.mxu0 0
    %2464 = vmatpush1.bf16.msra.mxu0 0
    %2465 = vmatprep.subr.bf16.mxu0 0
    %2466 = vmatpush1.bf16.msra.mxu0 0
    %2467 = vmatprep.subr.bf16.mxu0 0
    %2468 = vmatpush1.bf16.msra.mxu0 0
    %2469 = vmatprep.subr.bf16.mxu0 0
    %2470 = vmatpush1.bf16.msra.mxu0 0
    %2471 = vmatprep.mubr.bf16.mxu0 0
    %2472 = vmatmul.mubr.bf16.gmra.mrb[0].mxu0 %v2437
    %v2473 = vpop.f32.mrb[0].mxu0
    %v2474 = vadd.f32 0.0, %v2473
    %v2475 = vpop.f32.mrb[0].mxu0
    %v2476 = vpop.f32.mrb[0].mxu0
    %v2477 = vpop.f32.mrb[0].mxu0
    %2478 = vdwg.mxu0
    %v2480 = vlaneseq
    %v2481 = vshrl.u32 %v2480, 7
    %v2482 = vsub.s32 0, %v2481
    %v2483 = vrot.slane %v2426, %v2482
    %v2485 = vadd.f32 %v2483, %v2474
    %v2486 = vld [vmem:[%s5] sm:$0x1]
    %v2488 = vlaneseq
    %v2489 = vshrl.u32 %v2488, 7
    %v2490 = vsub.s32 0, %v2489
    %v2491 = vrot.slane %v2486, %v2490
    %v2493 = vadd.f32 %v2485, %v2491
    %v2494 = vmax.f32 %v2493, 0.0
    %v2495 = vpack.c.bf16 %v2494, %v2494
    %v2496 = vld [vmem:[%s6] sm:$0xf]
    %v2497 = vld [vmem:[%s6 + $0x4] sm:$0xf]
    %v2498 = vld [vmem:[%s6 + $0x8] sm:$0xf]
    %v2499 = vld [vmem:[%s6 + $0xc] sm:$0xf]
    %v2500 = vld [vmem:[%s6 + $0x10] sm:$0xf]
    %v2501 = vld [vmem:[%s6 + $0x14] sm:$0xf]
    %v2502 = vld [vmem:[%s6 + $0x18] sm:$0xf]
    %v2503 = vld [vmem:[%s6 + $0x1c] sm:$0xf]
    %v2504 = vld [vmem:[%s7] sm:$0x1]
    %v2506 = vlaneseq
    %v2507 = vshrl.u32 %v2506, 7
    %v2508 = vsub.s32 0, %v2507
    %v2509 = vrot.slane %v2504, %v2508
    %v2519 = vunpack.c.l.b16 %v2496
    %v2520 = vunpack.c.l.b16 %v2497
    %v2521 = vunpack.c.l.b16 %v2498
    %v2522 = vunpack.c.l.b16 %v2499
    %v2523 = vunpack.c.l.b16 %v2500
    %v2524 = vunpack.c.l.b16 %v2501
    %v2525 = vunpack.c.l.b16 %v2502
    %v2526 = vunpack.c.l.b16 %v2503
    %v2527 = vpack.c.b16 %v2520, %v2519
    %v2528 = vpack.c.b16 %v2522, %v2521
    %v2529 = vpack.c.b16 %v2524, %v2523
    %v2530 = vpack.c.b16 %v2526, %v2525
    %v2536 = vsel %vm169, %v2495, 0
    %2538 = vmatprep.subr.bf16.mxu0 0
    %2539 = vmatpush1.bf16.msra.mxu0 %v2527
    %2540 = vmatprep.subr.bf16.mxu0 0
    %2541 = vmatpush1.bf16.msra.mxu0 %v2528
    %2542 = vmatprep.subr.bf16.mxu0 0
    %2543 = vmatpush1.bf16.msra.mxu0 %v2529
    %2544 = vmatprep.subr.bf16.mxu0 0
    %2545 = vmatpush1.bf16.msra.mxu0 %v2530
    %2546 = vmatprep.subr.bf16.mxu0 0
    %2547 = vmatpush1.bf16.msra.mxu0 0
    %2548 = vmatprep.subr.bf16.mxu0 0
    %2549 = vmatpush1.bf16.msra.mxu0 0
    %2550 = vmatprep.subr.bf16.mxu0 0
    %2551 = vmatpush1.bf16.msra.mxu0 0
    %2552 = vmatprep.subr.bf16.mxu0 0
    %2553 = vmatpush1.bf16.msra.mxu0 0
    %2554 = vmatprep.subr.bf16.mxu0 0
    %2555 = vmatpush1.bf16.msra.mxu0 0
    %2556 = vmatprep.subr.bf16.mxu0 0
    %2557 = vmatpush1.bf16.msra.mxu0 0
    %2558 = vmatprep.subr.bf16.mxu0 0
    %2559 = vmatpush1.bf16.msra.mxu0 0
    %2560 = vmatprep.subr.bf16.mxu0 0
    %2561 = vmatpush1.bf16.msra.mxu0 0
    %2562 = vmatprep.subr.bf16.mxu0 0
    %2563 = vmatpush1.bf16.msra.mxu0 0
    %2564 = vmatprep.subr.bf16.mxu0 0
    %2565 = vmatpush1.bf16.msra.mxu0 0
    %2566 = vmatprep.subr.bf16.mxu0 0
    %2567 = vmatpush1.bf16.msra.mxu0 0
    %2568 = vmatprep.subr.bf16.mxu0 0
    %2569 = vmatpush1.bf16.msra.mxu0 0
    %2570 = vmatprep.mubr.bf16.mxu0 0
    %2571 = vmatmul.mubr.bf16.gmra.mrb[0].mxu0 %v2536
    %v2572 = vpop.f32.mrb[0].mxu0
    %v2573 = vadd.f32 %v2509, %v2572
    %v2574 = vpop.f32.mrb[0].mxu0
    %v2575 = vpop.f32.mrb[0].mxu0
    %v2576 = vpop.f32.mrb[0].mxu0
    %2577 = vdwg.mxu0
    %v2578 = vmax.f32 %v2573, 0.0
    %v2579 = vpack.c.bf16 %v2578, %v2578
    %v2580 = vld [vmem:[%s8] sm:$0xf]
    %v2581 = vld [vmem:[%s8 + $0x4] sm:$0xf]
    %v2582 = vld [vmem:[%s8 + $0x8] sm:$0xf]
    %v2583 = vld [vmem:[%s8 + $0xc] sm:$0xf]
    %v2584 = vld [vmem:[%s8 + $0x10] sm:$0xf]
    %v2585 = vld [vmem:[%s8 + $0x14] sm:$0xf]
    %v2586 = vld [vmem:[%s8 + $0x18] sm:$0xf]
    %v2587 = vld [vmem:[%s8 + $0x1c] sm:$0xf]
    %v2588 = vld [vmem:[%s9] sm:$0x1]
    %v2590 = vlaneseq
    %v2591 = vshrl.u32 %v2590, 7
    %v2592 = vsub.s32 0, %v2591
    %v2593 = vrot.slane %v2588, %v2592
    %v2603 = vunpack.c.l.b16 %v2580
    %v2604 = vunpack.c.l.b16 %v2581
    %v2605 = vunpack.c.l.b16 %v2582
    %v2606 = vunpack.c.l.b16 %v2583
    %v2607 = vunpack.c.l.b16 %v2584
    %v2608 = vunpack.c.l.b16 %v2585
    %v2609 = vunpack.c.l.b16 %v2586
    %v2610 = vunpack.c.l.b16 %v2587
    %v2611 = vpack.c.b16 %v2604, %v2603
    %v2612 = vpack.c.b16 %v2606, %v2605
    %v2613 = vpack.c.b16 %v2608, %v2607
    %v2614 = vpack.c.b16 %v2610, %v2609
    %v2620 = vsel %vm169, %v2579, 0
    %2622 = vmatprep.subr.bf16.mxu0 0
    %2623 = vmatpush1.bf16.msra.mxu0 %v2611
    %2624 = vmatprep.subr.bf16.mxu0 0
    %2625 = vmatpush1.bf16.msra.mxu0 %v2612
    %2626 = vmatprep.subr.bf16.mxu0 0
    %2627 = vmatpush1.bf16.msra.mxu0 %v2613
    %2628 = vmatprep.subr.bf16.mxu0 0
    %2629 = vmatpush1.bf16.msra.mxu0 %v2614
    %2630 = vmatprep.subr.bf16.mxu0 0
    %2631 = vmatpush1.bf16.msra.mxu0 0
    %2632 = vmatprep.subr.bf16.mxu0 0
    %2633 = vmatpush1.bf16.msra.mxu0 0
    %2634 = vmatprep.subr.bf16.mxu0 0
    %2635 = vmatpush1.bf16.msra.mxu0 0
    %2636 = vmatprep.subr.bf16.mxu0 0
    %2637 = vmatpush1.bf16.msra.mxu0 0
    %2638 = vmatprep.subr.bf16.mxu0 0
    %2639 = vmatpush1.bf16.msra.mxu0 0
    %2640 = vmatprep.subr.bf16.mxu0 0
    %2641 = vmatpush1.bf16.msra.mxu0 0
    %2642 = vmatprep.subr.bf16.mxu0 0
    %2643 = vmatpush1.bf16.msra.mxu0 0
    %2644 = vmatprep.subr.bf16.mxu0 0
    %2645 = vmatpush1.bf16.msra.mxu0 0
    %2646 = vmatprep.subr.bf16.mxu0 0
    %2647 = vmatpush1.bf16.msra.mxu0 0
    %2648 = vmatprep.subr.bf16.mxu0 0
    %2649 = vmatpush1.bf16.msra.mxu0 0
    %2650 = vmatprep.subr.bf16.mxu0 0
    %2651 = vmatpush1.bf16.msra.mxu0 0
    %2652 = vmatprep.subr.bf16.mxu0 0
    %2653 = vmatpush1.bf16.msra.mxu0 0
    %2654 = vmatprep.mubr.bf16.mxu0 0
    %2655 = vmatmul.mubr.bf16.gmra.mrb[0].mxu0 %v2620
    %v2656 = vpop.f32.mrb[0].mxu0
    %v2657 = vadd.f32 %v2593, %v2656
    %v2658 = vpop.f32.mrb[0].mxu0
    %v2659 = vpop.f32.mrb[0].mxu0
    %v2660 = vpop.f32.mrb[0].mxu0
    %2661 = vdwg.mxu0
    %v2662 = vtanh.pop %v2657
    %v2663 = vmul.f32 %v2662, %v2335
    %v2664 = vpack.c.bf16 %v2663, %v2663
    %2666 = vrot.lane.b32.xlu0 %v2664, 112
    %v2667 = vpop.permute.xlu0 %2666
    %v2669 = vsel %vm169, %v2667, 0
    %2671 = vmatprep.subr.bf16.mxu0 0
    %2672 = vmatpush1.bf16.msra.mxu0 %v2366
    %2673 = vmatprep.subr.bf16.mxu0 0
    %2674 = vmatpush1.bf16.msra.mxu0 %v2367
    %2675 = vmatprep.subr.bf16.mxu0 0
    %2676 = vmatpush1.bf16.msra.mxu0 %v2368
    %2677 = vmatprep.subr.bf16.mxu0 0
    %2678 = vmatpush1.bf16.msra.mxu0 %v2369
    %2679 = vmatprep.subr.bf16.mxu0 0
    %2680 = vmatpush1.bf16.msra.mxu0 0
    %2681 = vmatprep.subr.bf16.mxu0 0
    %2682 = vmatpush1.bf16.msra.mxu0 0
    %2683 = vmatprep.subr.bf16.mxu0 0
    %2684 = vmatpush1.bf16.msra.mxu0 0
    %2685 = vmatprep.subr.bf16.mxu0 0
    %2686 = vmatpush1.bf16.msra.mxu0 0
    %2687 = vmatprep.subr.bf16.mxu0 0
    %2688 = vmatpush1.bf16.msra.mxu0 0
    %2689 = vmatprep.subr.bf16.mxu0 0
    %2690 = vmatpush1.bf16.msra.mxu0 0
    %2691 = vmatprep.subr.bf16.mxu0 0
    %2692 = vmatpush1.bf16.msra.mxu0 0
    %2693 = vmatprep.subr.bf16.mxu0 0
    %2694 = vmatpush1.bf16.msra.mxu0 0
    %2695 = vmatprep.subr.bf16.mxu0 0
    %2696 = vmatpush1.bf16.msra.mxu0 0
    %2697 = vmatprep.subr.bf16.mxu0 0
    %2698 = vmatpush1.bf16.msra.mxu0 0
    %2699 = vmatprep.subr.bf16.mxu0 0
    %2700 = vmatpush1.bf16.msra.mxu0 0
    %2701 = vmatprep.subr.bf16.mxu0 0
    %2702 = vmatpush1.bf16.msra.mxu0 0
    %2703 = vmatprep.mubr.bf16.mxu0 0
    %2704 = vmatmul.mubr.bf16.gmra.mrb[0].mxu0 %v2669
    %v2705 = vpop.f32.mrb[0].mxu0
    %v2706 = vadd.f32 0.0, %v2705
    %v2707 = vpop.f32.mrb[0].mxu0
    %v2708 = vpop.f32.mrb[0].mxu0
    %v2709 = vpop.f32.mrb[0].mxu0
    %2710 = vdwg.mxu0
    %s2711 = smul.f32 %s2282, 0.5
    %v2712 = vadd.f32 %v2222, %v2662
    %v2713 = vstv %s2711
    %v2714 = vmul.f32 %v2713, %v2712
    %v2715 = vadd.f32 %v2278, %v2714
    %v2716 = vadd.f32 %v2412, %v2706
    %v2717 = vmul.f32 %v2716, 0.5
    %v2718 = vadd.f32 %v2715, %v2717
    %s2719 = scalar_lea.vmem [#allocation11], 40
    %2720 = vst.msk [vmem:[%s2719] sm:$0xff] %vm232, %v2718
    %s2721 = sadd.s32 %s68, 6
    %s2722 = sld [smem:[#allocation9 + %s2721]]
    %s2723 = scalar_lea.vmem %s2, 48
    %v2724 = vld [vmem:[%s2723] sm:$0xff]
    %v2725 = vpack.c.bf16 %v2724, %v2724
    %v2726 = vld [vmem:[%s10] sm:$0x3]
    %v2728 = vsel %vm87, %v2725, 0
    %v2731 = vsel %vm91, %v2726, 0
    %2733 = vmatprep.subr.bf16.mxu0 0
    %2734 = vmatpush1.bf16.msra.mxu0 %v2731
    %2735 = vmatprep.subr.bf16.mxu0 0
    %2736 = vmatpush1.bf16.msra.mxu0 0
    %2737 = vmatprep.subr.bf16.mxu0 0
    %2738 = vmatpush1.bf16.msra.mxu0 0
    %2739 = vmatprep.subr.bf16.mxu0 0
    %2740 = vmatpush1.bf16.msra.mxu0 0
    %2741 = vmatprep.subr.bf16.mxu0 0
    %2742 = vmatpush1.bf16.msra.mxu0 0
    %2743 = vmatprep.subr.bf16.mxu0 0
    %2744 = vmatpush1.bf16.msra.mxu0 0
    %2745 = vmatprep.subr.bf16.mxu0 0
    %2746 = vmatpush1.bf16.msra.mxu0 0
    %2747 = vmatprep.subr.bf16.mxu0 0
    %2748 = vmatpush1.bf16.msra.mxu0 0
    %2749 = vmatprep.subr.bf16.mxu0 0
    %2750 = vmatpush1.bf16.msra.mxu0 0
    %2751 = vmatprep.subr.bf16.mxu0 0
    %2752 = vmatpush1.bf16.msra.mxu0 0
    %2753 = vmatprep.subr.bf16.mxu0 0
    %2754 = vmatpush1.bf16.msra.mxu0 0
    %2755 = vmatprep.subr.bf16.mxu0 0
    %2756 = vmatpush1.bf16.msra.mxu0 0
    %2757 = vmatprep.subr.bf16.mxu0 0
    %2758 = vmatpush1.bf16.msra.mxu0 0
    %2759 = vmatprep.subr.bf16.mxu0 0
    %2760 = vmatpush1.bf16.msra.mxu0 0
    %2761 = vmatprep.subr.bf16.mxu0 0
    %2762 = vmatpush1.bf16.msra.mxu0 0
    %2763 = vmatprep.subr.bf16.mxu0 0
    %2764 = vmatpush1.bf16.msra.mxu0 0
    %2765 = vmatprep.mubr.bf16.mxu0 0
    %2766 = vmatmul.mubr.bf16.gmra.mrb[0].mxu0 %v2728
    %v2767 = vpop.f32.mrb[0].mxu0
    %v2768 = vadd.f32 0.0, %v2767
    %v2769 = vpop.f32.mrb[0].mxu0
    %v2770 = vpop.f32.mrb[0].mxu0
    %v2771 = vpop.f32.mrb[0].mxu0
    %2772 = vdwg.mxu0
    %2774 = vrot.lane.b32.xlu0 %v2768, 16
    %v2775 = vpop.permute.xlu0 %2774
    %v2777 = vmul.f32 %v2662, %v2775
    %v2778 = vpack.c.bf16 %v2777, %v2777
    %v2779 = vld [vmem:[%s11] sm:$0xf]
    %v2780 = vld [vmem:[%s11 + $0x4] sm:$0xf]
    %v2781 = vld [vmem:[%s11 + $0x8] sm:$0xf]
    %v2782 = vld [vmem:[%s11 + $0xc] sm:$0xf]
    %v2783 = vld [vmem:[%s11 + $0x10] sm:$0xf]
    %v2784 = vld [vmem:[%s11 + $0x14] sm:$0xf]
    %v2785 = vld [vmem:[%s11 + $0x18] sm:$0xf]
    %v2786 = vld [vmem:[%s11 + $0x1c] sm:$0xf]
    %2788 = vrot.lane.b32.xlu0 %v2778, 112
    %v2789 = vpop.permute.xlu0 %2788
    %v2798 = vunpack.c.l.b16 %v2779
    %v2799 = vunpack.c.l.b16 %v2780
    %v2800 = vunpack.c.l.b16 %v2781
    %v2801 = vunpack.c.l.b16 %v2782
    %v2802 = vunpack.c.l.b16 %v2783
    %v2803 = vunpack.c.l.b16 %v2784
    %v2804 = vunpack.c.l.b16 %v2785
    %v2805 = vunpack.c.l.b16 %v2786
    %v2806 = vpack.c.b16 %v2799, %v2798
    %v2807 = vpack.c.b16 %v2801, %v2800
    %v2808 = vpack.c.b16 %v2803, %v2802
    %v2809 = vpack.c.b16 %v2805, %v2804
    %v2815 = vsel %vm169, %v2789, 0
    %2817 = vmatprep.subr.bf16.mxu0 0
    %2818 = vmatpush1.bf16.msra.mxu0 %v2806
    %2819 = vmatprep.subr.bf16.mxu0 0
    %2820 = vmatpush1.bf16.msra.mxu0 %v2807
    %2821 = vmatprep.subr.bf16.mxu0 0
    %2822 = vmatpush1.bf16.msra.mxu0 %v2808
    %2823 = vmatprep.subr.bf16.mxu0 0
    %2824 = vmatpush1.bf16.msra.mxu0 %v2809
    %2825 = vmatprep.subr.bf16.mxu0 0
    %2826 = vmatpush1.bf16.msra.mxu0 0
    %2827 = vmatprep.subr.bf16.mxu0 0
    %2828 = vmatpush1.bf16.msra.mxu0 0
    %2829 = vmatprep.subr.bf16.mxu0 0
    %2830 = vmatpush1.bf16.msra.mxu0 0
    %2831 = vmatprep.subr.bf16.mxu0 0
    %2832 = vmatpush1.bf16.msra.mxu0 0
    %2833 = vmatprep.subr.bf16.mxu0 0
    %2834 = vmatpush1.bf16.msra.mxu0 0
    %2835 = vmatprep.subr.bf16.mxu0 0
    %2836 = vmatpush1.bf16.msra.mxu0 0
    %2837 = vmatprep.subr.bf16.mxu0 0
    %2838 = vmatpush1.bf16.msra.mxu0 0
    %2839 = vmatprep.subr.bf16.mxu0 0
    %2840 = vmatpush1.bf16.msra.mxu0 0
    %2841 = vmatprep.subr.bf16.mxu0 0
    %2842 = vmatpush1.bf16.msra.mxu0 0
    %2843 = vmatprep.subr.bf16.mxu0 0
    %2844 = vmatpush1.bf16.msra.mxu0 0
    %2845 = vmatprep.subr.bf16.mxu0 0
    %2846 = vmatpush1.bf16.msra.mxu0 0
    %2847 = vmatprep.subr.bf16.mxu0 0
    %2848 = vmatpush1.bf16.msra.mxu0 0
    %2849 = vmatprep.mubr.bf16.mxu0 0
    %2850 = vmatmul.mubr.bf16.gmra.mrb[0].mxu0 %v2815
    %v2851 = vpop.f32.mrb[0].mxu0
    %v2852 = vadd.f32 0.0, %v2851
    %v2853 = vpop.f32.mrb[0].mxu0
    %v2854 = vpop.f32.mrb[0].mxu0
    %v2855 = vpop.f32.mrb[0].mxu0
    %2856 = vdwg.mxu0
    %v2857 = vmul.f32 %v2718, 2.0
    %v2858 = vsub.f32 %v2857, %v2422
    %v2859 = vstv %s2722
    %v2860 = vmul.f32 %v2662, %v2859
    %v2861 = vadd.f32 %v2858, %v2860
    %v2862 = vadd.f32 %v2861, %v2852
    %s2863 = sld [smem:[#allocation6 + %s2721]]
    %v2864 = vld [vmem:[%s3] sm:$0x1]
    %v2865 = vstv %s2863
    %v2866 = vmul.f32 %v2865, %v2864
    %v2867 = vpack.c.bf16 %v2862, %v2862
    %v2868 = vld [vmem:[%s4] sm:$0xf]
    %v2869 = vld [vmem:[%s4 + $0x4] sm:$0xf]
    %v2872 = vunpack.c.l.b16 %v2868
    %v2873 = vunpack.c.l.b16 %v2869
    %v2874 = vpack.c.b16 %v2873, %v2872
    %v2877 = vsel %vm232, %v2867, 0
    %2879 = vmatprep.subr.bf16.mxu0 0
    %2880 = vmatpush1.bf16.msra.mxu0 %v2874
    %2881 = vmatprep.subr.bf16.mxu0 0
    %2882 = vmatpush1.bf16.msra.mxu0 0
    %2883 = vmatprep.subr.bf16.mxu0 0
    %2884 = vmatpush1.bf16.msra.mxu0 0
    %2885 = vmatprep.subr.bf16.mxu0 0
    %2886 = vmatpush1.bf16.msra.mxu0 0
    %2887 = vmatprep.subr.bf16.mxu0 0
    %2888 = vmatpush1.bf16.msra.mxu0 0
    %2889 = vmatprep.subr.bf16.mxu0 0
    %2890 = vmatpush1.bf16.msra.mxu0 0
    %2891 = vmatprep.subr.bf16.mxu0 0
    %2892 = vmatpush1.bf16.msra.mxu0 0
    %2893 = vmatprep.subr.bf16.mxu0 0
    %2894 = vmatpush1.bf16.msra.mxu0 0
    %2895 = vmatprep.subr.bf16.mxu0 0
    %2896 = vmatpush1.bf16.msra.mxu0 0
    %2897 = vmatprep.subr.bf16.mxu0 0
    %2898 = vmatpush1.bf16.msra.mxu0 0
    %2899 = vmatprep.subr.bf16.mxu0 0
    %2900 = vmatpush1.bf16.msra.mxu0 0
    %2901 = vmatprep.subr.bf16.mxu0 0
    %2902 = vmatpush1.bf16.msra.mxu0 0
    %2903 = vmatprep.subr.bf16.mxu0 0
    %2904 = vmatpush1.bf16.msra.mxu0 0
    %2905 = vmatprep.subr.bf16.mxu0 0
    %2906 = vmatpush1.bf16.msra.mxu0 0
    %2907 = vmatprep.subr.bf16.mxu0 0
    %2908 = vmatpush1.bf16.msra.mxu0 0
    %2909 = vmatprep.subr.bf16.mxu0 0
    %2910 = vmatpush1.bf16.msra.mxu0 0
    %2911 = vmatprep.mubr.bf16.mxu0 0
    %2912 = vmatmul.mubr.bf16.gmra.mrb[0].mxu0 %v2877
    %v2913 = vpop.f32.mrb[0].mxu0
    %v2914 = vadd.f32 0.0, %v2913
    %v2915 = vpop.f32.mrb[0].mxu0
    %v2916 = vpop.f32.mrb[0].mxu0
    %v2917 = vpop.f32.mrb[0].mxu0
    %2918 = vdwg.mxu0
    %v2920 = vlaneseq
    %v2921 = vshrl.u32 %v2920, 7
    %v2922 = vsub.s32 0, %v2921
    %v2923 = vrot.slane %v2866, %v2922
    %v2925 = vadd.f32 %v2923, %v2914
    %v2926 = vld [vmem:[%s5] sm:$0x1]
    %v2928 = vlaneseq
    %v2929 = vshrl.u32 %v2928, 7
    %v2930 = vsub.s32 0, %v2929
    %v2931 = vrot.slane %v2926, %v2930
    %v2933 = vadd.f32 %v2925, %v2931
    %v2934 = vmax.f32 %v2933, 0.0
    %v2935 = vpack.c.bf16 %v2934, %v2934
    %v2936 = vld [vmem:[%s6] sm:$0xf]
    %v2937 = vld [vmem:[%s6 + $0x4] sm:$0xf]
    %v2938 = vld [vmem:[%s6 + $0x8] sm:$0xf]
    %v2939 = vld [vmem:[%s6 + $0xc] sm:$0xf]
    %v2940 = vld [vmem:[%s6 + $0x10] sm:$0xf]
    %v2941 = vld [vmem:[%s6 + $0x14] sm:$0xf]
    %v2942 = vld [vmem:[%s6 + $0x18] sm:$0xf]
    %v2943 = vld [vmem:[%s6 + $0x1c] sm:$0xf]
    %v2944 = vld [vmem:[%s7] sm:$0x1]
    %v2946 = vlaneseq
    %v2947 = vshrl.u32 %v2946, 7
    %v2948 = vsub.s32 0, %v2947
    %v2949 = vrot.slane %v2944, %v2948
    %v2959 = vunpack.c.l.b16 %v2936
    %v2960 = vunpack.c.l.b16 %v2937
    %v2961 = vunpack.c.l.b16 %v2938
    %v2962 = vunpack.c.l.b16 %v2939
    %v2963 = vunpack.c.l.b16 %v2940
    %v2964 = vunpack.c.l.b16 %v2941
    %v2965 = vunpack.c.l.b16 %v2942
    %v2966 = vunpack.c.l.b16 %v2943
    %v2967 = vpack.c.b16 %v2960, %v2959
    %v2968 = vpack.c.b16 %v2962, %v2961
    %v2969 = vpack.c.b16 %v2964, %v2963
    %v2970 = vpack.c.b16 %v2966, %v2965
    %v2976 = vsel %vm169, %v2935, 0
    %2978 = vmatprep.subr.bf16.mxu0 0
    %2979 = vmatpush1.bf16.msra.mxu0 %v2967
    %2980 = vmatprep.subr.bf16.mxu0 0
    %2981 = vmatpush1.bf16.msra.mxu0 %v2968
    %2982 = vmatprep.subr.bf16.mxu0 0
    %2983 = vmatpush1.bf16.msra.mxu0 %v2969
    %2984 = vmatprep.subr.bf16.mxu0 0
    %2985 = vmatpush1.bf16.msra.mxu0 %v2970
    %2986 = vmatprep.subr.bf16.mxu0 0
    %2987 = vmatpush1.bf16.msra.mxu0 0
    %2988 = vmatprep.subr.bf16.mxu0 0
    %2989 = vmatpush1.bf16.msra.mxu0 0
    %2990 = vmatprep.subr.bf16.mxu0 0
    %2991 = vmatpush1.bf16.msra.mxu0 0
    %2992 = vmatprep.subr.bf16.mxu0 0
    %2993 = vmatpush1.bf16.msra.mxu0 0
    %2994 = vmatprep.subr.bf16.mxu0 0
    %2995 = vmatpush1.bf16.msra.mxu0 0
    %2996 = vmatprep.subr.bf16.mxu0 0
    %2997 = vmatpush1.bf16.msra.mxu0 0
    %2998 = vmatprep.subr.bf16.mxu0 0
    %2999 = vmatpush1.bf16.msra.mxu0 0
    %3000 = vmatprep.subr.bf16.mxu0 0
    %3001 = vmatpush1.bf16.msra.mxu0 0
    %3002 = vmatprep.subr.bf16.mxu0 0
    %3003 = vmatpush1.bf16.msra.mxu0 0
    %3004 = vmatprep.subr.bf16.mxu0 0
    %3005 = vmatpush1.bf16.msra.mxu0 0
    %3006 = vmatprep.subr.bf16.mxu0 0
    %3007 = vmatpush1.bf16.msra.mxu0 0
    %3008 = vmatprep.subr.bf16.mxu0 0
    %3009 = vmatpush1.bf16.msra.mxu0 0
    %3010 = vmatprep.mubr.bf16.mxu0 0
    %3011 = vmatmul.mubr.bf16.gmra.mrb[0].mxu0 %v2976
    %v3012 = vpop.f32.mrb[0].mxu0
    %v3013 = vadd.f32 %v2949, %v3012
    %v3014 = vpop.f32.mrb[0].mxu0
    %v3015 = vpop.f32.mrb[0].mxu0
    %v3016 = vpop.f32.mrb[0].mxu0
    %3017 = vdwg.mxu0
    %v3018 = vmax.f32 %v3013, 0.0
    %v3019 = vpack.c.bf16 %v3018, %v3018
    %v3020 = vld [vmem:[%s8] sm:$0xf]
    %v3021 = vld [vmem:[%s8 + $0x4] sm:$0xf]
    %v3022 = vld [vmem:[%s8 + $0x8] sm:$0xf]
    %v3023 = vld [vmem:[%s8 + $0xc] sm:$0xf]
    %v3024 = vld [vmem:[%s8 + $0x10] sm:$0xf]
    %v3025 = vld [vmem:[%s8 + $0x14] sm:$0xf]
    %v3026 = vld [vmem:[%s8 + $0x18] sm:$0xf]
    %v3027 = vld [vmem:[%s8 + $0x1c] sm:$0xf]
    %v3028 = vld [vmem:[%s9] sm:$0x1]
    %v3030 = vlaneseq
    %v3031 = vshrl.u32 %v3030, 7
    %v3032 = vsub.s32 0, %v3031
    %v3033 = vrot.slane %v3028, %v3032
    %v3043 = vunpack.c.l.b16 %v3020
    %v3044 = vunpack.c.l.b16 %v3021
    %v3045 = vunpack.c.l.b16 %v3022
    %v3046 = vunpack.c.l.b16 %v3023
    %v3047 = vunpack.c.l.b16 %v3024
    %v3048 = vunpack.c.l.b16 %v3025
    %v3049 = vunpack.c.l.b16 %v3026
    %v3050 = vunpack.c.l.b16 %v3027
    %v3051 = vpack.c.b16 %v3044, %v3043
    %v3052 = vpack.c.b16 %v3046, %v3045
    %v3053 = vpack.c.b16 %v3048, %v3047
    %v3054 = vpack.c.b16 %v3050, %v3049
    %v3060 = vsel %vm169, %v3019, 0
    %3062 = vmatprep.subr.bf16.mxu0 0
    %3063 = vmatpush1.bf16.msra.mxu0 %v3051
    %3064 = vmatprep.subr.bf16.mxu0 0
    %3065 = vmatpush1.bf16.msra.mxu0 %v3052
    %3066 = vmatprep.subr.bf16.mxu0 0
    %3067 = vmatpush1.bf16.msra.mxu0 %v3053
    %3068 = vmatprep.subr.bf16.mxu0 0
    %3069 = vmatpush1.bf16.msra.mxu0 %v3054
    %3070 = vmatprep.subr.bf16.mxu0 0
    %3071 = vmatpush1.bf16.msra.mxu0 0
    %3072 = vmatprep.subr.bf16.mxu0 0
    %3073 = vmatpush1.bf16.msra.mxu0 0
    %3074 = vmatprep.subr.bf16.mxu0 0
    %3075 = vmatpush1.bf16.msra.mxu0 0
    %3076 = vmatprep.subr.bf16.mxu0 0
    %3077 = vmatpush1.bf16.msra.mxu0 0
    %3078 = vmatprep.subr.bf16.mxu0 0
    %3079 = vmatpush1.bf16.msra.mxu0 0
    %3080 = vmatprep.subr.bf16.mxu0 0
    %3081 = vmatpush1.bf16.msra.mxu0 0
    %3082 = vmatprep.subr.bf16.mxu0 0
    %3083 = vmatpush1.bf16.msra.mxu0 0
    %3084 = vmatprep.subr.bf16.mxu0 0
    %3085 = vmatpush1.bf16.msra.mxu0 0
    %3086 = vmatprep.subr.bf16.mxu0 0
    %3087 = vmatpush1.bf16.msra.mxu0 0
    %3088 = vmatprep.subr.bf16.mxu0 0
    %3089 = vmatpush1.bf16.msra.mxu0 0
    %3090 = vmatprep.subr.bf16.mxu0 0
    %3091 = vmatpush1.bf16.msra.mxu0 0
    %3092 = vmatprep.subr.bf16.mxu0 0
    %3093 = vmatpush1.bf16.msra.mxu0 0
    %3094 = vmatprep.mubr.bf16.mxu0 0
    %3095 = vmatmul.mubr.bf16.gmra.mrb[0].mxu0 %v3060
    %v3096 = vpop.f32.mrb[0].mxu0
    %v3097 = vadd.f32 %v3033, %v3096
    %v3098 = vpop.f32.mrb[0].mxu0
    %v3099 = vpop.f32.mrb[0].mxu0
    %v3100 = vpop.f32.mrb[0].mxu0
    %3101 = vdwg.mxu0
    %v3102 = vtanh.pop %v3097
    %v3103 = vmul.f32 %v3102, %v2775
    %v3104 = vpack.c.bf16 %v3103, %v3103
    %3106 = vrot.lane.b32.xlu0 %v3104, 112
    %v3107 = vpop.permute.xlu0 %3106
    %v3109 = vsel %vm169, %v3107, 0
    %3111 = vmatprep.subr.bf16.mxu0 0
    %3112 = vmatpush1.bf16.msra.mxu0 %v2806
    %3113 = vmatprep.subr.bf16.mxu0 0
    %3114 = vmatpush1.bf16.msra.mxu0 %v2807
    %3115 = vmatprep.subr.bf16.mxu0 0
    %3116 = vmatpush1.bf16.msra.mxu0 %v2808
    %3117 = vmatprep.subr.bf16.mxu0 0
    %3118 = vmatpush1.bf16.msra.mxu0 %v2809
    %3119 = vmatprep.subr.bf16.mxu0 0
    %3120 = vmatpush1.bf16.msra.mxu0 0
    %3121 = vmatprep.subr.bf16.mxu0 0
    %3122 = vmatpush1.bf16.msra.mxu0 0
    %3123 = vmatprep.subr.bf16.mxu0 0
    %3124 = vmatpush1.bf16.msra.mxu0 0
    %3125 = vmatprep.subr.bf16.mxu0 0
    %3126 = vmatpush1.bf16.msra.mxu0 0
    %3127 = vmatprep.subr.bf16.mxu0 0
    %3128 = vmatpush1.bf16.msra.mxu0 0
    %3129 = vmatprep.subr.bf16.mxu0 0
    %3130 = vmatpush1.bf16.msra.mxu0 0
    %3131 = vmatprep.subr.bf16.mxu0 0
    %3132 = vmatpush1.bf16.msra.mxu0 0
    %3133 = vmatprep.subr.bf16.mxu0 0
    %3134 = vmatpush1.bf16.msra.mxu0 0
    %3135 = vmatprep.subr.bf16.mxu0 0
    %3136 = vmatpush1.bf16.msra.mxu0 0
    %3137 = vmatprep.subr.bf16.mxu0 0
    %3138 = vmatpush1.bf16.msra.mxu0 0
    %3139 = vmatprep.subr.bf16.mxu0 0
    %3140 = vmatpush1.bf16.msra.mxu0 0
    %3141 = vmatprep.subr.bf16.mxu0 0
    %3142 = vmatpush1.bf16.msra.mxu0 0
    %3143 = vmatprep.mubr.bf16.mxu0 0
    %3144 = vmatmul.mubr.bf16.gmra.mrb[0].mxu0 %v3109
    %v3145 = vpop.f32.mrb[0].mxu0
    %v3146 = vadd.f32 0.0, %v3145
    %v3147 = vpop.f32.mrb[0].mxu0
    %v3148 = vpop.f32.mrb[0].mxu0
    %v3149 = vpop.f32.mrb[0].mxu0
    %3150 = vdwg.mxu0
    %s3151 = smul.f32 %s2722, 0.5
    %v3152 = vadd.f32 %v2662, %v3102
    %v3153 = vstv %s3151
    %v3154 = vmul.f32 %v3153, %v3152
    %v3155 = vadd.f32 %v2718, %v3154
    %v3156 = vadd.f32 %v2852, %v3146
    %v3157 = vmul.f32 %v3156, 0.5
    %v3158 = vadd.f32 %v3155, %v3157
    %s3159 = scalar_lea.vmem [#allocation11], 48
    %3160 = vst.msk [vmem:[%s3159] sm:$0xff] %vm232, %v3158
    %s3161 = sadd.s32 %s68, 7
    %s3162 = sld [smem:[#allocation9 + %s3161]]
    %s3163 = scalar_lea.vmem %s2, 56
    %v3164 = vld [vmem:[%s3163] sm:$0xff]
    %v3165 = vpack.c.bf16 %v3164, %v3164
    %v3166 = vld [vmem:[%s10] sm:$0x3]
    %v3168 = vsel %vm87, %v3165, 0
    %v3171 = vsel %vm91, %v3166, 0
    %3173 = vmatprep.subr.bf16.mxu0 0
    %3174 = vmatpush1.bf16.msra.mxu0 %v3171
    %3175 = vmatprep.subr.bf16.mxu0 0
    %3176 = vmatpush1.bf16.msra.mxu0 0
    %3177 = vmatprep.subr.bf16.mxu0 0
    %3178 = vmatpush1.bf16.msra.mxu0 0
    %3179 = vmatprep.subr.bf16.mxu0 0
    %3180 = vmatpush1.bf16.msra.mxu0 0
    %3181 = vmatprep.subr.bf16.mxu0 0
    %3182 = vmatpush1.bf16.msra.mxu0 0
    %3183 = vmatprep.subr.bf16.mxu0 0
    %3184 = vmatpush1.bf16.msra.mxu0 0
    %3185 = vmatprep.subr.bf16.mxu0 0
    %3186 = vmatpush1.bf16.msra.mxu0 0
    %3187 = vmatprep.subr.bf16.mxu0 0
    %3188 = vmatpush1.bf16.msra.mxu0 0
    %3189 = vmatprep.subr.bf16.mxu0 0
    %3190 = vmatpush1.bf16.msra.mxu0 0
    %3191 = vmatprep.subr.bf16.mxu0 0
    %3192 = vmatpush1.bf16.msra.mxu0 0
    %3193 = vmatprep.subr.bf16.mxu0 0
    %3194 = vmatpush1.bf16.msra.mxu0 0
    %3195 = vmatprep.subr.bf16.mxu0 0
    %3196 = vmatpush1.bf16.msra.mxu0 0
    %3197 = vmatprep.subr.bf16.mxu0 0
    %3198 = vmatpush1.bf16.msra.mxu0 0
    %3199 = vmatprep.subr.bf16.mxu0 0
    %3200 = vmatpush1.bf16.msra.mxu0 0
    %3201 = vmatprep.subr.bf16.mxu0 0
    %3202 = vmatpush1.bf16.msra.mxu0 0
    %3203 = vmatprep.subr.bf16.mxu0 0
    %3204 = vmatpush1.bf16.msra.mxu0 0
    %3205 = vmatprep.mubr.bf16.mxu0 0
    %3206 = vmatmul.mubr.bf16.gmra.mrb[0].mxu0 %v3168
    %v3207 = vpop.f32.mrb[0].mxu0
    %v3208 = vadd.f32 0.0, %v3207
    %v3209 = vpop.f32.mrb[0].mxu0
    %v3210 = vpop.f32.mrb[0].mxu0
    %v3211 = vpop.f32.mrb[0].mxu0
    %3212 = vdwg.mxu0
    %3214 = vrot.lane.b32.xlu0 %v3208, 16
    %v3215 = vpop.permute.xlu0 %3214
    %v3217 = vmul.f32 %v3102, %v3215
    %v3218 = vpack.c.bf16 %v3217, %v3217
    %v3219 = vld [vmem:[%s11] sm:$0xf]
    %v3220 = vld [vmem:[%s11 + $0x4] sm:$0xf]
    %v3221 = vld [vmem:[%s11 + $0x8] sm:$0xf]
    %v3222 = vld [vmem:[%s11 + $0xc] sm:$0xf]
    %v3223 = vld [vmem:[%s11 + $0x10] sm:$0xf]
    %v3224 = vld [vmem:[%s11 + $0x14] sm:$0xf]
    %v3225 = vld [vmem:[%s11 + $0x18] sm:$0xf]
    %v3226 = vld [vmem:[%s11 + $0x1c] sm:$0xf]
    %3228 = vrot.lane.b32.xlu0 %v3218, 112
    %v3229 = vpop.permute.xlu0 %3228
    %v3238 = vunpack.c.l.b16 %v3219
    %v3239 = vunpack.c.l.b16 %v3220
    %v3240 = vunpack.c.l.b16 %v3221
    %v3241 = vunpack.c.l.b16 %v3222
    %v3242 = vunpack.c.l.b16 %v3223
    %v3243 = vunpack.c.l.b16 %v3224
    %v3244 = vunpack.c.l.b16 %v3225
    %v3245 = vunpack.c.l.b16 %v3226
    %v3246 = vpack.c.b16 %v3239, %v3238
    %v3247 = vpack.c.b16 %v3241, %v3240
    %v3248 = vpack.c.b16 %v3243, %v3242
    %v3249 = vpack.c.b16 %v3245, %v3244
    %v3255 = vsel %vm169, %v3229, 0
    %3257 = vmatprep.subr.bf16.mxu0 0
    %3258 = vmatpush1.bf16.msra.mxu0 %v3246
    %3259 = vmatprep.subr.bf16.mxu0 0
    %3260 = vmatpush1.bf16.msra.mxu0 %v3247
    %3261 = vmatprep.subr.bf16.mxu0 0
    %3262 = vmatpush1.bf16.msra.mxu0 %v3248
    %3263 = vmatprep.subr.bf16.mxu0 0
    %3264 = vmatpush1.bf16.msra.mxu0 %v3249
    %3265 = vmatprep.subr.bf16.mxu0 0
    %3266 = vmatpush1.bf16.msra.mxu0 0
    %3267 = vmatprep.subr.bf16.mxu0 0
    %3268 = vmatpush1.bf16.msra.mxu0 0
    %3269 = vmatprep.subr.bf16.mxu0 0
    %3270 = vmatpush1.bf16.msra.mxu0 0
    %3271 = vmatprep.subr.bf16.mxu0 0
    %3272 = vmatpush1.bf16.msra.mxu0 0
    %3273 = vmatprep.subr.bf16.mxu0 0
    %3274 = vmatpush1.bf16.msra.mxu0 0
    %3275 = vmatprep.subr.bf16.mxu0 0
    %3276 = vmatpush1.bf16.msra.mxu0 0
    %3277 = vmatprep.subr.bf16.mxu0 0
    %3278 = vmatpush1.bf16.msra.mxu0 0
    %3279 = vmatprep.subr.bf16.mxu0 0
    %3280 = vmatpush1.bf16.msra.mxu0 0
    %3281 = vmatprep.subr.bf16.mxu0 0
    %3282 = vmatpush1.bf16.msra.mxu0 0
    %3283 = vmatprep.subr.bf16.mxu0 0
    %3284 = vmatpush1.bf16.msra.mxu0 0
    %3285 = vmatprep.subr.bf16.mxu0 0
    %3286 = vmatpush1.bf16.msra.mxu0 0
    %3287 = vmatprep.subr.bf16.mxu0 0
    %3288 = vmatpush1.bf16.msra.mxu0 0
    %3289 = vmatprep.mubr.bf16.mxu0 0
    %3290 = vmatmul.mubr.bf16.gmra.mrb[0].mxu0 %v3255
    %v3291 = vpop.f32.mrb[0].mxu0
    %v3292 = vadd.f32 0.0, %v3291
    %v3293 = vpop.f32.mrb[0].mxu0
    %v3294 = vpop.f32.mrb[0].mxu0
    %v3295 = vpop.f32.mrb[0].mxu0
    %3296 = vdwg.mxu0
    %v3297 = vmul.f32 %v3158, 2.0
    %v3298 = vsub.f32 %v3297, %v2862
    %v3299 = vstv %s3162
    %v3300 = vmul.f32 %v3102, %v3299
    %v3301 = vadd.f32 %v3298, %v3300
    %v3302 = vadd.f32 %v3301, %v3292
    %s3303 = sld [smem:[#allocation6 + %s3161]]
    %v3304 = vld [vmem:[%s3] sm:$0x1]
    %v3305 = vstv %s3303
    %v3306 = vmul.f32 %v3305, %v3304
    %v3307 = vpack.c.bf16 %v3302, %v3302
    %v3308 = vld [vmem:[%s4] sm:$0xf]
    %v3309 = vld [vmem:[%s4 + $0x4] sm:$0xf]
    %v3312 = vunpack.c.l.b16 %v3308
    %v3313 = vunpack.c.l.b16 %v3309
    %v3314 = vpack.c.b16 %v3313, %v3312
    %v3317 = vsel %vm232, %v3307, 0
    %3319 = vmatprep.subr.bf16.mxu0 0
    %3320 = vmatpush1.bf16.msra.mxu0 %v3314
    %3321 = vmatprep.subr.bf16.mxu0 0
    %3322 = vmatpush1.bf16.msra.mxu0 0
    %3323 = vmatprep.subr.bf16.mxu0 0
    %3324 = vmatpush1.bf16.msra.mxu0 0
    %3325 = vmatprep.subr.bf16.mxu0 0
    %3326 = vmatpush1.bf16.msra.mxu0 0
    %3327 = vmatprep.subr.bf16.mxu0 0
    %3328 = vmatpush1.bf16.msra.mxu0 0
    %3329 = vmatprep.subr.bf16.mxu0 0
    %3330 = vmatpush1.bf16.msra.mxu0 0
    %3331 = vmatprep.subr.bf16.mxu0 0
    %3332 = vmatpush1.bf16.msra.mxu0 0
    %3333 = vmatprep.subr.bf16.mxu0 0
    %3334 = vmatpush1.bf16.msra.mxu0 0
    %3335 = vmatprep.subr.bf16.mxu0 0
    %3336 = vmatpush1.bf16.msra.mxu0 0
    %3337 = vmatprep.subr.bf16.mxu0 0
    %3338 = vmatpush1.bf16.msra.mxu0 0
    %3339 = vmatprep.subr.bf16.mxu0 0
    %3340 = vmatpush1.bf16.msra.mxu0 0
    %3341 = vmatprep.subr.bf16.mxu0 0
    %3342 = vmatpush1.bf16.msra.mxu0 0
    %3343 = vmatprep.subr.bf16.mxu0 0
    %3344 = vmatpush1.bf16.msra.mxu0 0
    %3345 = vmatprep.subr.bf16.mxu0 0
    %3346 = vmatpush1.bf16.msra.mxu0 0
    %3347 = vmatprep.subr.bf16.mxu0 0
    %3348 = vmatpush1.bf16.msra.mxu0 0
    %3349 = vmatprep.subr.bf16.mxu0 0
    %3350 = vmatpush1.bf16.msra.mxu0 0
    %3351 = vmatprep.mubr.bf16.mxu0 0
    %3352 = vmatmul.mubr.bf16.gmra.mrb[0].mxu0 %v3317
    %v3353 = vpop.f32.mrb[0].mxu0
    %v3354 = vadd.f32 0.0, %v3353
    %v3355 = vpop.f32.mrb[0].mxu0
    %v3356 = vpop.f32.mrb[0].mxu0
    %v3357 = vpop.f32.mrb[0].mxu0
    %3358 = vdwg.mxu0
    %v3360 = vlaneseq
    %v3361 = vshrl.u32 %v3360, 7
    %v3362 = vsub.s32 0, %v3361
    %v3363 = vrot.slane %v3306, %v3362
    %v3365 = vadd.f32 %v3363, %v3354
    %v3366 = vld [vmem:[%s5] sm:$0x1]
    %v3368 = vlaneseq
    %v3369 = vshrl.u32 %v3368, 7
    %v3370 = vsub.s32 0, %v3369
    %v3371 = vrot.slane %v3366, %v3370
    %v3373 = vadd.f32 %v3365, %v3371
    %v3374 = vmax.f32 %v3373, 0.0
    %v3375 = vpack.c.bf16 %v3374, %v3374
    %v3376 = vld [vmem:[%s6] sm:$0xf]
    %v3377 = vld [vmem:[%s6 + $0x4] sm:$0xf]
    %v3378 = vld [vmem:[%s6 + $0x8] sm:$0xf]
    %v3379 = vld [vmem:[%s6 + $0xc] sm:$0xf]
    %v3380 = vld [vmem:[%s6 + $0x10] sm:$0xf]
    %v3381 = vld [vmem:[%s6 + $0x14] sm:$0xf]
    %v3382 = vld [vmem:[%s6 + $0x18] sm:$0xf]
    %v3383 = vld [vmem:[%s6 + $0x1c] sm:$0xf]
    %v3384 = vld [vmem:[%s7] sm:$0x1]
    %v3386 = vlaneseq
    %v3387 = vshrl.u32 %v3386, 7
    %v3388 = vsub.s32 0, %v3387
    %v3389 = vrot.slane %v3384, %v3388
    %v3399 = vunpack.c.l.b16 %v3376
    %v3400 = vunpack.c.l.b16 %v3377
    %v3401 = vunpack.c.l.b16 %v3378
    %v3402 = vunpack.c.l.b16 %v3379
    %v3403 = vunpack.c.l.b16 %v3380
    %v3404 = vunpack.c.l.b16 %v3381
    %v3405 = vunpack.c.l.b16 %v3382
    %v3406 = vunpack.c.l.b16 %v3383
    %v3407 = vpack.c.b16 %v3400, %v3399
    %v3408 = vpack.c.b16 %v3402, %v3401
    %v3409 = vpack.c.b16 %v3404, %v3403
    %v3410 = vpack.c.b16 %v3406, %v3405
    %v3416 = vsel %vm169, %v3375, 0
    %3418 = vmatprep.subr.bf16.mxu0 0
    %3419 = vmatpush1.bf16.msra.mxu0 %v3407
    %3420 = vmatprep.subr.bf16.mxu0 0
    %3421 = vmatpush1.bf16.msra.mxu0 %v3408
    %3422 = vmatprep.subr.bf16.mxu0 0
    %3423 = vmatpush1.bf16.msra.mxu0 %v3409
    %3424 = vmatprep.subr.bf16.mxu0 0
    %3425 = vmatpush1.bf16.msra.mxu0 %v3410
    %3426 = vmatprep.subr.bf16.mxu0 0
    %3427 = vmatpush1.bf16.msra.mxu0 0
    %3428 = vmatprep.subr.bf16.mxu0 0
    %3429 = vmatpush1.bf16.msra.mxu0 0
    %3430 = vmatprep.subr.bf16.mxu0 0
    %3431 = vmatpush1.bf16.msra.mxu0 0
    %3432 = vmatprep.subr.bf16.mxu0 0
    %3433 = vmatpush1.bf16.msra.mxu0 0
    %3434 = vmatprep.subr.bf16.mxu0 0
    %3435 = vmatpush1.bf16.msra.mxu0 0
    %3436 = vmatprep.subr.bf16.mxu0 0
    %3437 = vmatpush1.bf16.msra.mxu0 0
    %3438 = vmatprep.subr.bf16.mxu0 0
    %3439 = vmatpush1.bf16.msra.mxu0 0
    %3440 = vmatprep.subr.bf16.mxu0 0
    %3441 = vmatpush1.bf16.msra.mxu0 0
    %3442 = vmatprep.subr.bf16.mxu0 0
    %3443 = vmatpush1.bf16.msra.mxu0 0
    %3444 = vmatprep.subr.bf16.mxu0 0
    %3445 = vmatpush1.bf16.msra.mxu0 0
    %3446 = vmatprep.subr.bf16.mxu0 0
    %3447 = vmatpush1.bf16.msra.mxu0 0
    %3448 = vmatprep.subr.bf16.mxu0 0
    %3449 = vmatpush1.bf16.msra.mxu0 0
    %3450 = vmatprep.mubr.bf16.mxu0 0
    %3451 = vmatmul.mubr.bf16.gmra.mrb[0].mxu0 %v3416
    %v3452 = vpop.f32.mrb[0].mxu0
    %v3453 = vadd.f32 %v3389, %v3452
    %v3454 = vpop.f32.mrb[0].mxu0
    %v3455 = vpop.f32.mrb[0].mxu0
    %v3456 = vpop.f32.mrb[0].mxu0
    %3457 = vdwg.mxu0
    %v3458 = vmax.f32 %v3453, 0.0
    %v3459 = vpack.c.bf16 %v3458, %v3458
    %v3460 = vld [vmem:[%s8] sm:$0xf]
    %v3461 = vld [vmem:[%s8 + $0x4] sm:$0xf]
    %v3462 = vld [vmem:[%s8 + $0x8] sm:$0xf]
    %v3463 = vld [vmem:[%s8 + $0xc] sm:$0xf]
    %v3464 = vld [vmem:[%s8 + $0x10] sm:$0xf]
    %v3465 = vld [vmem:[%s8 + $0x14] sm:$0xf]
    %v3466 = vld [vmem:[%s8 + $0x18] sm:$0xf]
    %v3467 = vld [vmem:[%s8 + $0x1c] sm:$0xf]
    %v3468 = vld [vmem:[%s9] sm:$0x1]
    %v3470 = vlaneseq
    %v3471 = vshrl.u32 %v3470, 7
    %v3472 = vsub.s32 0, %v3471
    %v3473 = vrot.slane %v3468, %v3472
    %v3483 = vunpack.c.l.b16 %v3460
    %v3484 = vunpack.c.l.b16 %v3461
    %v3485 = vunpack.c.l.b16 %v3462
    %v3486 = vunpack.c.l.b16 %v3463
    %v3487 = vunpack.c.l.b16 %v3464
    %v3488 = vunpack.c.l.b16 %v3465
    %v3489 = vunpack.c.l.b16 %v3466
    %v3490 = vunpack.c.l.b16 %v3467
    %v3491 = vpack.c.b16 %v3484, %v3483
    %v3492 = vpack.c.b16 %v3486, %v3485
    %v3493 = vpack.c.b16 %v3488, %v3487
    %v3494 = vpack.c.b16 %v3490, %v3489
    %v3500 = vsel %vm169, %v3459, 0
    %3502 = vmatprep.subr.bf16.mxu0 0
    %3503 = vmatpush1.bf16.msra.mxu0 %v3491
    %3504 = vmatprep.subr.bf16.mxu0 0
    %3505 = vmatpush1.bf16.msra.mxu0 %v3492
    %3506 = vmatprep.subr.bf16.mxu0 0
    %3507 = vmatpush1.bf16.msra.mxu0 %v3493
    %3508 = vmatprep.subr.bf16.mxu0 0
    %3509 = vmatpush1.bf16.msra.mxu0 %v3494
    %3510 = vmatprep.subr.bf16.mxu0 0
    %3511 = vmatpush1.bf16.msra.mxu0 0
    %3512 = vmatprep.subr.bf16.mxu0 0
    %3513 = vmatpush1.bf16.msra.mxu0 0
    %3514 = vmatprep.subr.bf16.mxu0 0
    %3515 = vmatpush1.bf16.msra.mxu0 0
    %3516 = vmatprep.subr.bf16.mxu0 0
    %3517 = vmatpush1.bf16.msra.mxu0 0
    %3518 = vmatprep.subr.bf16.mxu0 0
    %3519 = vmatpush1.bf16.msra.mxu0 0
    %3520 = vmatprep.subr.bf16.mxu0 0
    %3521 = vmatpush1.bf16.msra.mxu0 0
    %3522 = vmatprep.subr.bf16.mxu0 0
    %3523 = vmatpush1.bf16.msra.mxu0 0
    %3524 = vmatprep.subr.bf16.mxu0 0
    %3525 = vmatpush1.bf16.msra.mxu0 0
    %3526 = vmatprep.subr.bf16.mxu0 0
    %3527 = vmatpush1.bf16.msra.mxu0 0
    %3528 = vmatprep.subr.bf16.mxu0 0
    %3529 = vmatpush1.bf16.msra.mxu0 0
    %3530 = vmatprep.subr.bf16.mxu0 0
    %3531 = vmatpush1.bf16.msra.mxu0 0
    %3532 = vmatprep.subr.bf16.mxu0 0
    %3533 = vmatpush1.bf16.msra.mxu0 0
    %3534 = vmatprep.mubr.bf16.mxu0 0
    %3535 = vmatmul.mubr.bf16.gmra.mrb[0].mxu0 %v3500
    %v3536 = vpop.f32.mrb[0].mxu0
    %v3537 = vadd.f32 %v3473, %v3536
    %v3538 = vpop.f32.mrb[0].mxu0
    %v3539 = vpop.f32.mrb[0].mxu0
    %v3540 = vpop.f32.mrb[0].mxu0
    %3541 = vdwg.mxu0
    %v3542 = vtanh.pop %v3537
    %v3543 = vmul.f32 %v3542, %v3215
    %v3544 = vpack.c.bf16 %v3543, %v3543
    %3546 = vrot.lane.b32.xlu0 %v3544, 112
    %v3547 = vpop.permute.xlu0 %3546
    %v3549 = vsel %vm169, %v3547, 0
    %3551 = vmatprep.subr.bf16.mxu0 0
    %3552 = vmatpush1.bf16.msra.mxu0 %v3246
    %3553 = vmatprep.subr.bf16.mxu0 0
    %3554 = vmatpush1.bf16.msra.mxu0 %v3247
    %3555 = vmatprep.subr.bf16.mxu0 0
    %3556 = vmatpush1.bf16.msra.mxu0 %v3248
    %3557 = vmatprep.subr.bf16.mxu0 0
    %3558 = vmatpush1.bf16.msra.mxu0 %v3249
    %3559 = vmatprep.subr.bf16.mxu0 0
    %3560 = vmatpush1.bf16.msra.mxu0 0
    %3561 = vmatprep.subr.bf16.mxu0 0
    %3562 = vmatpush1.bf16.msra.mxu0 0
    %3563 = vmatprep.subr.bf16.mxu0 0
    %3564 = vmatpush1.bf16.msra.mxu0 0
    %3565 = vmatprep.subr.bf16.mxu0 0
    %3566 = vmatpush1.bf16.msra.mxu0 0
    %3567 = vmatprep.subr.bf16.mxu0 0
    %3568 = vmatpush1.bf16.msra.mxu0 0
    %3569 = vmatprep.subr.bf16.mxu0 0
    %3570 = vmatpush1.bf16.msra.mxu0 0
    %3571 = vmatprep.subr.bf16.mxu0 0
    %3572 = vmatpush1.bf16.msra.mxu0 0
    %3573 = vmatprep.subr.bf16.mxu0 0
    %3574 = vmatpush1.bf16.msra.mxu0 0
    %3575 = vmatprep.subr.bf16.mxu0 0
    %3576 = vmatpush1.bf16.msra.mxu0 0
    %3577 = vmatprep.subr.bf16.mxu0 0
    %3578 = vmatpush1.bf16.msra.mxu0 0
    %3579 = vmatprep.subr.bf16.mxu0 0
    %3580 = vmatpush1.bf16.msra.mxu0 0
    %3581 = vmatprep.subr.bf16.mxu0 0
    %3582 = vmatpush1.bf16.msra.mxu0 0
    %3583 = vmatprep.mubr.bf16.mxu0 0
    %3584 = vmatmul.mubr.bf16.gmra.mrb[0].mxu0 %v3549
    %v3585 = vpop.f32.mrb[0].mxu0
    %v3586 = vadd.f32 0.0, %v3585
    %v3587 = vpop.f32.mrb[0].mxu0
    %v3588 = vpop.f32.mrb[0].mxu0
    %v3589 = vpop.f32.mrb[0].mxu0
    %3590 = vdwg.mxu0
    %s3591 = smul.f32 %s3162, 0.5
    %v3592 = vadd.f32 %v3102, %v3542
    %v3593 = vstv %s3591
    %v3594 = vmul.f32 %v3593, %v3592
    %v3595 = vadd.f32 %v3158, %v3594
    %v3596 = vadd.f32 %v3292, %v3586
    %v3597 = vmul.f32 %v3596, 0.5
    %v3598 = vadd.f32 %v3595, %v3597
    %s3599 = scalar_lea.vmem [#allocation11], 56
    %3600 = vst.msk [vmem:[%s3599] sm:$0xff] %vm232, %v3598
    %3601 = vst.msk [vmem:[#allocation2] sm:$0xff] %vm232, %v3598
    %3602 = vst.msk [vmem:[#allocation3] sm:$0xff] %vm232, %v3302
    %3603 = vst.msk [vmem:[#allocation4] sm:$0xff] %vm232, %v3542
    %3605 = vrot.lane.b32.xlu0 %v3542, 112
    %v3606 = vpop.permute.xlu0 %3605
    %3608 = vst.msk [vmem:[#allocation5] sm:$0xff] %vm169, %v3606
    // Predicated region
    $region62: #{tpu_custom_call.1} parent=1 // pred_check
      _
    $region63: #{tpu_custom_call.1} parent=1 // pred_check_branch
      %3610 = sbr.rel (0) target = $region65
    $region64: #{tpu_custom_call.1} parent=1 // pred_region
      %s3612 = ssub.s32 1024, 1024
      %3613 = vsyncadd [#allocation7], %s3612
      %s3614 = sshll.u32 [#allocation11], 4
      %s3615 = int_to_ptr.vmem [resolvable:$true] %s3614
      %3620 = dma.vmem_to_hbm [thread:$0]  %s3615, 1024, %s12, [#allocation7], 128, 128, 8
    $region65: #{tpu_custom_call.1} parent=1 // pred_fallthru
      _
    // Predicated region
    $region66: #{tpu_custom_call.1} parent=1 // pred_check
      _
    $region67: #{tpu_custom_call.1} parent=1 // pred_check_branch
      %3622 = sbr.rel (0) target = $region69
    $region68: #{tpu_custom_call.1} parent=1 // pred_region
      %3623 = dma.done [#allocation7], 1024
    $region69: #{tpu_custom_call.1} parent=1 // pred_fallthru
      _
    %3624 = vsyncpa [#allocation7], 1
    %3625 = vsyncpa [#allocation8], 1
    %3626 = vsyncpa [#allocation10], 1

</llo_original>
